<compile_context>
chip_gen: v7x
topology: tpu7x:2x2x1
jax: 0.10.0
libtpu: 0.0.40
codegen_flags: <defaults>
</compile_context>

<pallas_src>
import functools

import jax
import jax.numpy as jnp
from jax.experimental import pallas as pl
from jax.experimental.pallas import tpu as pltpu


def _bilstm_kernel(gf_ref, gb_ref, whh_f_ref, whh_b_ref,
                   of_ref, ob_ref,
                   h_f_s, c_f_s, h_b_s, c_b_s,
                   *, hidden_size, tb_steps, unroll):
    """Fused fwd+bwd LSTM recurrence over one time block.

    gf_ref / gb_ref : (TB, Bp, 4H)  precomputed x-projection + bias
                      (fwd block in forward time order; bwd block is the
                       reverse-order block selected by its index_map)
    whh_*_ref       : (H, 4H)       recurrent weights (transposed)
    of_ref / ob_ref : (TB, Bp, H)   hidden-state outputs per direction
    h_*_s, c_*_s    : (Bp, H) f32   persistent state scratch (read once at
                                    block start, written once at block end;
                                    within the block the state lives in vregs)
    """
    tb = pl.program_id(0)
    H = hidden_size

    @pl.when(tb == 0)
    def _():
        h_f_s[...] = jnp.zeros_like(h_f_s)
        c_f_s[...] = jnp.zeros_like(c_f_s)
        h_b_s[...] = jnp.zeros_like(h_b_s)
        c_b_s[...] = jnp.zeros_like(c_b_s)

    def sigmoid(x):
        # single EUP op (tanh) instead of exp + reciprocal
        return 0.5 * jnp.tanh(0.5 * x) + 0.5

    def cell(gates, c_prev):
        # NOTE: for production H (multiple of 128) these slices are whole
        # lane tiles; for the toy H=32 they are sub-tile but still correct.
        i_g = sigmoid(gates[:, 0 * H:1 * H])
        f_g = sigmoid(gates[:, 1 * H:2 * H])
        g_g = jnp.tanh(gates[:, 2 * H:3 * H])
        o_g = sigmoid(gates[:, 3 * H:4 * H])
        c_new = f_g * c_prev + i_g * g_g
        h_new = o_g * jnp.tanh(c_new)
        return h_new, c_new

    w_dtype = whh_f_ref.dtype

    def step(s, carry):
        hf, cf, hb, cb = carry

        # ---- forward direction: block-local time index s ----
        gates_f = gf_ref[s].astype(jnp.float32) + jnp.dot(
            hf.astype(w_dtype), whh_f_ref[...],
            preferred_element_type=jnp.float32)
        hf, cf = cell(gates_f, cf)
        of_ref[s] = hf.astype(of_ref.dtype)

        # ---- backward direction: processes its block from the end ----
        sb = tb_steps - 1 - s
        gates_b = gb_ref[sb].astype(jnp.float32) + jnp.dot(
            hb.astype(w_dtype), whh_b_ref[...],
            preferred_element_type=jnp.float32)
        hb, cb = cell(gates_b, cb)
        ob_ref[sb] = hb.astype(ob_ref.dtype)
        return (hf, cf, hb, cb)

    carry0 = (h_f_s[...], c_f_s[...], h_b_s[...], c_b_s[...])
    hf, cf, hb, cb = jax.lax.fori_loop(0, tb_steps, step, carry0,
                                       unroll=unroll)
    h_f_s[...] = hf
    c_f_s[...] = cf
    h_b_s[...] = hb
    c_b_s[...] = cb


def _bilstm_recurrent(gates_fwd, gates_bwd, w_hh_f, w_hh_b, hidden_size,
                      *, time_block, unroll):
    """Run the fused bidirectional recurrence.

    gates_fwd / gates_bwd : (Tp, Bp, 4H) time-major; time already padded to a
                            multiple of the block, batch padded to tile size.
    Returns (h_fwd, h_bwd), each (Tp, Bp, H) time-major.
    """
    Tp, Bp, G = gates_fwd.shape
    H = hidden_size
    assert G == 4 * H

    TB = min(time_block, Tp)
    assert Tp % TB == 0, "caller must pad time to a multiple of time_block"
    nb = Tp // TB

    cdt = gates_fwd.dtype
    whh_f_t = jnp.transpose(w_hh_f).astype(cdt)   # (H, 4H)
    whh_b_t = jnp.transpose(w_hh_b).astype(cdt)   # (H, 4H)

    kernel = functools.partial(_bilstm_kernel, hidden_size=H, tb_steps=TB,
                               unroll=unroll)

    # VMEM budget: double-buffered gate/out blocks + weights + f32 state.
    isz = jnp.dtype(cdt).itemsize
    need = (2 * 2 * TB * Bp * 4 * H * isz       # gate input blocks (2 dirs)
            + 2 * 2 * TB * Bp * H * isz         # output blocks (2 dirs)
            + 2 * 2 * H * 4 * H * isz           # recurrent weights (2 dirs)
            + 4 * Bp * H * 4)                   # f32 state scratch
    vmem_limit = int(min(max(2 * need, 32 * 1024 * 1024), 64 * 1024 * 1024))

    out_f, out_b = pl.pallas_call(
        kernel,
        out_shape=(
            jax.ShapeDtypeStruct((Tp, Bp, H), cdt),
            jax.ShapeDtypeStruct((Tp, Bp, H), cdt),
        ),
        grid_spec=pltpu.PrefetchScalarGridSpec(
            num_scalar_prefetch=0,
            grid=(nb,),
            in_specs=[
                # forward gates: forward block order
                pl.BlockSpec((TB, Bp, 4 * H), lambda tb: (tb, 0, 0)),
                # backward gates: reverse block order (recurrence runs T-1 -> 0)
                pl.BlockSpec((TB, Bp, 4 * H), lambda tb: (nb - 1 - tb, 0, 0)),
                # recurrent weights: constant block index => re-DMA is elided
                # across grid steps.
                # TODO(synk): pipeline_mode=pl.Buffered(1) would also drop the
                #             second weight buffer (extra VMEM headroom on v7x).
                pl.BlockSpec((H, 4 * H), lambda tb: (0, 0)),
                pl.BlockSpec((H, 4 * H), lambda tb: (0, 0)),
            ],
            out_specs=[
                pl.BlockSpec((TB, Bp, H), lambda tb: (tb, 0, 0)),
                pl.BlockSpec((TB, Bp, H), lambda tb: (nb - 1 - tb, 0, 0)),
            ],
            scratch_shapes=[
                pltpu.VMEM((Bp, H), jnp.float32),  # h_f
                pltpu.VMEM((Bp, H), jnp.float32),  # c_f
                pltpu.VMEM((Bp, H), jnp.float32),  # h_b
                pltpu.VMEM((Bp, H), jnp.float32),  # c_b
            ],
        ),
        compiler_params=pltpu.CompilerParams(
            # recurrence across time blocks must run sequentially
            dimension_semantics=("arbitrary",),
            vmem_limit_bytes=vmem_limit,
        ),
    )(gates_fwd, gates_bwd, whh_f_t, whh_b_t)
    return out_f, out_b


def init_bilstm_params(key, input_size, hidden_size, num_layers,
                       dtype=jnp.float32):
    """Deterministic init matching nn.LSTM parameter shapes."""
    params = []
    bound = 1.0 / jnp.sqrt(jnp.asarray(hidden_size, jnp.float32))
    for layer in range(num_layers):
        in_dim = input_size if layer == 0 else 2 * hidden_size
        layer_params = {}
        for dname in ("fwd", "bwd"):
            key, k1, k2, k3, k4 = jax.random.split(key, 5)
            layer_params[dname] = dict(
                w_ih=jax.random.uniform(k1, (4 * hidden_size, in_dim),
                                        dtype, -bound, bound),
                w_hh=jax.random.uniform(k2, (4 * hidden_size, hidden_size),
                                        dtype, -bound, bound),
                b_ih=jax.random.uniform(k3, (4 * hidden_size,),
                                        dtype, -bound, bound),
                b_hh=jax.random.uniform(k4, (4 * hidden_size,),
                                        dtype, -bound, bound),
            )
        params.append(layer_params)
    return params


def bilstm_forward(x, params, hidden_size, num_layers,
                   time_block=32, unroll=8, compute_dtype=jnp.bfloat16):
    """x: (B, T, input_size), batch_first.  Returns (B, T, 2*hidden_size)."""
    B, T, D = x.shape
    H = hidden_size
    in_dtype = x.dtype

    # Matmul precision: exact f32 passes when checking against the strict
    # reference; default (fast) precision for the optimized bf16 path.
    mm_prec = (jax.lax.Precision.HIGHEST
               if jnp.dtype(compute_dtype) == jnp.dtype(jnp.float32)
               else jax.lax.Precision.DEFAULT)

    # Pad batch to a full packed sublane tile (8 rows f32, 16 rows bf16);
    # padded rows never interact with real rows and are sliced off at the end.
    sub = 8 * max(1, 4 // jnp.dtype(compute_dtype).itemsize)
    Bp = ((B + sub - 1) // sub) * sub
    if Bp != B:
        x = jnp.pad(x, ((0, Bp - B), (0, 0), (0, 0)))

    # Pad the TIME axis on the small input x (not on the big gate arrays).
    # Padded steps get exactly-zero gate pre-activations (mask kills the bias
    # and any layer>0 hidden contribution), so i=f=o=0.5, g=0 keeps the
    # backward-direction lead-in state exactly zero; the forward direction's
    # padded tail is sliced off at the end.
    TB = min(time_block, T)
    nb = -(-T // TB)
    Tp = nb * TB
    if Tp != T:
        x = jnp.pad(x, ((0, 0), (0, Tp - T), (0, 0)))
        time_mask = (jnp.arange(Tp) < T).astype(jnp.float32)[:, None, None]
    else:
        time_mask = None

    h_f = h_b = None
    for layer in range(num_layers):
        pf = params[layer]["fwd"]
        pb = params[layer]["bwd"]
        bias_f = (pf["b_ih"] + pf["b_hh"]).astype(jnp.float32)
        bias_b = (pb["b_ih"] + pb["b_hh"]).astype(jnp.float32)

        if layer == 0:
            # One big MXU matmul per direction; the (B,T,D)->(T,B,4H) layout
            # change is folded into the einsum (no separate transpose pass).
            gf = jnp.einsum("btd,gd->tbg", x, pf["w_ih"],
                            preferred_element_type=jnp.float32,
                            precision=mm_prec) + bias_f
            gb = jnp.einsum("btd,gd->tbg", x, pb["w_ih"],
                            preferred_element_type=jnp.float32,
                            precision=mm_prec) + bias_b
        else:
            # Consume the previous layer's fwd/bwd halves separately so the
            # (T,B,2H) concat is never materialized between layers.
            hdt = h_f.dtype
            wf_a, wf_b = pf["w_ih"][:, :H].astype(hdt), pf["w_ih"][:, H:].astype(hdt)
            wb_a, wb_b = pb["w_ih"][:, :H].astype(hdt), pb["w_ih"][:, H:].astype(hdt)
            gf = (jnp.einsum("tbh,gh->tbg", h_f, wf_a,
                             preferred_element_type=jnp.float32,
                             precision=mm_prec)
                  + jnp.einsum("tbh,gh->tbg", h_b, wf_b,
                               preferred_element_type=jnp.float32,
                               precision=mm_prec) + bias_f)
            gb = (jnp.einsum("tbh,gh->tbg", h_f, wb_a,
                             preferred_element_type=jnp.float32,
                             precision=mm_prec)
                  + jnp.einsum("tbh,gh->tbg", h_b, wb_b,
                               preferred_element_type=jnp.float32,
                               precision=mm_prec) + bias_b)

        if time_mask is not None:
            gf = gf * time_mask
            gb = gb * time_mask

        gf = gf.astype(compute_dtype)
        gb = gb.astype(compute_dtype)

        h_f, h_b = _bilstm_recurrent(gf, gb, pf["w_hh"], pb["w_hh"], H,
                                     time_block=TB, unroll=unroll)
        # dropout(0.5) between layers: identity in inference mode
        # TODO(synk): training-mode inter-layer dropout not implemented.

    out_tm = jnp.concatenate([h_f, h_b], axis=-1)[:T]   # (T, Bp, 2H)
    out = jnp.transpose(out_tm, (1, 0, 2))              # (Bp, T, 2H)
    return out[:B].astype(in_dtype)


def _reference_bilstm(x, params, hidden_size, num_layers):
    """Pure-JAX reference (lax.scan) for correctness check (f32, exact)."""
    prec = jax.lax.Precision.HIGHEST

    def one_dir(seq_tm, p, reverse):
        T, B, _ = seq_tm.shape
        H = hidden_size
        seq = seq_tm[::-1] if reverse else seq_tm

        def step(carry, x_t):
            h, c = carry
            gates = (jnp.dot(x_t, p["w_ih"].T, precision=prec)
                     + jnp.dot(h, p["w_hh"].T, precision=prec)
                     + p["b_ih"] + p["b_hh"])
            i = jax.nn.sigmoid(gates[:, 0 * H:1 * H])
            f = jax.nn.sigmoid(gates[:, 1 * H:2 * H])
            g = jnp.tanh(gates[:, 2 * H:3 * H])
            o = jax.nn.sigmoid(gates[:, 3 * H:4 * H])
            c = f * c + i * g
            h = o * jnp.tanh(c)
            return (h, c), h

        h0 = jnp.zeros((B, H), seq.dtype)
        c0 = jnp.zeros((B, H), seq.dtype)
        _, hs = jax.lax.scan(step, (h0, c0), seq)
        return hs[::-1] if reverse else hs

    x_tm = jnp.transpose(x, (1, 0, 2))
    layer_in = x_tm
    for layer in range(num_layers):
        f = one_dir(layer_in, params[layer]["fwd"], False)
        b = one_dir(layer_in, params[layer]["bwd"], True)
        layer_in = jnp.concatenate([f, b], axis=-1)
    return jnp.transpose(layer_in, (1, 0, 2))


if __name__ == "__main__":
    # Small shapes consistent with the module's forward: x (batch, seq, input)
    batch, seq_len, input_size = 4, 8, 16
    hidden_size, num_layers = 32, 2

    key = jax.random.PRNGKey(0)
    kx, kp = jax.random.split(key)
    x = jax.random.normal(kx, (batch, seq_len, input_size), jnp.float32)
    params = init_bilstm_params(kp, input_size, hidden_size, num_layers)

    ref = jax.block_until_ready(
        _reference_bilstm(x, params, hidden_size, num_layers))

    # 1) exact-precision path (f32 gate/weight streams) — strict semantic check
    out_f32 = jax.block_until_ready(
        bilstm_forward(x, params, hidden_size, num_layers,
                       compute_dtype=jnp.float32))
    assert out_f32.shape == (batch, seq_len, 2 * hidden_size), out_f32.shape
    assert jnp.allclose(out_f32, ref, atol=2e-3, rtol=2e-3), (
        float(jnp.max(jnp.abs(out_f32 - ref))))

    # 2) optimized path (bf16 gate/weight streams, f32 cell math) — loose check
    out_bf16 = jax.block_until_ready(
        bilstm_forward(x, params, hidden_size, num_layers,
                       compute_dtype=jnp.bfloat16))
    assert out_bf16.shape == (batch, seq_len, 2 * hidden_size), out_bf16.shape
    assert jnp.allclose(out_bf16, ref, atol=5e-2, rtol=5e-2), (
        float(jnp.max(jnp.abs(out_bf16 - ref))))

    print("KERNEL_OK")
</pallas_src>

<mosaic_0001>
module attributes {stable_mosaic.version = 11 : i64} {
  func.func @_bilstm_kernel(%arg0: i32, %arg1: memref<8x8x128xf32, #tpu.memory_space<vmem>>, %arg2: memref<8x8x128xf32, #tpu.memory_space<vmem>>, %arg3: memref<32x128xf32, #tpu.memory_space<vmem>>, %arg4: memref<32x128xf32, #tpu.memory_space<vmem>>, %arg5: memref<8x8x32xf32, #tpu.memory_space<vmem>>, %arg6: memref<8x8x32xf32, #tpu.memory_space<vmem>>, %arg7: memref<8x32xf32, #tpu.memory_space<vmem>>, %arg8: memref<8x32xf32, #tpu.memory_space<vmem>>, %arg9: memref<8x32xf32, #tpu.memory_space<vmem>>, %arg10: memref<8x32xf32, #tpu.memory_space<vmem>>) attributes {dimension_semantics = [#tpu.dimension_semantics<arbitrary>], iteration_bounds = array<i64: 1>, scalar_prefetch = 0 : i64, scratch_operands = 4 : i64, tpu.core_type = #tpu.core_type<tc>, window_params = [{transform_indices = @transform_0, window_bounds = array<i64: 8, 8, 128>}, {transform_indices = @transform_1, window_bounds = array<i64: 8, 8, 128>}, {pipeline_mode = #tpu.pipeline_mode<synchronous>, transform_indices = @transform_2, window_bounds = array<i64: 32, 128>}, {pipeline_mode = #tpu.pipeline_mode<synchronous>, transform_indices = @transform_3, window_bounds = array<i64: 32, 128>}, {transform_indices = @transform_4, window_bounds = array<i64: 8, 8, 32>}, {transform_indices = @transform_5, window_bounds = array<i64: 8, 8, 32>}]} {
    %c0_i32 = arith.constant 0 : i32
    %0 = arith.cmpi eq, %arg0, %c0_i32 : i32
    %1 = arith.extui %0 : i1 to i32
    %c0_i32_0 = arith.constant 0 : i32
    %2 = arith.cmpi ne, %1, %c0_i32_0 : i32
    scf.if %2 {
      %cst_280 = arith.constant 0.000000e+00 : f32
      %675 = vector.broadcast %cst_280 : f32 to vector<8x32xf32>
      %c0_281 = arith.constant 0 : index
      %c0_282 = arith.constant 0 : index
      %676 = vector.load %arg7[%c0_281, %c0_282] : memref<8x32xf32, #tpu.memory_space<vmem>>, vector<8x32xf32>
      tpu.vector_store %arg7[%c0_281, %c0_282], %675 {strides = array<i32>} : memref<8x32xf32, #tpu.memory_space<vmem>>, vector<8x32xf32>,
      %cst_283 = arith.constant 0.000000e+00 : f32
      %677 = vector.broadcast %cst_283 : f32 to vector<8x32xf32>
      %c0_284 = arith.constant 0 : index
      %c0_285 = arith.constant 0 : index
      %678 = vector.load %arg8[%c0_284, %c0_285] : memref<8x32xf32, #tpu.memory_space<vmem>>, vector<8x32xf32>
      tpu.vector_store %arg8[%c0_284, %c0_285], %677 {strides = array<i32>} : memref<8x32xf32, #tpu.memory_space<vmem>>, vector<8x32xf32>,
      %cst_286 = arith.constant 0.000000e+00 : f32
      %679 = vector.broadcast %cst_286 : f32 to vector<8x32xf32>
      %c0_287 = arith.constant 0 : index
      %c0_288 = arith.constant 0 : index
      %680 = vector.load %arg9[%c0_287, %c0_288] : memref<8x32xf32, #tpu.memory_space<vmem>>, vector<8x32xf32>
      tpu.vector_store %arg9[%c0_287, %c0_288], %679 {strides = array<i32>} : memref<8x32xf32, #tpu.memory_space<vmem>>, vector<8x32xf32>,
      %cst_289 = arith.constant 0.000000e+00 : f32
      %681 = vector.broadcast %cst_289 : f32 to vector<8x32xf32>
      %c0_290 = arith.constant 0 : index
      %c0_291 = arith.constant 0 : index
      %682 = vector.load %arg10[%c0_290, %c0_291] : memref<8x32xf32, #tpu.memory_space<vmem>>, vector<8x32xf32>
      tpu.vector_store %arg10[%c0_290, %c0_291], %681 {strides = array<i32>} : memref<8x32xf32, #tpu.memory_space<vmem>>, vector<8x32xf32>,
    } else {
    }
    %c0 = arith.constant 0 : index
    %c0_1 = arith.constant 0 : index
    %3 = vector.load %arg7[%c0, %c0_1] : memref<8x32xf32, #tpu.memory_space<vmem>>, vector<8x32xf32>
    %c0_2 = arith.constant 0 : index
    %c0_3 = arith.constant 0 : index
    %4 = vector.load %arg8[%c0_2, %c0_3] : memref<8x32xf32, #tpu.memory_space<vmem>>, vector<8x32xf32>
    %c0_4 = arith.constant 0 : index
    %c0_5 = arith.constant 0 : index
    %5 = vector.load %arg9[%c0_4, %c0_5] : memref<8x32xf32, #tpu.memory_space<vmem>>, vector<8x32xf32>
    %c0_6 = arith.constant 0 : index
    %c0_7 = arith.constant 0 : index
    %6 = vector.load %arg10[%c0_6, %c0_7] : memref<8x32xf32, #tpu.memory_space<vmem>>, vector<8x32xf32>
    %c0_i32_8 = arith.constant 0 : i32
    %7 = arith.index_cast %c0_i32_8 : i32 to index
    %c0_9 = arith.constant 0 : index
    %c0_10 = arith.constant 0 : index
    %8 = vector.load %arg1[%7, %c0_9, %c0_10] : memref<8x8x128xf32, #tpu.memory_space<vmem>>, vector<1x8x128xf32>
    %9 = vector.shape_cast %8 : vector<1x8x128xf32> to vector<8x128xf32>
    %c0_11 = arith.constant 0 : index
    %c0_12 = arith.constant 0 : index
    %10 = vector.load %arg3[%c0_11, %c0_12] : memref<32x128xf32, #tpu.memory_space<vmem>>, vector<32x128xf32>
    %cst = arith.constant dense<0.000000e+00> : vector<8x128xf32>
    %11 = tpu.matmul %3, %10, %cst {dimension_numbers = #tpu.dot_dimension_numbers<[1], [0], [0], [1], [0, 0, 1, 1], [], []>} : vector<8x32xf32>, vector<32x128xf32>, vector<8x128xf32> -> vector<8x128xf32>
    %12 = arith.addf %9, %11 : vector<8x128xf32>
    %13 = vector.extract_strided_slice %12 {offsets = [0, 0], sizes = [8, 32], strides = [1, 1]} : vector<8x128xf32> to vector<8x32xf32>
    %cst_13 = arith.constant 5.000000e-01 : f32
    %14 = vector.broadcast %cst_13 : f32 to vector<8x32xf32>
    %15 = arith.mulf %14, %13 : vector<8x32xf32>
    %16 = math.tanh %15 : vector<8x32xf32>
    %cst_14 = arith.constant 5.000000e-01 : f32
    %17 = vector.broadcast %cst_14 : f32 to vector<8x32xf32>
    %18 = arith.mulf %17, %16 : vector<8x32xf32>
    %cst_15 = arith.constant 5.000000e-01 : f32
    %19 = vector.broadcast %cst_15 : f32 to vector<8x32xf32>
    %20 = arith.addf %18, %19 : vector<8x32xf32>
    %21 = vector.extract_strided_slice %12 {offsets = [0, 32], sizes = [8, 32], strides = [1, 1]} : vector<8x128xf32> to vector<8x32xf32>
    %cst_16 = arith.constant 5.000000e-01 : f32
    %22 = vector.broadcast %cst_16 : f32 to vector<8x32xf32>
    %23 = arith.mulf %22, %21 : vector<8x32xf32>
    %24 = math.tanh %23 : vector<8x32xf32>
    %cst_17 = arith.constant 5.000000e-01 : f32
    %25 = vector.broadcast %cst_17 : f32 to vector<8x32xf32>
    %26 = arith.mulf %25, %24 : vector<8x32xf32>
    %cst_18 = arith.constant 5.000000e-01 : f32
    %27 = vector.broadcast %cst_18 : f32 to vector<8x32xf32>
    %28 = arith.addf %26, %27 : vector<8x32xf32>
    %29 = vector.extract_strided_slice %12 {offsets = [0, 64], sizes = [8, 32], strides = [1, 1]} : vector<8x128xf32> to vector<8x32xf32>
    %30 = math.tanh %29 : vector<8x32xf32>
    %31 = vector.extract_strided_slice %12 {offsets = [0, 96], sizes = [8, 32], strides = [1, 1]} : vector<8x128xf32> to vector<8x32xf32>
    %cst_19 = arith.constant 5.000000e-01 : f32
    %32 = vector.broadcast %cst_19 : f32 to vector<8x32xf32>
    %33 = arith.mulf %32, %31 : vector<8x32xf32>
    %34 = math.tanh %33 : vector<8x32xf32>
    %cst_20 = arith.constant 5.000000e-01 : f32
    %35 = vector.broadcast %cst_20 : f32 to vector<8x32xf32>
    %36 = arith.mulf %35, %34 : vector<8x32xf32>
    %cst_21 = arith.constant 5.000000e-01 : f32
    %37 = vector.broadcast %cst_21 : f32 to vector<8x32xf32>
    %38 = arith.addf %36, %37 : vector<8x32xf32>
    %39 = arith.mulf %28, %4 : vector<8x32xf32>
    %40 = arith.mulf %20, %30 : vector<8x32xf32>
    %41 = arith.addf %39, %40 : vector<8x32xf32>
    %42 = math.tanh %41 : vector<8x32xf32>
    %43 = arith.mulf %38, %42 : vector<8x32xf32>
    %44 = arith.index_cast %c0_i32_8 : i32 to index
    %c0_22 = arith.constant 0 : index
    %c0_23 = arith.constant 0 : index
    %45 = vector.load %arg5[%44, %c0_22, %c0_23] : memref<8x8x32xf32, #tpu.memory_space<vmem>>, vector<1x8x32xf32>
    %46 = vector.shape_cast %45 : vector<1x8x32xf32> to vector<8x32xf32>
    %47 = vector.shape_cast %43 : vector<8x32xf32> to vector<1x8x32xf32>
    tpu.vector_store %arg5[%44, %c0_22, %c0_23], %47 {strides = array<i32>} : memref<8x8x32xf32, #tpu.memory_space<vmem>>, vector<1x8x32xf32>,
    %c7_i32 = arith.constant 7 : i32
    %48 = arith.subi %c7_i32, %c0_i32_8 : i32
    %49 = arith.index_cast %48 : i32 to index
    %c0_24 = arith.constant 0 : index
    %c0_25 = arith.constant 0 : index
    %50 = vector.load %arg2[%49, %c0_24, %c0_25] : memref<8x8x128xf32, #tpu.memory_space<vmem>>, vector<1x8x128xf32>
    %51 = vector.shape_cast %50 : vector<1x8x128xf32> to vector<8x128xf32>
    %c0_26 = arith.constant 0 : index
    %c0_27 = arith.constant 0 : index
    %52 = vector.load %arg4[%c0_26, %c0_27] : memref<32x128xf32, #tpu.memory_space<vmem>>, vector<32x128xf32>
    %cst_28 = arith.constant dense<0.000000e+00> : vector<8x128xf32>
    %53 = tpu.matmul %5, %52, %cst_28 {dimension_numbers = #tpu.dot_dimension_numbers<[1], [0], [0], [1], [0, 0, 1, 1], [], []>} : vector<8x32xf32>, vector<32x128xf32>, vector<8x128xf32> -> vector<8x128xf32>
    %54 = arith.addf %51, %53 : vector<8x128xf32>
    %55 = vector.extract_strided_slice %54 {offsets = [0, 0], sizes = [8, 32], strides = [1, 1]} : vector<8x128xf32> to vector<8x32xf32>
    %cst_29 = arith.constant 5.000000e-01 : f32
    %56 = vector.broadcast %cst_29 : f32 to vector<8x32xf32>
    %57 = arith.mulf %56, %55 : vector<8x32xf32>
    %58 = math.tanh %57 : vector<8x32xf32>
    %cst_30 = arith.constant 5.000000e-01 : f32
    %59 = vector.broadcast %cst_30 : f32 to vector<8x32xf32>
    %60 = arith.mulf %59, %58 : vector<8x32xf32>
    %cst_31 = arith.constant 5.000000e-01 : f32
    %61 = vector.broadcast %cst_31 : f32 to vector<8x32xf32>
    %62 = arith.addf %60, %61 : vector<8x32xf32>
    %63 = vector.extract_strided_slice %54 {offsets = [0, 32], sizes = [8, 32], strides = [1, 1]} : vector<8x128xf32> to vector<8x32xf32>
    %cst_32 = arith.constant 5.000000e-01 : f32
    %64 = vector.broadcast %cst_32 : f32 to vector<8x32xf32>
    %65 = arith.mulf %64, %63 : vector<8x32xf32>
    %66 = math.tanh %65 : vector<8x32xf32>
    %cst_33 = arith.constant 5.000000e-01 : f32
    %67 = vector.broadcast %cst_33 : f32 to vector<8x32xf32>
    %68 = arith.mulf %67, %66 : vector<8x32xf32>
    %cst_34 = arith.constant 5.000000e-01 : f32
    %69 = vector.broadcast %cst_34 : f32 to vector<8x32xf32>
    %70 = arith.addf %68, %69 : vector<8x32xf32>
    %71 = vector.extract_strided_slice %54 {offsets = [0, 64], sizes = [8, 32], strides = [1, 1]} : vector<8x128xf32> to vector<8x32xf32>
    %72 = math.tanh %71 : vector<8x32xf32>
    %73 = vector.extract_strided_slice %54 {offsets = [0, 96], sizes = [8, 32], strides = [1, 1]} : vector<8x128xf32> to vector<8x32xf32>
    %cst_35 = arith.constant 5.000000e-01 : f32
    %74 = vector.broadcast %cst_35 : f32 to vector<8x32xf32>
    %75 = arith.mulf %74, %73 : vector<8x32xf32>
    %76 = math.tanh %75 : vector<8x32xf32>
    %cst_36 = arith.constant 5.000000e-01 : f32
    %77 = vector.broadcast %cst_36 : f32 to vector<8x32xf32>
    %78 = arith.mulf %77, %76 : vector<8x32xf32>
    %cst_37 = arith.constant 5.000000e-01 : f32
    %79 = vector.broadcast %cst_37 : f32 to vector<8x32xf32>
    %80 = arith.addf %78, %79 : vector<8x32xf32>
    %81 = arith.mulf %70, %6 : vector<8x32xf32>
    %82 = arith.mulf %62, %72 : vector<8x32xf32>
    %83 = arith.addf %81, %82 : vector<8x32xf32>
    %84 = math.tanh %83 : vector<8x32xf32>
    %85 = arith.mulf %80, %84 : vector<8x32xf32>
    %86 = arith.index_cast %48 : i32 to index
    %c0_38 = arith.constant 0 : index
    %c0_39 = arith.constant 0 : index
    %87 = vector.load %arg6[%86, %c0_38, %c0_39] : memref<8x8x32xf32, #tpu.memory_space<vmem>>, vector<1x8x32xf32>
    %88 = vector.shape_cast %87 : vector<1x8x32xf32> to vector<8x32xf32>
    %89 = vector.shape_cast %85 : vector<8x32xf32> to vector<1x8x32xf32>
    tpu.vector_store %arg6[%86, %c0_38, %c0_39], %89 {strides = array<i32>} : memref<8x8x32xf32, #tpu.memory_space<vmem>>, vector<1x8x32xf32>,
    %c1_i32 = arith.constant 1 : i32
    %90 = arith.index_cast %c1_i32 : i32 to index
    %c0_40 = arith.constant 0 : index
    %c0_41 = arith.constant 0 : index
    %91 = vector.load %arg1[%90, %c0_40, %c0_41] : memref<8x8x128xf32, #tpu.memory_space<vmem>>, vector<1x8x128xf32>
    %92 = vector.shape_cast %91 : vector<1x8x128xf32> to vector<8x128xf32>
    %c0_42 = arith.constant 0 : index
    %c0_43 = arith.constant 0 : index
    %93 = vector.load %arg3[%c0_42, %c0_43] : memref<32x128xf32, #tpu.memory_space<vmem>>, vector<32x128xf32>
    %cst_44 = arith.constant dense<0.000000e+00> : vector<8x128xf32>
    %94 = tpu.matmul %43, %93, %cst_44 {dimension_numbers = #tpu.dot_dimension_numbers<[1], [0], [0], [1], [0, 0, 1, 1], [], []>} : vector<8x32xf32>, vector<32x128xf32>, vector<8x128xf32> -> vector<8x128xf32>
    %95 = arith.addf %92, %94 : vector<8x128xf32>
    %96 = vector.extract_strided_slice %95 {offsets = [0, 0], sizes = [8, 32], strides = [1, 1]} : vector<8x128xf32> to vector<8x32xf32>
    %cst_45 = arith.constant 5.000000e-01 : f32
    %97 = vector.broadcast %cst_45 : f32 to vector<8x32xf32>
    %98 = arith.mulf %97, %96 : vector<8x32xf32>
    %99 = math.tanh %98 : vector<8x32xf32>
    %cst_46 = arith.constant 5.000000e-01 : f32
    %100 = vector.broadcast %cst_46 : f32 to vector<8x32xf32>
    %101 = arith.mulf %100, %99 : vector<8x32xf32>
    %cst_47 = arith.constant 5.000000e-01 : f32
    %102 = vector.broadcast %cst_47 : f32 to vector<8x32xf32>
    %103 = arith.addf %101, %102 : vector<8x32xf32>
    %104 = vector.extract_strided_slice %95 {offsets = [0, 32], sizes = [8, 32], strides = [1, 1]} : vector<8x128xf32> to vector<8x32xf32>
    %cst_48 = arith.constant 5.000000e-01 : f32
    %105 = vector.broadcast %cst_48 : f32 to vector<8x32xf32>
    %106 = arith.mulf %105, %104 : vector<8x32xf32>
    %107 = math.tanh %106 : vector<8x32xf32>
    %cst_49 = arith.constant 5.000000e-01 : f32
    %108 = vector.broadcast %cst_49 : f32 to vector<8x32xf32>
    %109 = arith.mulf %108, %107 : vector<8x32xf32>
    %cst_50 = arith.constant 5.000000e-01 : f32
    %110 = vector.broadcast %cst_50 : f32 to vector<8x32xf32>
    %111 = arith.addf %109, %110 : vector<8x32xf32>
    %112 = vector.extract_strided_slice %95 {offsets = [0, 64], sizes = [8, 32], strides = [1, 1]} : vector<8x128xf32> to vector<8x32xf32>
    %113 = math.tanh %112 : vector<8x32xf32>
    %114 = vector.extract_strided_slice %95 {offsets = [0, 96], sizes = [8, 32], strides = [1, 1]} : vector<8x128xf32> to vector<8x32xf32>
    %cst_51 = arith.constant 5.000000e-01 : f32
    %115 = vector.broadcast %cst_51 : f32 to vector<8x32xf32>
    %116 = arith.mulf %115, %114 : vector<8x32xf32>
    %117 = math.tanh %116 : vector<8x32xf32>
    %cst_52 = arith.constant 5.000000e-01 : f32
    %118 = vector.broadcast %cst_52 : f32 to vector<8x32xf32>
    %119 = arith.mulf %118, %117 : vector<8x32xf32>
    %cst_53 = arith.constant 5.000000e-01 : f32
    %120 = vector.broadcast %cst_53 : f32 to vector<8x32xf32>
    %121 = arith.addf %119, %120 : vector<8x32xf32>
    %122 = arith.mulf %111, %41 : vector<8x32xf32>
    %123 = arith.mulf %103, %113 : vector<8x32xf32>
    %124 = arith.addf %122, %123 : vector<8x32xf32>
    %125 = math.tanh %124 : vector<8x32xf32>
    %126 = arith.mulf %121, %125 : vector<8x32xf32>
    %127 = arith.index_cast %c1_i32 : i32 to index
    %c0_54 = arith.constant 0 : index
    %c0_55 = arith.constant 0 : index
    %128 = vector.load %arg5[%127, %c0_54, %c0_55] : memref<8x8x32xf32, #tpu.memory_space<vmem>>, vector<1x8x32xf32>
    %129 = vector.shape_cast %128 : vector<1x8x32xf32> to vector<8x32xf32>
    %130 = vector.shape_cast %126 : vector<8x32xf32> to vector<1x8x32xf32>
    tpu.vector_store %arg5[%127, %c0_54, %c0_55], %130 {strides = array<i32>} : memref<8x8x32xf32, #tpu.memory_space<vmem>>, vector<1x8x32xf32>,
    %c7_i32_56 = arith.constant 7 : i32
    %131 = arith.subi %c7_i32_56, %c1_i32 : i32
    %132 = arith.index_cast %131 : i32 to index
    %c0_57 = arith.constant 0 : index
    %c0_58 = arith.constant 0 : index
    %133 = vector.load %arg2[%132, %c0_57, %c0_58] : memref<8x8x128xf32, #tpu.memory_space<vmem>>, vector<1x8x128xf32>
    %134 = vector.shape_cast %133 : vector<1x8x128xf32> to vector<8x128xf32>
    %c0_59 = arith.constant 0 : index
    %c0_60 = arith.constant 0 : index
    %135 = vector.load %arg4[%c0_59, %c0_60] : memref<32x128xf32, #tpu.memory_space<vmem>>, vector<32x128xf32>
    %cst_61 = arith.constant dense<0.000000e+00> : vector<8x128xf32>
    %136 = tpu.matmul %85, %135, %cst_61 {dimension_numbers = #tpu.dot_dimension_numbers<[1], [0], [0], [1], [0, 0, 1, 1], [], []>} : vector<8x32xf32>, vector<32x128xf32>, vector<8x128xf32> -> vector<8x128xf32>
    %137 = arith.addf %134, %136 : vector<8x128xf32>
    %138 = vector.extract_strided_slice %137 {offsets = [0, 0], sizes = [8, 32], strides = [1, 1]} : vector<8x128xf32> to vector<8x32xf32>
    %cst_62 = arith.constant 5.000000e-01 : f32
    %139 = vector.broadcast %cst_62 : f32 to vector<8x32xf32>
    %140 = arith.mulf %139, %138 : vector<8x32xf32>
    %141 = math.tanh %140 : vector<8x32xf32>
    %cst_63 = arith.constant 5.000000e-01 : f32
    %142 = vector.broadcast %cst_63 : f32 to vector<8x32xf32>
    %143 = arith.mulf %142, %141 : vector<8x32xf32>
    %cst_64 = arith.constant 5.000000e-01 : f32
    %144 = vector.broadcast %cst_64 : f32 to vector<8x32xf32>
    %145 = arith.addf %143, %144 : vector<8x32xf32>
    %146 = vector.extract_strided_slice %137 {offsets = [0, 32], sizes = [8, 32], strides = [1, 1]} : vector<8x128xf32> to vector<8x32xf32>
    %cst_65 = arith.constant 5.000000e-01 : f32
    %147 = vector.broadcast %cst_65 : f32 to vector<8x32xf32>
    %148 = arith.mulf %147, %146 : vector<8x32xf32>
    %149 = math.tanh %148 : vector<8x32xf32>
    %cst_66 = arith.constant 5.000000e-01 : f32
    %150 = vector.broadcast %cst_66 : f32 to vector<8x32xf32>
    %151 = arith.mulf %150, %149 : vector<8x32xf32>
    %cst_67 = arith.constant 5.000000e-01 : f32
    %152 = vector.broadcast %cst_67 : f32 to vector<8x32xf32>
    %153 = arith.addf %151, %152 : vector<8x32xf32>
    %154 = vector.extract_strided_slice %137 {offsets = [0, 64], sizes = [8, 32], strides = [1, 1]} : vector<8x128xf32> to vector<8x32xf32>
    %155 = math.tanh %154 : vector<8x32xf32>
    %156 = vector.extract_strided_slice %137 {offsets = [0, 96], sizes = [8, 32], strides = [1, 1]} : vector<8x128xf32> to vector<8x32xf32>
    %cst_68 = arith.constant 5.000000e-01 : f32
    %157 = vector.broadcast %cst_68 : f32 to vector<8x32xf32>
    %158 = arith.mulf %157, %156 : vector<8x32xf32>
    %159 = math.tanh %158 : vector<8x32xf32>
    %cst_69 = arith.constant 5.000000e-01 : f32
    %160 = vector.broadcast %cst_69 : f32 to vector<8x32xf32>
    %161 = arith.mulf %160, %159 : vector<8x32xf32>
    %cst_70 = arith.constant 5.000000e-01 : f32
    %162 = vector.broadcast %cst_70 : f32 to vector<8x32xf32>
    %163 = arith.addf %161, %162 : vector<8x32xf32>
    %164 = arith.mulf %153, %83 : vector<8x32xf32>
    %165 = arith.mulf %145, %155 : vector<8x32xf32>
    %166 = arith.addf %164, %165 : vector<8x32xf32>
    %167 = math.tanh %166 : vector<8x32xf32>
    %168 = arith.mulf %163, %167 : vector<8x32xf32>
    %169 = arith.index_cast %131 : i32 to index
    %c0_71 = arith.constant 0 : index
    %c0_72 = arith.constant 0 : index
    %170 = vector.load %arg6[%169, %c0_71, %c0_72] : memref<8x8x32xf32, #tpu.memory_space<vmem>>, vector<1x8x32xf32>
    %171 = vector.shape_cast %170 : vector<1x8x32xf32> to vector<8x32xf32>
    %172 = vector.shape_cast %168 : vector<8x32xf32> to vector<1x8x32xf32>
    tpu.vector_store %arg6[%169, %c0_71, %c0_72], %172 {strides = array<i32>} : memref<8x8x32xf32, #tpu.memory_space<vmem>>, vector<1x8x32xf32>,
    %c2_i32 = arith.constant 2 : i32
    %173 = arith.index_cast %c2_i32 : i32 to index
    %c0_73 = arith.constant 0 : index
    %c0_74 = arith.constant 0 : index
    %174 = vector.load %arg1[%173, %c0_73, %c0_74] : memref<8x8x128xf32, #tpu.memory_space<vmem>>, vector<1x8x128xf32>
    %175 = vector.shape_cast %174 : vector<1x8x128xf32> to vector<8x128xf32>
    %c0_75 = arith.constant 0 : index
    %c0_76 = arith.constant 0 : index
    %176 = vector.load %arg3[%c0_75, %c0_76] : memref<32x128xf32, #tpu.memory_space<vmem>>, vector<32x128xf32>
    %cst_77 = arith.constant dense<0.000000e+00> : vector<8x128xf32>
    %177 = tpu.matmul %126, %176, %cst_77 {dimension_numbers = #tpu.dot_dimension_numbers<[1], [0], [0], [1], [0, 0, 1, 1], [], []>} : vector<8x32xf32>, vector<32x128xf32>, vector<8x128xf32> -> vector<8x128xf32>
    %178 = arith.addf %175, %177 : vector<8x128xf32>
    %179 = vector.extract_strided_slice %178 {offsets = [0, 0], sizes = [8, 32], strides = [1, 1]} : vector<8x128xf32> to vector<8x32xf32>
    %cst_78 = arith.constant 5.000000e-01 : f32
    %180 = vector.broadcast %cst_78 : f32 to vector<8x32xf32>
    %181 = arith.mulf %180, %179 : vector<8x32xf32>
    %182 = math.tanh %181 : vector<8x32xf32>
    %cst_79 = arith.constant 5.000000e-01 : f32
    %183 = vector.broadcast %cst_79 : f32 to vector<8x32xf32>
    %184 = arith.mulf %183, %182 : vector<8x32xf32>
    %cst_80 = arith.constant 5.000000e-01 : f32
    %185 = vector.broadcast %cst_80 : f32 to vector<8x32xf32>
    %186 = arith.addf %184, %185 : vector<8x32xf32>
    %187 = vector.extract_strided_slice %178 {offsets = [0, 32], sizes = [8, 32], strides = [1, 1]} : vector<8x128xf32> to vector<8x32xf32>
    %cst_81 = arith.constant 5.000000e-01 : f32
    %188 = vector.broadcast %cst_81 : f32 to vector<8x32xf32>
    %189 = arith.mulf %188, %187 : vector<8x32xf32>
    %190 = math.tanh %189 : vector<8x32xf32>
    %cst_82 = arith.constant 5.000000e-01 : f32
    %191 = vector.broadcast %cst_82 : f32 to vector<8x32xf32>
    %192 = arith.mulf %191, %190 : vector<8x32xf32>
    %cst_83 = arith.constant 5.000000e-01 : f32
    %193 = vector.broadcast %cst_83 : f32 to vector<8x32xf32>
    %194 = arith.addf %192, %193 : vector<8x32xf32>
    %195 = vector.extract_strided_slice %178 {offsets = [0, 64], sizes = [8, 32], strides = [1, 1]} : vector<8x128xf32> to vector<8x32xf32>
    %196 = math.tanh %195 : vector<8x32xf32>
    %197 = vector.extract_strided_slice %178 {offsets = [0, 96], sizes = [8, 32], strides = [1, 1]} : vector<8x128xf32> to vector<8x32xf32>
    %cst_84 = arith.constant 5.000000e-01 : f32
    %198 = vector.broadcast %cst_84 : f32 to vector<8x32xf32>
    %199 = arith.mulf %198, %197 : vector<8x32xf32>
    %200 = math.tanh %199 : vector<8x32xf32>
    %cst_85 = arith.constant 5.000000e-01 : f32
    %201 = vector.broadcast %cst_85 : f32 to vector<8x32xf32>
    %202 = arith.mulf %201, %200 : vector<8x32xf32>
    %cst_86 = arith.constant 5.000000e-01 : f32
    %203 = vector.broadcast %cst_86 : f32 to vector<8x32xf32>
    %204 = arith.addf %202, %203 : vector<8x32xf32>
    %205 = arith.mulf %194, %124 : vector<8x32xf32>
    %206 = arith.mulf %186, %196 : vector<8x32xf32>
    %207 = arith.addf %205, %206 : vector<8x32xf32>
    %208 = math.tanh %207 : vector<8x32xf32>
    %209 = arith.mulf %204, %208 : vector<8x32xf32>
    %210 = arith.index_cast %c2_i32 : i32 to index
    %c0_87 = arith.constant 0 : index
    %c0_88 = arith.constant 0 : index
    %211 = vector.load %arg5[%210, %c0_87, %c0_88] : memref<8x8x32xf32, #tpu.memory_space<vmem>>, vector<1x8x32xf32>
    %212 = vector.shape_cast %211 : vector<1x8x32xf32> to vector<8x32xf32>
    %213 = vector.shape_cast %209 : vector<8x32xf32> to vector<1x8x32xf32>
    tpu.vector_store %arg5[%210, %c0_87, %c0_88], %213 {strides = array<i32>} : memref<8x8x32xf32, #tpu.memory_space<vmem>>, vector<1x8x32xf32>,
    %c7_i32_89 = arith.constant 7 : i32
    %214 = arith.subi %c7_i32_89, %c2_i32 : i32
    %215 = arith.index_cast %214 : i32 to index
    %c0_90 = arith.constant 0 : index
    %c0_91 = arith.constant 0 : index
    %216 = vector.load %arg2[%215, %c0_90, %c0_91] : memref<8x8x128xf32, #tpu.memory_space<vmem>>, vector<1x8x128xf32>
    %217 = vector.shape_cast %216 : vector<1x8x128xf32> to vector<8x128xf32>
    %c0_92 = arith.constant 0 : index
    %c0_93 = arith.constant 0 : index
    %218 = vector.load %arg4[%c0_92, %c0_93] : memref<32x128xf32, #tpu.memory_space<vmem>>, vector<32x128xf32>
    %cst_94 = arith.constant dense<0.000000e+00> : vector<8x128xf32>
    %219 = tpu.matmul %168, %218, %cst_94 {dimension_numbers = #tpu.dot_dimension_numbers<[1], [0], [0], [1], [0, 0, 1, 1], [], []>} : vector<8x32xf32>, vector<32x128xf32>, vector<8x128xf32> -> vector<8x128xf32>
    %220 = arith.addf %217, %219 : vector<8x128xf32>
    %221 = vector.extract_strided_slice %220 {offsets = [0, 0], sizes = [8, 32], strides = [1, 1]} : vector<8x128xf32> to vector<8x32xf32>
    %cst_95 = arith.constant 5.000000e-01 : f32
    %222 = vector.broadcast %cst_95 : f32 to vector<8x32xf32>
    %223 = arith.mulf %222, %221 : vector<8x32xf32>
    %224 = math.tanh %223 : vector<8x32xf32>
    %cst_96 = arith.constant 5.000000e-01 : f32
    %225 = vector.broadcast %cst_96 : f32 to vector<8x32xf32>
    %226 = arith.mulf %225, %224 : vector<8x32xf32>
    %cst_97 = arith.constant 5.000000e-01 : f32
    %227 = vector.broadcast %cst_97 : f32 to vector<8x32xf32>
    %228 = arith.addf %226, %227 : vector<8x32xf32>
    %229 = vector.extract_strided_slice %220 {offsets = [0, 32], sizes = [8, 32], strides = [1, 1]} : vector<8x128xf32> to vector<8x32xf32>
    %cst_98 = arith.constant 5.000000e-01 : f32
    %230 = vector.broadcast %cst_98 : f32 to vector<8x32xf32>
    %231 = arith.mulf %230, %229 : vector<8x32xf32>
    %232 = math.tanh %231 : vector<8x32xf32>
    %cst_99 = arith.constant 5.000000e-01 : f32
    %233 = vector.broadcast %cst_99 : f32 to vector<8x32xf32>
    %234 = arith.mulf %233, %232 : vector<8x32xf32>
    %cst_100 = arith.constant 5.000000e-01 : f32
    %235 = vector.broadcast %cst_100 : f32 to vector<8x32xf32>
    %236 = arith.addf %234, %235 : vector<8x32xf32>
    %237 = vector.extract_strided_slice %220 {offsets = [0, 64], sizes = [8, 32], strides = [1, 1]} : vector<8x128xf32> to vector<8x32xf32>
    %238 = math.tanh %237 : vector<8x32xf32>
    %239 = vector.extract_strided_slice %220 {offsets = [0, 96], sizes = [8, 32], strides = [1, 1]} : vector<8x128xf32> to vector<8x32xf32>
    %cst_101 = arith.constant 5.000000e-01 : f32
    %240 = vector.broadcast %cst_101 : f32 to vector<8x32xf32>
    %241 = arith.mulf %240, %239 : vector<8x32xf32>
    %242 = math.tanh %241 : vector<8x32xf32>
    %cst_102 = arith.constant 5.000000e-01 : f32
    %243 = vector.broadcast %cst_102 : f32 to vector<8x32xf32>
    %244 = arith.mulf %243, %242 : vector<8x32xf32>
    %cst_103 = arith.constant 5.000000e-01 : f32
    %245 = vector.broadcast %cst_103 : f32 to vector<8x32xf32>
    %246 = arith.addf %244, %245 : vector<8x32xf32>
    %247 = arith.mulf %236, %166 : vector<8x32xf32>
    %248 = arith.mulf %228, %238 : vector<8x32xf32>
    %249 = arith.addf %247, %248 : vector<8x32xf32>
    %250 = math.tanh %249 : vector<8x32xf32>
    %251 = arith.mulf %246, %250 : vector<8x32xf32>
    %252 = arith.index_cast %214 : i32 to index
    %c0_104 = arith.constant 0 : index
    %c0_105 = arith.constant 0 : index
    %253 = vector.load %arg6[%252, %c0_104, %c0_105] : memref<8x8x32xf32, #tpu.memory_space<vmem>>, vector<1x8x32xf32>
    %254 = vector.shape_cast %253 : vector<1x8x32xf32> to vector<8x32xf32>
    %255 = vector.shape_cast %251 : vector<8x32xf32> to vector<1x8x32xf32>
    tpu.vector_store %arg6[%252, %c0_104, %c0_105], %255 {strides = array<i32>} : memref<8x8x32xf32, #tpu.memory_space<vmem>>, vector<1x8x32xf32>,
    %c3_i32 = arith.constant 3 : i32
    %256 = arith.index_cast %c3_i32 : i32 to index
    %c0_106 = arith.constant 0 : index
    %c0_107 = arith.constant 0 : index
    %257 = vector.load %arg1[%256, %c0_106, %c0_107] : memref<8x8x128xf32, #tpu.memory_space<vmem>>, vector<1x8x128xf32>
    %258 = vector.shape_cast %257 : vector<1x8x128xf32> to vector<8x128xf32>
    %c0_108 = arith.constant 0 : index
    %c0_109 = arith.constant 0 : index
    %259 = vector.load %arg3[%c0_108, %c0_109] : memref<32x128xf32, #tpu.memory_space<vmem>>, vector<32x128xf32>
    %cst_110 = arith.constant dense<0.000000e+00> : vector<8x128xf32>
    %260 = tpu.matmul %209, %259, %cst_110 {dimension_numbers = #tpu.dot_dimension_numbers<[1], [0], [0], [1], [0, 0, 1, 1], [], []>} : vector<8x32xf32>, vector<32x128xf32>, vector<8x128xf32> -> vector<8x128xf32>
    %261 = arith.addf %258, %260 : vector<8x128xf32>
    %262 = vector.extract_strided_slice %261 {offsets = [0, 0], sizes = [8, 32], strides = [1, 1]} : vector<8x128xf32> to vector<8x32xf32>
    %cst_111 = arith.constant 5.000000e-01 : f32
    %263 = vector.broadcast %cst_111 : f32 to vector<8x32xf32>
    %264 = arith.mulf %263, %262 : vector<8x32xf32>
    %265 = math.tanh %264 : vector<8x32xf32>
    %cst_112 = arith.constant 5.000000e-01 : f32
    %266 = vector.broadcast %cst_112 : f32 to vector<8x32xf32>
    %267 = arith.mulf %266, %265 : vector<8x32xf32>
    %cst_113 = arith.constant 5.000000e-01 : f32
    %268 = vector.broadcast %cst_113 : f32 to vector<8x32xf32>
    %269 = arith.addf %267, %268 : vector<8x32xf32>
    %270 = vector.extract_strided_slice %261 {offsets = [0, 32], sizes = [8, 32], strides = [1, 1]} : vector<8x128xf32> to vector<8x32xf32>
    %cst_114 = arith.constant 5.000000e-01 : f32
    %271 = vector.broadcast %cst_114 : f32 to vector<8x32xf32>
    %272 = arith.mulf %271, %270 : vector<8x32xf32>
    %273 = math.tanh %272 : vector<8x32xf32>
    %cst_115 = arith.constant 5.000000e-01 : f32
    %274 = vector.broadcast %cst_115 : f32 to vector<8x32xf32>
    %275 = arith.mulf %274, %273 : vector<8x32xf32>
    %cst_116 = arith.constant 5.000000e-01 : f32
    %276 = vector.broadcast %cst_116 : f32 to vector<8x32xf32>
    %277 = arith.addf %275, %276 : vector<8x32xf32>
    %278 = vector.extract_strided_slice %261 {offsets = [0, 64], sizes = [8, 32], strides = [1, 1]} : vector<8x128xf32> to vector<8x32xf32>
    %279 = math.tanh %278 : vector<8x32xf32>
    %280 = vector.extract_strided_slice %261 {offsets = [0, 96], sizes = [8, 32], strides = [1, 1]} : vector<8x128xf32> to vector<8x32xf32>
    %cst_117 = arith.constant 5.000000e-01 : f32
    %281 = vector.broadcast %cst_117 : f32 to vector<8x32xf32>
    %282 = arith.mulf %281, %280 : vector<8x32xf32>
    %283 = math.tanh %282 : vector<8x32xf32>
    %cst_118 = arith.constant 5.000000e-01 : f32
    %284 = vector.broadcast %cst_118 : f32 to vector<8x32xf32>
    %285 = arith.mulf %284, %283 : vector<8x32xf32>
    %cst_119 = arith.constant 5.000000e-01 : f32
    %286 = vector.broadcast %cst_119 : f32 to vector<8x32xf32>
    %287 = arith.addf %285, %286 : vector<8x32xf32>
    %288 = arith.mulf %277, %207 : vector<8x32xf32>
    %289 = arith.mulf %269, %279 : vector<8x32xf32>
    %290 = arith.addf %288, %289 : vector<8x32xf32>
    %291 = math.tanh %290 : vector<8x32xf32>
    %292 = arith.mulf %287, %291 : vector<8x32xf32>
    %293 = arith.index_cast %c3_i32 : i32 to index
    %c0_120 = arith.constant 0 : index
    %c0_121 = arith.constant 0 : index
    %294 = vector.load %arg5[%293, %c0_120, %c0_121] : memref<8x8x32xf32, #tpu.memory_space<vmem>>, vector<1x8x32xf32>
    %295 = vector.shape_cast %294 : vector<1x8x32xf32> to vector<8x32xf32>
    %296 = vector.shape_cast %292 : vector<8x32xf32> to vector<1x8x32xf32>
    tpu.vector_store %arg5[%293, %c0_120, %c0_121], %296 {strides = array<i32>} : memref<8x8x32xf32, #tpu.memory_space<vmem>>, vector<1x8x32xf32>,
    %c7_i32_122 = arith.constant 7 : i32
    %297 = arith.subi %c7_i32_122, %c3_i32 : i32
    %298 = arith.index_cast %297 : i32 to index
    %c0_123 = arith.constant 0 : index
    %c0_124 = arith.constant 0 : index
    %299 = vector.load %arg2[%298, %c0_123, %c0_124] : memref<8x8x128xf32, #tpu.memory_space<vmem>>, vector<1x8x128xf32>
    %300 = vector.shape_cast %299 : vector<1x8x128xf32> to vector<8x128xf32>
    %c0_125 = arith.constant 0 : index
    %c0_126 = arith.constant 0 : index
    %301 = vector.load %arg4[%c0_125, %c0_126] : memref<32x128xf32, #tpu.memory_space<vmem>>, vector<32x128xf32>
    %cst_127 = arith.constant dense<0.000000e+00> : vector<8x128xf32>
    %302 = tpu.matmul %251, %301, %cst_127 {dimension_numbers = #tpu.dot_dimension_numbers<[1], [0], [0], [1], [0, 0, 1, 1], [], []>} : vector<8x32xf32>, vector<32x128xf32>, vector<8x128xf32> -> vector<8x128xf32>
    %303 = arith.addf %300, %302 : vector<8x128xf32>
    %304 = vector.extract_strided_slice %303 {offsets = [0, 0], sizes = [8, 32], strides = [1, 1]} : vector<8x128xf32> to vector<8x32xf32>
    %cst_128 = arith.constant 5.000000e-01 : f32
    %305 = vector.broadcast %cst_128 : f32 to vector<8x32xf32>
    %306 = arith.mulf %305, %304 : vector<8x32xf32>
    %307 = math.tanh %306 : vector<8x32xf32>
    %cst_129 = arith.constant 5.000000e-01 : f32
    %308 = vector.broadcast %cst_129 : f32 to vector<8x32xf32>
    %309 = arith.mulf %308, %307 : vector<8x32xf32>
    %cst_130 = arith.constant 5.000000e-01 : f32
    %310 = vector.broadcast %cst_130 : f32 to vector<8x32xf32>
    %311 = arith.addf %309, %310 : vector<8x32xf32>
    %312 = vector.extract_strided_slice %303 {offsets = [0, 32], sizes = [8, 32], strides = [1, 1]} : vector<8x128xf32> to vector<8x32xf32>
    %cst_131 = arith.constant 5.000000e-01 : f32
    %313 = vector.broadcast %cst_131 : f32 to vector<8x32xf32>
    %314 = arith.mulf %313, %312 : vector<8x32xf32>
    %315 = math.tanh %314 : vector<8x32xf32>
    %cst_132 = arith.constant 5.000000e-01 : f32
    %316 = vector.broadcast %cst_132 : f32 to vector<8x32xf32>
    %317 = arith.mulf %316, %315 : vector<8x32xf32>
    %cst_133 = arith.constant 5.000000e-01 : f32
    %318 = vector.broadcast %cst_133 : f32 to vector<8x32xf32>
    %319 = arith.addf %317, %318 : vector<8x32xf32>
    %320 = vector.extract_strided_slice %303 {offsets = [0, 64], sizes = [8, 32], strides = [1, 1]} : vector<8x128xf32> to vector<8x32xf32>
    %321 = math.tanh %320 : vector<8x32xf32>
    %322 = vector.extract_strided_slice %303 {offsets = [0, 96], sizes = [8, 32], strides = [1, 1]} : vector<8x128xf32> to vector<8x32xf32>
    %cst_134 = arith.constant 5.000000e-01 : f32
    %323 = vector.broadcast %cst_134 : f32 to vector<8x32xf32>
    %324 = arith.mulf %323, %322 : vector<8x32xf32>
    %325 = math.tanh %324 : vector<8x32xf32>
    %cst_135 = arith.constant 5.000000e-01 : f32
    %326 = vector.broadcast %cst_135 : f32 to vector<8x32xf32>
    %327 = arith.mulf %326, %325 : vector<8x32xf32>
    %cst_136 = arith.constant 5.000000e-01 : f32
    %328 = vector.broadcast %cst_136 : f32 to vector<8x32xf32>
    %329 = arith.addf %327, %328 : vector<8x32xf32>
    %330 = arith.mulf %319, %249 : vector<8x32xf32>
    %331 = arith.mulf %311, %321 : vector<8x32xf32>
    %332 = arith.addf %330, %331 : vector<8x32xf32>
    %333 = math.tanh %332 : vector<8x32xf32>
    %334 = arith.mulf %329, %333 : vector<8x32xf32>
    %335 = arith.index_cast %297 : i32 to index
    %c0_137 = arith.constant 0 : index
    %c0_138 = arith.constant 0 : index
    %336 = vector.load %arg6[%335, %c0_137, %c0_138] : memref<8x8x32xf32, #tpu.memory_space<vmem>>, vector<1x8x32xf32>
    %337 = vector.shape_cast %336 : vector<1x8x32xf32> to vector<8x32xf32>
    %338 = vector.shape_cast %334 : vector<8x32xf32> to vector<1x8x32xf32>
    tpu.vector_store %arg6[%335, %c0_137, %c0_138], %338 {strides = array<i32>} : memref<8x8x32xf32, #tpu.memory_space<vmem>>, vector<1x8x32xf32>,
    %c4_i32 = arith.constant 4 : i32
    %339 = arith.index_cast %c4_i32 : i32 to index
    %c0_139 = arith.constant 0 : index
    %c0_140 = arith.constant 0 : index
    %340 = vector.load %arg1[%339, %c0_139, %c0_140] : memref<8x8x128xf32, #tpu.memory_space<vmem>>, vector<1x8x128xf32>
    %341 = vector.shape_cast %340 : vector<1x8x128xf32> to vector<8x128xf32>
    %c0_141 = arith.constant 0 : index
    %c0_142 = arith.constant 0 : index
    %342 = vector.load %arg3[%c0_141, %c0_142] : memref<32x128xf32, #tpu.memory_space<vmem>>, vector<32x128xf32>
    %cst_143 = arith.constant dense<0.000000e+00> : vector<8x128xf32>
    %343 = tpu.matmul %292, %342, %cst_143 {dimension_numbers = #tpu.dot_dimension_numbers<[1], [0], [0], [1], [0, 0, 1, 1], [], []>} : vector<8x32xf32>, vector<32x128xf32>, vector<8x128xf32> -> vector<8x128xf32>
    %344 = arith.addf %341, %343 : vector<8x128xf32>
    %345 = vector.extract_strided_slice %344 {offsets = [0, 0], sizes = [8, 32], strides = [1, 1]} : vector<8x128xf32> to vector<8x32xf32>
    %cst_144 = arith.constant 5.000000e-01 : f32
    %346 = vector.broadcast %cst_144 : f32 to vector<8x32xf32>
    %347 = arith.mulf %346, %345 : vector<8x32xf32>
    %348 = math.tanh %347 : vector<8x32xf32>
    %cst_145 = arith.constant 5.000000e-01 : f32
    %349 = vector.broadcast %cst_145 : f32 to vector<8x32xf32>
    %350 = arith.mulf %349, %348 : vector<8x32xf32>
    %cst_146 = arith.constant 5.000000e-01 : f32
    %351 = vector.broadcast %cst_146 : f32 to vector<8x32xf32>
    %352 = arith.addf %350, %351 : vector<8x32xf32>
    %353 = vector.extract_strided_slice %344 {offsets = [0, 32], sizes = [8, 32], strides = [1, 1]} : vector<8x128xf32> to vector<8x32xf32>
    %cst_147 = arith.constant 5.000000e-01 : f32
    %354 = vector.broadcast %cst_147 : f32 to vector<8x32xf32>
    %355 = arith.mulf %354, %353 : vector<8x32xf32>
    %356 = math.tanh %355 : vector<8x32xf32>
    %cst_148 = arith.constant 5.000000e-01 : f32
    %357 = vector.broadcast %cst_148 : f32 to vector<8x32xf32>
    %358 = arith.mulf %357, %356 : vector<8x32xf32>
    %cst_149 = arith.constant 5.000000e-01 : f32
    %359 = vector.broadcast %cst_149 : f32 to vector<8x32xf32>
    %360 = arith.addf %358, %359 : vector<8x32xf32>
    %361 = vector.extract_strided_slice %344 {offsets = [0, 64], sizes = [8, 32], strides = [1, 1]} : vector<8x128xf32> to vector<8x32xf32>
    %362 = math.tanh %361 : vector<8x32xf32>
    %363 = vector.extract_strided_slice %344 {offsets = [0, 96], sizes = [8, 32], strides = [1, 1]} : vector<8x128xf32> to vector<8x32xf32>
    %cst_150 = arith.constant 5.000000e-01 : f32
    %364 = vector.broadcast %cst_150 : f32 to vector<8x32xf32>
    %365 = arith.mulf %364, %363 : vector<8x32xf32>
    %366 = math.tanh %365 : vector<8x32xf32>
    %cst_151 = arith.constant 5.000000e-01 : f32
    %367 = vector.broadcast %cst_151 : f32 to vector<8x32xf32>
    %368 = arith.mulf %367, %366 : vector<8x32xf32>
    %cst_152 = arith.constant 5.000000e-01 : f32
    %369 = vector.broadcast %cst_152 : f32 to vector<8x32xf32>
    %370 = arith.addf %368, %369 : vector<8x32xf32>
    %371 = arith.mulf %360, %290 : vector<8x32xf32>
    %372 = arith.mulf %352, %362 : vector<8x32xf32>
    %373 = arith.addf %371, %372 : vector<8x32xf32>
    %374 = math.tanh %373 : vector<8x32xf32>
    %375 = arith.mulf %370, %374 : vector<8x32xf32>
    %376 = arith.index_cast %c4_i32 : i32 to index
    %c0_153 = arith.constant 0 : index
    %c0_154 = arith.constant 0 : index
    %377 = vector.load %arg5[%376, %c0_153, %c0_154] : memref<8x8x32xf32, #tpu.memory_space<vmem>>, vector<1x8x32xf32>
    %378 = vector.shape_cast %377 : vector<1x8x32xf32> to vector<8x32xf32>
    %379 = vector.shape_cast %375 : vector<8x32xf32> to vector<1x8x32xf32>
    tpu.vector_store %arg5[%376, %c0_153, %c0_154], %379 {strides = array<i32>} : memref<8x8x32xf32, #tpu.memory_space<vmem>>, vector<1x8x32xf32>,
    %c7_i32_155 = arith.constant 7 : i32
    %380 = arith.subi %c7_i32_155, %c4_i32 : i32
    %381 = arith.index_cast %380 : i32 to index
    %c0_156 = arith.constant 0 : index
    %c0_157 = arith.constant 0 : index
    %382 = vector.load %arg2[%381, %c0_156, %c0_157] : memref<8x8x128xf32, #tpu.memory_space<vmem>>, vector<1x8x128xf32>
    %383 = vector.shape_cast %382 : vector<1x8x128xf32> to vector<8x128xf32>
    %c0_158 = arith.constant 0 : index
    %c0_159 = arith.constant 0 : index
    %384 = vector.load %arg4[%c0_158, %c0_159] : memref<32x128xf32, #tpu.memory_space<vmem>>, vector<32x128xf32>
    %cst_160 = arith.constant dense<0.000000e+00> : vector<8x128xf32>
    %385 = tpu.matmul %334, %384, %cst_160 {dimension_numbers = #tpu.dot_dimension_numbers<[1], [0], [0], [1], [0, 0, 1, 1], [], []>} : vector<8x32xf32>, vector<32x128xf32>, vector<8x128xf32> -> vector<8x128xf32>
    %386 = arith.addf %383, %385 : vector<8x128xf32>
    %387 = vector.extract_strided_slice %386 {offsets = [0, 0], sizes = [8, 32], strides = [1, 1]} : vector<8x128xf32> to vector<8x32xf32>
    %cst_161 = arith.constant 5.000000e-01 : f32
    %388 = vector.broadcast %cst_161 : f32 to vector<8x32xf32>
    %389 = arith.mulf %388, %387 : vector<8x32xf32>
    %390 = math.tanh %389 : vector<8x32xf32>
    %cst_162 = arith.constant 5.000000e-01 : f32
    %391 = vector.broadcast %cst_162 : f32 to vector<8x32xf32>
    %392 = arith.mulf %391, %390 : vector<8x32xf32>
    %cst_163 = arith.constant 5.000000e-01 : f32
    %393 = vector.broadcast %cst_163 : f32 to vector<8x32xf32>
    %394 = arith.addf %392, %393 : vector<8x32xf32>
    %395 = vector.extract_strided_slice %386 {offsets = [0, 32], sizes = [8, 32], strides = [1, 1]} : vector<8x128xf32> to vector<8x32xf32>
    %cst_164 = arith.constant 5.000000e-01 : f32
    %396 = vector.broadcast %cst_164 : f32 to vector<8x32xf32>
    %397 = arith.mulf %396, %395 : vector<8x32xf32>
    %398 = math.tanh %397 : vector<8x32xf32>
    %cst_165 = arith.constant 5.000000e-01 : f32
    %399 = vector.broadcast %cst_165 : f32 to vector<8x32xf32>
    %400 = arith.mulf %399, %398 : vector<8x32xf32>
    %cst_166 = arith.constant 5.000000e-01 : f32
    %401 = vector.broadcast %cst_166 : f32 to vector<8x32xf32>
    %402 = arith.addf %400, %401 : vector<8x32xf32>
    %403 = vector.extract_strided_slice %386 {offsets = [0, 64], sizes = [8, 32], strides = [1, 1]} : vector<8x128xf32> to vector<8x32xf32>
    %404 = math.tanh %403 : vector<8x32xf32>
    %405 = vector.extract_strided_slice %386 {offsets = [0, 96], sizes = [8, 32], strides = [1, 1]} : vector<8x128xf32> to vector<8x32xf32>
    %cst_167 = arith.constant 5.000000e-01 : f32
    %406 = vector.broadcast %cst_167 : f32 to vector<8x32xf32>
    %407 = arith.mulf %406, %405 : vector<8x32xf32>
    %408 = math.tanh %407 : vector<8x32xf32>
    %cst_168 = arith.constant 5.000000e-01 : f32
    %409 = vector.broadcast %cst_168 : f32 to vector<8x32xf32>
    %410 = arith.mulf %409, %408 : vector<8x32xf32>
    %cst_169 = arith.constant 5.000000e-01 : f32
    %411 = vector.broadcast %cst_169 : f32 to vector<8x32xf32>
    %412 = arith.addf %410, %411 : vector<8x32xf32>
    %413 = arith.mulf %402, %332 : vector<8x32xf32>
    %414 = arith.mulf %394, %404 : vector<8x32xf32>
    %415 = arith.addf %413, %414 : vector<8x32xf32>
    %416 = math.tanh %415 : vector<8x32xf32>
    %417 = arith.mulf %412, %416 : vector<8x32xf32>
    %418 = arith.index_cast %380 : i32 to index
    %c0_170 = arith.constant 0 : index
    %c0_171 = arith.constant 0 : index
    %419 = vector.load %arg6[%418, %c0_170, %c0_171] : memref<8x8x32xf32, #tpu.memory_space<vmem>>, vector<1x8x32xf32>
    %420 = vector.shape_cast %419 : vector<1x8x32xf32> to vector<8x32xf32>
    %421 = vector.shape_cast %417 : vector<8x32xf32> to vector<1x8x32xf32>
    tpu.vector_store %arg6[%418, %c0_170, %c0_171], %421 {strides = array<i32>} : memref<8x8x32xf32, #tpu.memory_space<vmem>>, vector<1x8x32xf32>,
    %c5_i32 = arith.constant 5 : i32
    %422 = arith.index_cast %c5_i32 : i32 to index
    %c0_172 = arith.constant 0 : index
    %c0_173 = arith.constant 0 : index
    %423 = vector.load %arg1[%422, %c0_172, %c0_173] : memref<8x8x128xf32, #tpu.memory_space<vmem>>, vector<1x8x128xf32>
    %424 = vector.shape_cast %423 : vector<1x8x128xf32> to vector<8x128xf32>
    %c0_174 = arith.constant 0 : index
    %c0_175 = arith.constant 0 : index
    %425 = vector.load %arg3[%c0_174, %c0_175] : memref<32x128xf32, #tpu.memory_space<vmem>>, vector<32x128xf32>
    %cst_176 = arith.constant dense<0.000000e+00> : vector<8x128xf32>
    %426 = tpu.matmul %375, %425, %cst_176 {dimension_numbers = #tpu.dot_dimension_numbers<[1], [0], [0], [1], [0, 0, 1, 1], [], []>} : vector<8x32xf32>, vector<32x128xf32>, vector<8x128xf32> -> vector<8x128xf32>
    %427 = arith.addf %424, %426 : vector<8x128xf32>
    %428 = vector.extract_strided_slice %427 {offsets = [0, 0], sizes = [8, 32], strides = [1, 1]} : vector<8x128xf32> to vector<8x32xf32>
    %cst_177 = arith.constant 5.000000e-01 : f32
    %429 = vector.broadcast %cst_177 : f32 to vector<8x32xf32>
    %430 = arith.mulf %429, %428 : vector<8x32xf32>
    %431 = math.tanh %430 : vector<8x32xf32>
    %cst_178 = arith.constant 5.000000e-01 : f32
    %432 = vector.broadcast %cst_178 : f32 to vector<8x32xf32>
    %433 = arith.mulf %432, %431 : vector<8x32xf32>
    %cst_179 = arith.constant 5.000000e-01 : f32
    %434 = vector.broadcast %cst_179 : f32 to vector<8x32xf32>
    %435 = arith.addf %433, %434 : vector<8x32xf32>
    %436 = vector.extract_strided_slice %427 {offsets = [0, 32], sizes = [8, 32], strides = [1, 1]} : vector<8x128xf32> to vector<8x32xf32>
    %cst_180 = arith.constant 5.000000e-01 : f32
    %437 = vector.broadcast %cst_180 : f32 to vector<8x32xf32>
    %438 = arith.mulf %437, %436 : vector<8x32xf32>
    %439 = math.tanh %438 : vector<8x32xf32>
    %cst_181 = arith.constant 5.000000e-01 : f32
    %440 = vector.broadcast %cst_181 : f32 to vector<8x32xf32>
    %441 = arith.mulf %440, %439 : vector<8x32xf32>
    %cst_182 = arith.constant 5.000000e-01 : f32
    %442 = vector.broadcast %cst_182 : f32 to vector<8x32xf32>
    %443 = arith.addf %441, %442 : vector<8x32xf32>
    %444 = vector.extract_strided_slice %427 {offsets = [0, 64], sizes = [8, 32], strides = [1, 1]} : vector<8x128xf32> to vector<8x32xf32>
    %445 = math.tanh %444 : vector<8x32xf32>
    %446 = vector.extract_strided_slice %427 {offsets = [0, 96], sizes = [8, 32], strides = [1, 1]} : vector<8x128xf32> to vector<8x32xf32>
    %cst_183 = arith.constant 5.000000e-01 : f32
    %447 = vector.broadcast %cst_183 : f32 to vector<8x32xf32>
    %448 = arith.mulf %447, %446 : vector<8x32xf32>
    %449 = math.tanh %448 : vector<8x32xf32>
    %cst_184 = arith.constant 5.000000e-01 : f32
    %450 = vector.broadcast %cst_184 : f32 to vector<8x32xf32>
    %451 = arith.mulf %450, %449 : vector<8x32xf32>
    %cst_185 = arith.constant 5.000000e-01 : f32
    %452 = vector.broadcast %cst_185 : f32 to vector<8x32xf32>
    %453 = arith.addf %451, %452 : vector<8x32xf32>
    %454 = arith.mulf %443, %373 : vector<8x32xf32>
    %455 = arith.mulf %435, %445 : vector<8x32xf32>
    %456 = arith.addf %454, %455 : vector<8x32xf32>
    %457 = math.tanh %456 : vector<8x32xf32>
    %458 = arith.mulf %453, %457 : vector<8x32xf32>
    %459 = arith.index_cast %c5_i32 : i32 to index
    %c0_186 = arith.constant 0 : index
    %c0_187 = arith.constant 0 : index
    %460 = vector.load %arg5[%459, %c0_186, %c0_187] : memref<8x8x32xf32, #tpu.memory_space<vmem>>, vector<1x8x32xf32>
    %461 = vector.shape_cast %460 : vector<1x8x32xf32> to vector<8x32xf32>
    %462 = vector.shape_cast %458 : vector<8x32xf32> to vector<1x8x32xf32>
    tpu.vector_store %arg5[%459, %c0_186, %c0_187], %462 {strides = array<i32>} : memref<8x8x32xf32, #tpu.memory_space<vmem>>, vector<1x8x32xf32>,
    %c7_i32_188 = arith.constant 7 : i32
    %463 = arith.subi %c7_i32_188, %c5_i32 : i32
    %464 = arith.index_cast %463 : i32 to index
    %c0_189 = arith.constant 0 : index
    %c0_190 = arith.constant 0 : index
    %465 = vector.load %arg2[%464, %c0_189, %c0_190] : memref<8x8x128xf32, #tpu.memory_space<vmem>>, vector<1x8x128xf32>
    %466 = vector.shape_cast %465 : vector<1x8x128xf32> to vector<8x128xf32>
    %c0_191 = arith.constant 0 : index
    %c0_192 = arith.constant 0 : index
    %467 = vector.load %arg4[%c0_191, %c0_192] : memref<32x128xf32, #tpu.memory_space<vmem>>, vector<32x128xf32>
    %cst_193 = arith.constant dense<0.000000e+00> : vector<8x128xf32>
    %468 = tpu.matmul %417, %467, %cst_193 {dimension_numbers = #tpu.dot_dimension_numbers<[1], [0], [0], [1], [0, 0, 1, 1], [], []>} : vector<8x32xf32>, vector<32x128xf32>, vector<8x128xf32> -> vector<8x128xf32>
    %469 = arith.addf %466, %468 : vector<8x128xf32>
    %470 = vector.extract_strided_slice %469 {offsets = [0, 0], sizes = [8, 32], strides = [1, 1]} : vector<8x128xf32> to vector<8x32xf32>
    %cst_194 = arith.constant 5.000000e-01 : f32
    %471 = vector.broadcast %cst_194 : f32 to vector<8x32xf32>
    %472 = arith.mulf %471, %470 : vector<8x32xf32>
    %473 = math.tanh %472 : vector<8x32xf32>
    %cst_195 = arith.constant 5.000000e-01 : f32
    %474 = vector.broadcast %cst_195 : f32 to vector<8x32xf32>
    %475 = arith.mulf %474, %473 : vector<8x32xf32>
    %cst_196 = arith.constant 5.000000e-01 : f32
    %476 = vector.broadcast %cst_196 : f32 to vector<8x32xf32>
    %477 = arith.addf %475, %476 : vector<8x32xf32>
    %478 = vector.extract_strided_slice %469 {offsets = [0, 32], sizes = [8, 32], strides = [1, 1]} : vector<8x128xf32> to vector<8x32xf32>
    %cst_197 = arith.constant 5.000000e-01 : f32
    %479 = vector.broadcast %cst_197 : f32 to vector<8x32xf32>
    %480 = arith.mulf %479, %478 : vector<8x32xf32>
    %481 = math.tanh %480 : vector<8x32xf32>
    %cst_198 = arith.constant 5.000000e-01 : f32
    %482 = vector.broadcast %cst_198 : f32 to vector<8x32xf32>
    %483 = arith.mulf %482, %481 : vector<8x32xf32>
    %cst_199 = arith.constant 5.000000e-01 : f32
    %484 = vector.broadcast %cst_199 : f32 to vector<8x32xf32>
    %485 = arith.addf %483, %484 : vector<8x32xf32>
    %486 = vector.extract_strided_slice %469 {offsets = [0, 64], sizes = [8, 32], strides = [1, 1]} : vector<8x128xf32> to vector<8x32xf32>
    %487 = math.tanh %486 : vector<8x32xf32>
    %488 = vector.extract_strided_slice %469 {offsets = [0, 96], sizes = [8, 32], strides = [1, 1]} : vector<8x128xf32> to vector<8x32xf32>
    %cst_200 = arith.constant 5.000000e-01 : f32
    %489 = vector.broadcast %cst_200 : f32 to vector<8x32xf32>
    %490 = arith.mulf %489, %488 : vector<8x32xf32>
    %491 = math.tanh %490 : vector<8x32xf32>
    %cst_201 = arith.constant 5.000000e-01 : f32
    %492 = vector.broadcast %cst_201 : f32 to vector<8x32xf32>
    %493 = arith.mulf %492, %491 : vector<8x32xf32>
    %cst_202 = arith.constant 5.000000e-01 : f32
    %494 = vector.broadcast %cst_202 : f32 to vector<8x32xf32>
    %495 = arith.addf %493, %494 : vector<8x32xf32>
    %496 = arith.mulf %485, %415 : vector<8x32xf32>
    %497 = arith.mulf %477, %487 : vector<8x32xf32>
    %498 = arith.addf %496, %497 : vector<8x32xf32>
    %499 = math.tanh %498 : vector<8x32xf32>
    %500 = arith.mulf %495, %499 : vector<8x32xf32>
    %501 = arith.index_cast %463 : i32 to index
    %c0_203 = arith.constant 0 : index
    %c0_204 = arith.constant 0 : index
    %502 = vector.load %arg6[%501, %c0_203, %c0_204] : memref<8x8x32xf32, #tpu.memory_space<vmem>>, vector<1x8x32xf32>
    %503 = vector.shape_cast %502 : vector<1x8x32xf32> to vector<8x32xf32>
    %504 = vector.shape_cast %500 : vector<8x32xf32> to vector<1x8x32xf32>
    tpu.vector_store %arg6[%501, %c0_203, %c0_204], %504 {strides = array<i32>} : memref<8x8x32xf32, #tpu.memory_space<vmem>>, vector<1x8x32xf32>,
    %c6_i32 = arith.constant 6 : i32
    %505 = arith.index_cast %c6_i32 : i32 to index
    %c0_205 = arith.constant 0 : index
    %c0_206 = arith.constant 0 : index
    %506 = vector.load %arg1[%505, %c0_205, %c0_206] : memref<8x8x128xf32, #tpu.memory_space<vmem>>, vector<1x8x128xf32>
    %507 = vector.shape_cast %506 : vector<1x8x128xf32> to vector<8x128xf32>
    %c0_207 = arith.constant 0 : index
    %c0_208 = arith.constant 0 : index
    %508 = vector.load %arg3[%c0_207, %c0_208] : memref<32x128xf32, #tpu.memory_space<vmem>>, vector<32x128xf32>
    %cst_209 = arith.constant dense<0.000000e+00> : vector<8x128xf32>
    %509 = tpu.matmul %458, %508, %cst_209 {dimension_numbers = #tpu.dot_dimension_numbers<[1], [0], [0], [1], [0, 0, 1, 1], [], []>} : vector<8x32xf32>, vector<32x128xf32>, vector<8x128xf32> -> vector<8x128xf32>
    %510 = arith.addf %507, %509 : vector<8x128xf32>
    %511 = vector.extract_strided_slice %510 {offsets = [0, 0], sizes = [8, 32], strides = [1, 1]} : vector<8x128xf32> to vector<8x32xf32>
    %cst_210 = arith.constant 5.000000e-01 : f32
    %512 = vector.broadcast %cst_210 : f32 to vector<8x32xf32>
    %513 = arith.mulf %512, %511 : vector<8x32xf32>
    %514 = math.tanh %513 : vector<8x32xf32>
    %cst_211 = arith.constant 5.000000e-01 : f32
    %515 = vector.broadcast %cst_211 : f32 to vector<8x32xf32>
    %516 = arith.mulf %515, %514 : vector<8x32xf32>
    %cst_212 = arith.constant 5.000000e-01 : f32
    %517 = vector.broadcast %cst_212 : f32 to vector<8x32xf32>
    %518 = arith.addf %516, %517 : vector<8x32xf32>
    %519 = vector.extract_strided_slice %510 {offsets = [0, 32], sizes = [8, 32], strides = [1, 1]} : vector<8x128xf32> to vector<8x32xf32>
    %cst_213 = arith.constant 5.000000e-01 : f32
    %520 = vector.broadcast %cst_213 : f32 to vector<8x32xf32>
    %521 = arith.mulf %520, %519 : vector<8x32xf32>
    %522 = math.tanh %521 : vector<8x32xf32>
    %cst_214 = arith.constant 5.000000e-01 : f32
    %523 = vector.broadcast %cst_214 : f32 to vector<8x32xf32>
    %524 = arith.mulf %523, %522 : vector<8x32xf32>
    %cst_215 = arith.constant 5.000000e-01 : f32
    %525 = vector.broadcast %cst_215 : f32 to vector<8x32xf32>
    %526 = arith.addf %524, %525 : vector<8x32xf32>
    %527 = vector.extract_strided_slice %510 {offsets = [0, 64], sizes = [8, 32], strides = [1, 1]} : vector<8x128xf32> to vector<8x32xf32>
    %528 = math.tanh %527 : vector<8x32xf32>
    %529 = vector.extract_strided_slice %510 {offsets = [0, 96], sizes = [8, 32], strides = [1, 1]} : vector<8x128xf32> to vector<8x32xf32>
    %cst_216 = arith.constant 5.000000e-01 : f32
    %530 = vector.broadcast %cst_216 : f32 to vector<8x32xf32>
    %531 = arith.mulf %530, %529 : vector<8x32xf32>
    %532 = math.tanh %531 : vector<8x32xf32>
    %cst_217 = arith.constant 5.000000e-01 : f32
    %533 = vector.broadcast %cst_217 : f32 to vector<8x32xf32>
    %534 = arith.mulf %533, %532 : vector<8x32xf32>
    %cst_218 = arith.constant 5.000000e-01 : f32
    %535 = vector.broadcast %cst_218 : f32 to vector<8x32xf32>
    %536 = arith.addf %534, %535 : vector<8x32xf32>
    %537 = arith.mulf %526, %456 : vector<8x32xf32>
    %538 = arith.mulf %518, %528 : vector<8x32xf32>
    %539 = arith.addf %537, %538 : vector<8x32xf32>
    %540 = math.tanh %539 : vector<8x32xf32>
    %541 = arith.mulf %536, %540 : vector<8x32xf32>
    %542 = arith.index_cast %c6_i32 : i32 to index
    %c0_219 = arith.constant 0 : index
    %c0_220 = arith.constant 0 : index
    %543 = vector.load %arg5[%542, %c0_219, %c0_220] : memref<8x8x32xf32, #tpu.memory_space<vmem>>, vector<1x8x32xf32>
    %544 = vector.shape_cast %543 : vector<1x8x32xf32> to vector<8x32xf32>
    %545 = vector.shape_cast %541 : vector<8x32xf32> to vector<1x8x32xf32>
    tpu.vector_store %arg5[%542, %c0_219, %c0_220], %545 {strides = array<i32>} : memref<8x8x32xf32, #tpu.memory_space<vmem>>, vector<1x8x32xf32>,
    %c7_i32_221 = arith.constant 7 : i32
    %546 = arith.subi %c7_i32_221, %c6_i32 : i32
    %547 = arith.index_cast %546 : i32 to index
    %c0_222 = arith.constant 0 : index
    %c0_223 = arith.constant 0 : index
    %548 = vector.load %arg2[%547, %c0_222, %c0_223] : memref<8x8x128xf32, #tpu.memory_space<vmem>>, vector<1x8x128xf32>
    %549 = vector.shape_cast %548 : vector<1x8x128xf32> to vector<8x128xf32>
    %c0_224 = arith.constant 0 : index
    %c0_225 = arith.constant 0 : index
    %550 = vector.load %arg4[%c0_224, %c0_225] : memref<32x128xf32, #tpu.memory_space<vmem>>, vector<32x128xf32>
    %cst_226 = arith.constant dense<0.000000e+00> : vector<8x128xf32>
    %551 = tpu.matmul %500, %550, %cst_226 {dimension_numbers = #tpu.dot_dimension_numbers<[1], [0], [0], [1], [0, 0, 1, 1], [], []>} : vector<8x32xf32>, vector<32x128xf32>, vector<8x128xf32> -> vector<8x128xf32>
    %552 = arith.addf %549, %551 : vector<8x128xf32>
    %553 = vector.extract_strided_slice %552 {offsets = [0, 0], sizes = [8, 32], strides = [1, 1]} : vector<8x128xf32> to vector<8x32xf32>
    %cst_227 = arith.constant 5.000000e-01 : f32
    %554 = vector.broadcast %cst_227 : f32 to vector<8x32xf32>
    %555 = arith.mulf %554, %553 : vector<8x32xf32>
    %556 = math.tanh %555 : vector<8x32xf32>
    %cst_228 = arith.constant 5.000000e-01 : f32
    %557 = vector.broadcast %cst_228 : f32 to vector<8x32xf32>
    %558 = arith.mulf %557, %556 : vector<8x32xf32>
    %cst_229 = arith.constant 5.000000e-01 : f32
    %559 = vector.broadcast %cst_229 : f32 to vector<8x32xf32>
    %560 = arith.addf %558, %559 : vector<8x32xf32>
    %561 = vector.extract_strided_slice %552 {offsets = [0, 32], sizes = [8, 32], strides = [1, 1]} : vector<8x128xf32> to vector<8x32xf32>
    %cst_230 = arith.constant 5.000000e-01 : f32
    %562 = vector.broadcast %cst_230 : f32 to vector<8x32xf32>
    %563 = arith.mulf %562, %561 : vector<8x32xf32>
    %564 = math.tanh %563 : vector<8x32xf32>
    %cst_231 = arith.constant 5.000000e-01 : f32
    %565 = vector.broadcast %cst_231 : f32 to vector<8x32xf32>
    %566 = arith.mulf %565, %564 : vector<8x32xf32>
    %cst_232 = arith.constant 5.000000e-01 : f32
    %567 = vector.broadcast %cst_232 : f32 to vector<8x32xf32>
    %568 = arith.addf %566, %567 : vector<8x32xf32>
    %569 = vector.extract_strided_slice %552 {offsets = [0, 64], sizes = [8, 32], strides = [1, 1]} : vector<8x128xf32> to vector<8x32xf32>
    %570 = math.tanh %569 : vector<8x32xf32>
    %571 = vector.extract_strided_slice %552 {offsets = [0, 96], sizes = [8, 32], strides = [1, 1]} : vector<8x128xf32> to vector<8x32xf32>
    %cst_233 = arith.constant 5.000000e-01 : f32
    %572 = vector.broadcast %cst_233 : f32 to vector<8x32xf32>
    %573 = arith.mulf %572, %571 : vector<8x32xf32>
    %574 = math.tanh %573 : vector<8x32xf32>
    %cst_234 = arith.constant 5.000000e-01 : f32
    %575 = vector.broadcast %cst_234 : f32 to vector<8x32xf32>
    %576 = arith.mulf %575, %574 : vector<8x32xf32>
    %cst_235 = arith.constant 5.000000e-01 : f32
    %577 = vector.broadcast %cst_235 : f32 to vector<8x32xf32>
    %578 = arith.addf %576, %577 : vector<8x32xf32>
    %579 = arith.mulf %568, %498 : vector<8x32xf32>
    %580 = arith.mulf %560, %570 : vector<8x32xf32>
    %581 = arith.addf %579, %580 : vector<8x32xf32>
    %582 = math.tanh %581 : vector<8x32xf32>
    %583 = arith.mulf %578, %582 : vector<8x32xf32>
    %584 = arith.index_cast %546 : i32 to index
    %c0_236 = arith.constant 0 : index
    %c0_237 = arith.constant 0 : index
    %585 = vector.load %arg6[%584, %c0_236, %c0_237] : memref<8x8x32xf32, #tpu.memory_space<vmem>>, vector<1x8x32xf32>
    %586 = vector.shape_cast %585 : vector<1x8x32xf32> to vector<8x32xf32>
    %587 = vector.shape_cast %583 : vector<8x32xf32> to vector<1x8x32xf32>
    tpu.vector_store %arg6[%584, %c0_236, %c0_237], %587 {strides = array<i32>} : memref<8x8x32xf32, #tpu.memory_space<vmem>>, vector<1x8x32xf32>,
    %c7_i32_238 = arith.constant 7 : i32
    %588 = arith.index_cast %c7_i32_238 : i32 to index
    %c0_239 = arith.constant 0 : index
    %c0_240 = arith.constant 0 : index
    %589 = vector.load %arg1[%588, %c0_239, %c0_240] : memref<8x8x128xf32, #tpu.memory_space<vmem>>, vector<1x8x128xf32>
    %590 = vector.shape_cast %589 : vector<1x8x128xf32> to vector<8x128xf32>
    %c0_241 = arith.constant 0 : index
    %c0_242 = arith.constant 0 : index
    %591 = vector.load %arg3[%c0_241, %c0_242] : memref<32x128xf32, #tpu.memory_space<vmem>>, vector<32x128xf32>
    %cst_243 = arith.constant dense<0.000000e+00> : vector<8x128xf32>
    %592 = tpu.matmul %541, %591, %cst_243 {dimension_numbers = #tpu.dot_dimension_numbers<[1], [0], [0], [1], [0, 0, 1, 1], [], []>} : vector<8x32xf32>, vector<32x128xf32>, vector<8x128xf32> -> vector<8x128xf32>
    %593 = arith.addf %590, %592 : vector<8x128xf32>
    %594 = vector.extract_strided_slice %593 {offsets = [0, 0], sizes = [8, 32], strides = [1, 1]} : vector<8x128xf32> to vector<8x32xf32>
    %cst_244 = arith.constant 5.000000e-01 : f32
    %595 = vector.broadcast %cst_244 : f32 to vector<8x32xf32>
    %596 = arith.mulf %595, %594 : vector<8x32xf32>
    %597 = math.tanh %596 : vector<8x32xf32>
    %cst_245 = arith.constant 5.000000e-01 : f32
    %598 = vector.broadcast %cst_245 : f32 to vector<8x32xf32>
    %599 = arith.mulf %598, %597 : vector<8x32xf32>
    %cst_246 = arith.constant 5.000000e-01 : f32
    %600 = vector.broadcast %cst_246 : f32 to vector<8x32xf32>
    %601 = arith.addf %599, %600 : vector<8x32xf32>
    %602 = vector.extract_strided_slice %593 {offsets = [0, 32], sizes = [8, 32], strides = [1, 1]} : vector<8x128xf32> to vector<8x32xf32>
    %cst_247 = arith.constant 5.000000e-01 : f32
    %603 = vector.broadcast %cst_247 : f32 to vector<8x32xf32>
    %604 = arith.mulf %603, %602 : vector<8x32xf32>
    %605 = math.tanh %604 : vector<8x32xf32>
    %cst_248 = arith.constant 5.000000e-01 : f32
    %606 = vector.broadcast %cst_248 : f32 to vector<8x32xf32>
    %607 = arith.mulf %606, %605 : vector<8x32xf32>
    %cst_249 = arith.constant 5.000000e-01 : f32
    %608 = vector.broadcast %cst_249 : f32 to vector<8x32xf32>
    %609 = arith.addf %607, %608 : vector<8x32xf32>
    %610 = vector.extract_strided_slice %593 {offsets = [0, 64], sizes = [8, 32], strides = [1, 1]} : vector<8x128xf32> to vector<8x32xf32>
    %611 = math.tanh %610 : vector<8x32xf32>
    %612 = vector.extract_strided_slice %593 {offsets = [0, 96], sizes = [8, 32], strides = [1, 1]} : vector<8x128xf32> to vector<8x32xf32>
    %cst_250 = arith.constant 5.000000e-01 : f32
    %613 = vector.broadcast %cst_250 : f32 to vector<8x32xf32>
    %614 = arith.mulf %613, %612 : vector<8x32xf32>
    %615 = math.tanh %614 : vector<8x32xf32>
    %cst_251 = arith.constant 5.000000e-01 : f32
    %616 = vector.broadcast %cst_251 : f32 to vector<8x32xf32>
    %617 = arith.mulf %616, %615 : vector<8x32xf32>
    %cst_252 = arith.constant 5.000000e-01 : f32
    %618 = vector.broadcast %cst_252 : f32 to vector<8x32xf32>
    %619 = arith.addf %617, %618 : vector<8x32xf32>
    %620 = arith.mulf %609, %539 : vector<8x32xf32>
    %621 = arith.mulf %601, %611 : vector<8x32xf32>
    %622 = arith.addf %620, %621 : vector<8x32xf32>
    %623 = math.tanh %622 : vector<8x32xf32>
    %624 = arith.mulf %619, %623 : vector<8x32xf32>
    %625 = arith.index_cast %c7_i32_238 : i32 to index
    %c0_253 = arith.constant 0 : index
    %c0_254 = arith.constant 0 : index
    %626 = vector.load %arg5[%625, %c0_253, %c0_254] : memref<8x8x32xf32, #tpu.memory_space<vmem>>, vector<1x8x32xf32>
    %627 = vector.shape_cast %626 : vector<1x8x32xf32> to vector<8x32xf32>
    %628 = vector.shape_cast %624 : vector<8x32xf32> to vector<1x8x32xf32>
    tpu.vector_store %arg5[%625, %c0_253, %c0_254], %628 {strides = array<i32>} : memref<8x8x32xf32, #tpu.memory_space<vmem>>, vector<1x8x32xf32>,
    %c7_i32_255 = arith.constant 7 : i32
    %629 = arith.subi %c7_i32_255, %c7_i32_238 : i32
    %630 = arith.index_cast %629 : i32 to index
    %c0_256 = arith.constant 0 : index
    %c0_257 = arith.constant 0 : index
    %631 = vector.load %arg2[%630, %c0_256, %c0_257] : memref<8x8x128xf32, #tpu.memory_space<vmem>>, vector<1x8x128xf32>
    %632 = vector.shape_cast %631 : vector<1x8x128xf32> to vector<8x128xf32>
    %c0_258 = arith.constant 0 : index
    %c0_259 = arith.constant 0 : index
    %633 = vector.load %arg4[%c0_258, %c0_259] : memref<32x128xf32, #tpu.memory_space<vmem>>, vector<32x128xf32>
    %cst_260 = arith.constant dense<0.000000e+00> : vector<8x128xf32>
    %634 = tpu.matmul %583, %633, %cst_260 {dimension_numbers = #tpu.dot_dimension_numbers<[1], [0], [0], [1], [0, 0, 1, 1], [], []>} : vector<8x32xf32>, vector<32x128xf32>, vector<8x128xf32> -> vector<8x128xf32>
    %635 = arith.addf %632, %634 : vector<8x128xf32>
    %636 = vector.extract_strided_slice %635 {offsets = [0, 0], sizes = [8, 32], strides = [1, 1]} : vector<8x128xf32> to vector<8x32xf32>
    %cst_261 = arith.constant 5.000000e-01 : f32
    %637 = vector.broadcast %cst_261 : f32 to vector<8x32xf32>
    %638 = arith.mulf %637, %636 : vector<8x32xf32>
    %639 = math.tanh %638 : vector<8x32xf32>
    %cst_262 = arith.constant 5.000000e-01 : f32
    %640 = vector.broadcast %cst_262 : f32 to vector<8x32xf32>
    %641 = arith.mulf %640, %639 : vector<8x32xf32>
    %cst_263 = arith.constant 5.000000e-01 : f32
    %642 = vector.broadcast %cst_263 : f32 to vector<8x32xf32>
    %643 = arith.addf %641, %642 : vector<8x32xf32>
    %644 = vector.extract_strided_slice %635 {offsets = [0, 32], sizes = [8, 32], strides = [1, 1]} : vector<8x128xf32> to vector<8x32xf32>
    %cst_264 = arith.constant 5.000000e-01 : f32
    %645 = vector.broadcast %cst_264 : f32 to vector<8x32xf32>
    %646 = arith.mulf %645, %644 : vector<8x32xf32>
    %647 = math.tanh %646 : vector<8x32xf32>
    %cst_265 = arith.constant 5.000000e-01 : f32
    %648 = vector.broadcast %cst_265 : f32 to vector<8x32xf32>
    %649 = arith.mulf %648, %647 : vector<8x32xf32>
    %cst_266 = arith.constant 5.000000e-01 : f32
    %650 = vector.broadcast %cst_266 : f32 to vector<8x32xf32>
    %651 = arith.addf %649, %650 : vector<8x32xf32>
    %652 = vector.extract_strided_slice %635 {offsets = [0, 64], sizes = [8, 32], strides = [1, 1]} : vector<8x128xf32> to vector<8x32xf32>
    %653 = math.tanh %652 : vector<8x32xf32>
    %654 = vector.extract_strided_slice %635 {offsets = [0, 96], sizes = [8, 32], strides = [1, 1]} : vector<8x128xf32> to vector<8x32xf32>
    %cst_267 = arith.constant 5.000000e-01 : f32
    %655 = vector.broadcast %cst_267 : f32 to vector<8x32xf32>
    %656 = arith.mulf %655, %654 : vector<8x32xf32>
    %657 = math.tanh %656 : vector<8x32xf32>
    %cst_268 = arith.constant 5.000000e-01 : f32
    %658 = vector.broadcast %cst_268 : f32 to vector<8x32xf32>
    %659 = arith.mulf %658, %657 : vector<8x32xf32>
    %cst_269 = arith.constant 5.000000e-01 : f32
    %660 = vector.broadcast %cst_269 : f32 to vector<8x32xf32>
    %661 = arith.addf %659, %660 : vector<8x32xf32>
    %662 = arith.mulf %651, %581 : vector<8x32xf32>
    %663 = arith.mulf %643, %653 : vector<8x32xf32>
    %664 = arith.addf %662, %663 : vector<8x32xf32>
    %665 = math.tanh %664 : vector<8x32xf32>
    %666 = arith.mulf %661, %665 : vector<8x32xf32>
    %667 = arith.index_cast %629 : i32 to index
    %c0_270 = arith.constant 0 : index
    %c0_271 = arith.constant 0 : index
    %668 = vector.load %arg6[%667, %c0_270, %c0_271] : memref<8x8x32xf32, #tpu.memory_space<vmem>>, vector<1x8x32xf32>
    %669 = vector.shape_cast %668 : vector<1x8x32xf32> to vector<8x32xf32>
    %670 = vector.shape_cast %666 : vector<8x32xf32> to vector<1x8x32xf32>
    tpu.vector_store %arg6[%667, %c0_270, %c0_271], %670 {strides = array<i32>} : memref<8x8x32xf32, #tpu.memory_space<vmem>>, vector<1x8x32xf32>,
    %c8_i32 = arith.constant 8 : i32
    %c0_272 = arith.constant 0 : index
    %c0_273 = arith.constant 0 : index
    %671 = vector.load %arg7[%c0_272, %c0_273] : memref<8x32xf32, #tpu.memory_space<vmem>>, vector<8x32xf32>
    tpu.vector_store %arg7[%c0_272, %c0_273], %624 {strides = array<i32>} : memref<8x32xf32, #tpu.memory_space<vmem>>, vector<8x32xf32>,
    %c0_274 = arith.constant 0 : index
    %c0_275 = arith.constant 0 : index
    %672 = vector.load %arg8[%c0_274, %c0_275] : memref<8x32xf32, #tpu.memory_space<vmem>>, vector<8x32xf32>
    tpu.vector_store %arg8[%c0_274, %c0_275], %622 {strides = array<i32>} : memref<8x32xf32, #tpu.memory_space<vmem>>, vector<8x32xf32>,
    %c0_276 = arith.constant 0 : index
    %c0_277 = arith.constant 0 : index
    %673 = vector.load %arg9[%c0_276, %c0_277] : memref<8x32xf32, #tpu.memory_space<vmem>>, vector<8x32xf32>
    tpu.vector_store %arg9[%c0_276, %c0_277], %666 {strides = array<i32>} : memref<8x32xf32, #tpu.memory_space<vmem>>, vector<8x32xf32>,
    %c0_278 = arith.constant 0 : index
    %c0_279 = arith.constant 0 : index
    %674 = vector.load %arg10[%c0_278, %c0_279] : memref<8x32xf32, #tpu.memory_space<vmem>>, vector<8x32xf32>
    tpu.vector_store %arg10[%c0_278, %c0_279], %664 {strides = array<i32>} : memref<8x32xf32, #tpu.memory_space<vmem>>, vector<8x32xf32>,
    return
  }
  func.func @transform_0(%arg0: i32) -> (i32, i32, i32) {
    %c0_i32 = arith.constant 0 : i32
    %c0_i32_0 = arith.constant 0 : i32
    %c0_i32_1 = arith.constant 0 : i32
    return %arg0, %c0_i32, %c0_i32_0 : i32, i32, i32
  }
  func.func @transform_1(%arg0: i32) -> (i32, i32, i32) {
    %c0_i32 = arith.constant 0 : i32
    %0 = arith.subi %c0_i32, %arg0 : i32
    %c0_i32_0 = arith.constant 0 : i32
    %c0_i32_1 = arith.constant 0 : i32
    %c0_i32_2 = arith.constant 0 : i32
    return %0, %c0_i32_0, %c0_i32_1 : i32, i32, i32
  }
  func.func @transform_2(%arg0: i32) -> (i32, i32) {
    %c0_i32 = arith.constant 0 : i32
    %c0_i32_0 = arith.constant 0 : i32
    %c0_i32_1 = arith.constant 0 : i32
    return %c0_i32, %c0_i32_0 : i32, i32
  }
  func.func @transform_3(%arg0: i32) -> (i32, i32) {
    %c0_i32 = arith.constant 0 : i32
    %c0_i32_0 = arith.constant 0 : i32
    %c0_i32_1 = arith.constant 0 : i32
    return %c0_i32, %c0_i32_0 : i32, i32
  }
  func.func @transform_4(%arg0: i32) -> (i32, i32, i32) {
    %c0_i32 = arith.constant 0 : i32
    %c0_i32_0 = arith.constant 0 : i32
    %c0_i32_1 = arith.constant 0 : i32
    return %arg0, %c0_i32, %c0_i32_0 : i32, i32, i32
  }
  func.func @transform_5(%arg0: i32) -> (i32, i32, i32) {
    %c0_i32 = arith.constant 0 : i32
    %0 = arith.subi %c0_i32, %arg0 : i32
    %c0_i32_0 = arith.constant 0 : i32
    %c0_i32_1 = arith.constant 0 : i32
    %c0_i32_2 = arith.constant 0 : i32
    return %0, %c0_i32_0, %c0_i32_1 : i32, i32, i32
  }
}

</mosaic_0001>

<llo_original>
// kernel: tpu_custom_call.1
$region0: #{tpu_custom_call.1}
  #allocation0 [shape = 'u32[]', space=smem, size = 0x4, offset = 0x4, fixed_abs, tag = 'smem constant byte address 0x4 - core index']
  #allocation1 [shape = 'u32[144,128]{1,0:T(1,128)}', space=vmem, size = 0x12000, scoped, tag = 'internal scratch']
  #allocation2 [shape = 'f32[8,32]{1,0:T(8,128)}', space=vmem, size = 0x1000, scoped, tag = 'scratch operand']
  #allocation3 [shape = 'f32[8,32]{1,0:T(8,128)}', space=vmem, size = 0x1000, scoped, tag = 'scratch operand']
  #allocation4 [shape = 'f32[8,32]{1,0:T(8,128)}', space=vmem, size = 0x1000, scoped, tag = 'scratch operand']
  #allocation5 [shape = 'f32[8,32]{1,0:T(8,128)}', space=vmem, size = 0x1000, scoped, tag = 'scratch operand']
  %s0 = inlined_call_operand.hbm [shape: f32[8,8,128], index: 0, kind: input, shape index: {}]
  %s1 = inlined_call_operand.hbm [shape: f32[8,8,128], index: 1, kind: input, shape index: {}]
  %s2 = inlined_call_operand.hbm [shape: f32[32,128], index: 2, kind: input, shape index: {}]
  %s3 = inlined_call_operand.hbm [shape: f32[32,128], index: 3, kind: input, shape index: {}]
  %s4 = inlined_call_operand.hbm [shape: f32[8,8,32], index: 4, kind: output, shape index: {0}]
  %s5 = inlined_call_operand.hbm [shape: f32[8,8,32], index: 5, kind: output, shape index: {1}]
  %6 = xla_tuple %s4, %s5
  %s7 = sld [smem:[#allocation0]]
  $region54: #{tpu_custom_call.1} parent=0
    _
  %s9 = ssub.s32 1, %s7
  %s10 = scalar_select 0, %s9, %s7
  $region1: #{tpu_custom_call.1} parent=0
    #allocation6 [shape = 'u8[32768]{0}', space=vmem, size = 0x8000, scoped, tag = 'input window, operand 0, single buffered']
    #allocation7 [shape = 's32[1]{0}', space=sflag, size = 0x4, scoped, tag = 'scoped memory for tpu_custom_call.1']
    #allocation8 [shape = 's32[1]{0}', space=sflag, size = 0x4, scoped, tag = 'scoped memory for tpu_custom_call.1']
    #allocation9 [shape = 'u8[32768]{0}', space=vmem, size = 0x8000, scoped, tag = 'input window, operand 1, single buffered']
    #allocation10 [shape = 's32[1]{0}', space=sflag, size = 0x4, scoped, tag = 'scoped memory for tpu_custom_call.1']
    #allocation11 [shape = 'u8[16384]{0}', space=vmem, size = 0x4000, scoped, tag = 'input window, operand 2, single buffered']
    #allocation12 [shape = 'u8[16384]{0}', space=vmem, size = 0x4000, scoped, tag = 'input window, operand 3, single buffered']
    #allocation13 [shape = 's32[1]{0}', space=sflag, size = 0x4, scoped, tag = 'scoped memory for tpu_custom_call.1']
    #allocation14 [shape = 'u8[32768]{0}', space=vmem, size = 0x8000, scoped, tag = 'output window, operand 0, single buffered']
    #allocation15 [shape = 'u8[32768]{0}', space=vmem, size = 0x8000, scoped, tag = 'output window, operand 1, single buffered']
    #allocation16 [shape = 's32[1]{0}', space=sflag, size = 0x4, scoped, tag = 'scoped memory for tpu_custom_call.1']
    %11 = vsyncpa [#allocation7], 0
    %12 = vsyncpa [#allocation10], 0
    %13 = vsyncpa [#allocation13], 0
    %14 = vsyncpa [#allocation8], 0
    %15 = vsyncpa [#allocation16], 0
    // Predicated region
    $region2: #{tpu_custom_call.1} parent=1 // pred_check
      _
    $region3: #{tpu_custom_call.1} parent=1 // pred_check_branch
      %17 = sbr.rel (0) target = $region5
    $region4: #{tpu_custom_call.1} parent=1 // pred_region
      %s19 = ssub.s32 1024, 1024
      %20 = vsyncadd [#allocation7], %s19
      %s21 = sshll.u32 [#allocation6], 4
      %s22 = int_to_ptr.vmem [resolvable:$true] %s21
      %27 = dma.hbm_to_vmem [thread:$0]  %s0, 1024, %s22, [#allocation7], 128, 128, 8
    $region5: #{tpu_custom_call.1} parent=1 // pred_fallthru
      _
    // Predicated region
    $region6: #{tpu_custom_call.1} parent=1 // pred_check
      _
    $region7: #{tpu_custom_call.1} parent=1 // pred_check_branch
      %29 = sbr.rel (0) target = $region9
    $region8: #{tpu_custom_call.1} parent=1 // pred_region
      %s30 = ssub.s32 0, 0
      %s31 = smul.u32 8, %s30
      %s33 = ssub.s32 1024, 1024
      %34 = vsyncadd [#allocation10], %s33
      %s35 = smul.addr %s31, 128
      %s36 = scalar_lea.hbm %s1, %s35
      %s37 = sshll.u32 [#allocation9], 4
      %s38 = int_to_ptr.vmem [resolvable:$true] %s37
      %43 = dma.hbm_to_vmem [thread:$0]  %s36, 1024, %s38, [#allocation10], 128, 128, 8
    $region9: #{tpu_custom_call.1} parent=1 // pred_fallthru
      _
    // Predicated region
    $region10: #{tpu_custom_call.1} parent=1 // pred_check
      _
    $region11: #{tpu_custom_call.1} parent=1 // pred_check_branch
      %45 = sbr.rel (0) target = $region13
    $region12: #{tpu_custom_call.1} parent=1 // pred_region
      %s47 = ssub.s32 512, 512
      %48 = vsyncadd [#allocation10], %s47
      %s49 = sshll.u32 [#allocation11], 4
      %s50 = int_to_ptr.vmem [resolvable:$true] %s49
      %55 = dma.hbm_to_vmem [thread:$0]  %s2, 512, %s50, [#allocation10], 128, 128, 8
    $region13: #{tpu_custom_call.1} parent=1 // pred_fallthru
      _
    // Predicated region
    $region14: #{tpu_custom_call.1} parent=1 // pred_check
      _
    $region15: #{tpu_custom_call.1} parent=1 // pred_check_branch
      %57 = sbr.rel (0) target = $region17
    $region16: #{tpu_custom_call.1} parent=1 // pred_region
      %s59 = ssub.s32 512, 512
      %60 = vsyncadd [#allocation13], %s59
      %s61 = sshll.u32 [#allocation12], 4
      %s62 = int_to_ptr.vmem [resolvable:$true] %s61
      %67 = dma.hbm_to_vmem [thread:$0]  %s3, 512, %s62, [#allocation13], 128, 128, 8
    $region17: #{tpu_custom_call.1} parent=1 // pred_fallthru
      _
    // Predicated region
    $region18: #{tpu_custom_call.1} parent=1 // pred_check
      _
    $region19: #{tpu_custom_call.1} parent=1 // pred_check_branch
      %69 = sbr.rel (0) target = $region21
    $region20: #{tpu_custom_call.1} parent=1 // pred_region
      %70 = dma.done [#allocation7], 1024
    $region21: #{tpu_custom_call.1} parent=1 // pred_fallthru
      _
    // Predicated region
    $region22: #{tpu_custom_call.1} parent=1 // pred_check
      _
    $region23: #{tpu_custom_call.1} parent=1 // pred_check_branch
      %72 = sbr.rel (0) target = $region25
    $region24: #{tpu_custom_call.1} parent=1 // pred_region
      %73 = dma.done [#allocation10], 1024
    $region25: #{tpu_custom_call.1} parent=1 // pred_fallthru
      _
    // Predicated region
    $region26: #{tpu_custom_call.1} parent=1 // pred_check
      _
    $region27: #{tpu_custom_call.1} parent=1 // pred_check_branch
      %75 = sbr.rel (0) target = $region29
    $region28: #{tpu_custom_call.1} parent=1 // pred_region
      %76 = dma.done [#allocation10], 512
    $region29: #{tpu_custom_call.1} parent=1 // pred_fallthru
      _
    // Predicated region
    $region30: #{tpu_custom_call.1} parent=1 // pred_check
      _
    $region31: #{tpu_custom_call.1} parent=1 // pred_check_branch
      %78 = sbr.rel (0) target = $region33
    $region32: #{tpu_custom_call.1} parent=1 // pred_region
      %79 = dma.done [#allocation13], 512
    $region33: #{tpu_custom_call.1} parent=1 // pred_fallthru
      _
    %s80 = ssub.s32 0, 0
    %s81 = smul.u32 8, %s80
    %s82 = ssub.s32 0, 0
    %s83 = smul.u32 8, %s82
    %p84 = scmp.eq.s32.totalorder 0, 0
    // Predicated region
    $region34: #{tpu_custom_call.1} parent=1 // pred_check
      %p85 = pneg %p84
    $region35: #{tpu_custom_call.1} parent=1 // pred_check_branch
      %87 = sbr.rel (%p85) target = $region37
    $region36: #{tpu_custom_call.1} parent=1 // pred_region
      %vm88 = vcmask 261120
      %89 = vst.msk [vmem:[#allocation2] sm:$0xff] %vm88, 0.0
      %90 = vst.msk [vmem:[#allocation3] sm:$0xff] %vm88, 0.0
      %91 = vst.msk [vmem:[#allocation4] sm:$0xff] %vm88, 0.0
      %92 = vst.msk [vmem:[#allocation5] sm:$0xff] %vm88, 0.0
    $region37: #{tpu_custom_call.1} parent=1 // pred_fallthru
      _
    %v93 = vld [vmem:[#allocation2] sm:$0xff]
    %v94 = vld [vmem:[#allocation3] sm:$0xff]
    %v95 = vld [vmem:[#allocation4] sm:$0xff]
    %v96 = vld [vmem:[#allocation5] sm:$0xff]
    %v97 = vld [vmem:[#allocation6] sm:$0xff]
    %v98 = vld [vmem:[#allocation11] sm:$0xff]
    %v99 = vld [vmem:[#allocation11 + $0x8] sm:$0xff]
    %v100 = vld [vmem:[#allocation11 + $0x10] sm:$0xff]
    %v101 = vld [vmem:[#allocation11 + $0x18] sm:$0xff]
    %vm102 = vcmask 261120
    %v104 = vsel %vm102, %v93, 0
    %106 = vmatprep.subr.mxu0 0.0
    %107 = vmatpush1.msra.mxu0 %v98
    %108 = vmatprep.subr.mxu0 0.0
    %109 = vmatpush1.msra.mxu0 %v99
    %110 = vmatprep.subr.mxu0 0.0
    %111 = vmatpush1.msra.mxu0 %v100
    %112 = vmatprep.subr.mxu0 0.0
    %113 = vmatpush1.msra.mxu0 %v101
    %114 = vmatprep.subr.mxu0 0.0
    %115 = vmatpush1.msra.mxu0 0.0
    %116 = vmatprep.subr.mxu0 0.0
    %117 = vmatpush1.msra.mxu0 0.0
    %118 = vmatprep.subr.mxu0 0.0
    %119 = vmatpush1.msra.mxu0 0.0
    %120 = vmatprep.subr.mxu0 0.0
    %121 = vmatpush1.msra.mxu0 0.0
    %122 = vmatprep.subr.mxu0 0.0
    %123 = vmatpush1.msra.mxu0 0.0
    %124 = vmatprep.subr.mxu0 0.0
    %125 = vmatpush1.msra.mxu0 0.0
    %126 = vmatprep.subr.mxu0 0.0
    %127 = vmatpush1.msra.mxu0 0.0
    %128 = vmatprep.subr.mxu0 0.0
    %129 = vmatpush1.msra.mxu0 0.0
    %130 = vmatprep.subr.mxu0 0.0
    %131 = vmatpush1.msra.mxu0 0.0
    %132 = vmatprep.subr.mxu0 0.0
    %133 = vmatpush1.msra.mxu0 0.0
    %134 = vmatprep.subr.mxu0 0.0
    %135 = vmatpush1.msra.mxu0 0.0
    %136 = vmatprep.subr.mxu0 0.0
    %137 = vmatpush1.msra.mxu0 0.0
    %138 = vmatprep.subr.mxu0 0.0
    %139 = vmatpush1.msra.mxu0 0.0
    %140 = vmatprep.subr.mxu0 0.0
    %141 = vmatpush1.msra.mxu0 0.0
    %142 = vmatprep.subr.mxu0 0.0
    %143 = vmatpush1.msra.mxu0 0.0
    %144 = vmatprep.subr.mxu0 0.0
    %145 = vmatpush1.msra.mxu0 0.0
    %146 = vmatprep.subr.mxu0 0.0
    %147 = vmatpush1.msra.mxu0 0.0
    %148 = vmatprep.subr.mxu0 0.0
    %149 = vmatpush1.msra.mxu0 0.0
    %150 = vmatprep.subr.mxu0 0.0
    %151 = vmatpush1.msra.mxu0 0.0
    %152 = vmatprep.subr.mxu0 0.0
    %153 = vmatpush1.msra.mxu0 0.0
    %154 = vmatprep.subr.mxu0 0.0
    %155 = vmatpush1.msra.mxu0 0.0
    %156 = vmatprep.subr.mxu0 0.0
    %157 = vmatpush1.msra.mxu0 0.0
    %158 = vmatprep.subr.mxu0 0.0
    %159 = vmatpush1.msra.mxu0 0.0
    %160 = vmatprep.subr.mxu0 0.0
    %161 = vmatpush1.msra.mxu0 0.0
    %162 = vmatprep.subr.mxu0 0.0
    %163 = vmatpush1.msra.mxu0 0.0
    %164 = vmatprep.subr.mxu0 0.0
    %165 = vmatpush1.msra.mxu0 0.0
    %166 = vmatprep.subr.mxu0 0.0
    %167 = vmatpush1.msra.mxu0 0.0
    %168 = vmatprep.subr.mxu0 0.0
    %169 = vmatpush1.msra.mxu0 0.0
    %170 = vmatprep.mubr.f32.mxu0 0.0
    %171 = vmatmul.mubr.f32.gmra.mrb[0].mxu0 %v104
    %v172 = vpop.f32.mrb[0].mxu0
    %v173 = vadd.f32 0.0, %v172
    %v174 = vpop.f32.mrb[0].mxu0
    %175 = vdwg.mxu0
    %v176 = vadd.f32 %v97, %v173
    %v177 = vmul.f32 %v176, 0.5
    %v178 = vtanh.pop %v177
    %v179 = vmul.f32 %v178, 0.5
    %v180 = vadd.f32 %v179, 0.5
    %v181 = vtanh.pop %v176
    %183 = vrot.lane.b32.xlu0 %v94, 32
    %v184 = vpop.permute.xlu0 %183
    %v186 = vmul.f32 %v180, %v184
    %188 = vrot.lane.b32.xlu0 %v181, 64
    %v189 = vpop.permute.xlu0 %188
    %v191 = vmul.f32 %v180, %v189
    %193 = vrot.lane.b32.xlu0 %v191, 32
    %v194 = vpop.permute.xlu0 %193
    %v196 = vadd.f32 %v186, %v194
    %v197 = vtanh.pop %v196
    %199 = vrot.lane.b32.xlu0 %v197, 64
    %v200 = vpop.permute.xlu0 %199
    %v202 = vmul.f32 %v180, %v200
    %204 = vrot.lane.b32.xlu0 %v202, 32
    %v205 = vpop.permute.xlu0 %204
    %207 = vst.msk [vmem:[#allocation14] sm:$0xff] %vm102, %v205
    %s208 = scalar_lea.vmem [#allocation9], 56
    %v209 = vld [vmem:[%s208] sm:$0xff]
    %v210 = vld [vmem:[#allocation12] sm:$0xff]
    %v211 = vld [vmem:[#allocation12 + $0x8] sm:$0xff]
    %v212 = vld [vmem:[#allocation12 + $0x10] sm:$0xff]
    %v213 = vld [vmem:[#allocation12 + $0x18] sm:$0xff]
    %v215 = vsel %vm102, %v95, 0
    %217 = vmatprep.subr.mxu0 0.0
    %218 = vmatpush1.msra.mxu0 %v210
    %219 = vmatprep.subr.mxu0 0.0
    %220 = vmatpush1.msra.mxu0 %v211
    %221 = vmatprep.subr.mxu0 0.0
    %222 = vmatpush1.msra.mxu0 %v212
    %223 = vmatprep.subr.mxu0 0.0
    %224 = vmatpush1.msra.mxu0 %v213
    %225 = vmatprep.subr.mxu0 0.0
    %226 = vmatpush1.msra.mxu0 0.0
    %227 = vmatprep.subr.mxu0 0.0
    %228 = vmatpush1.msra.mxu0 0.0
    %229 = vmatprep.subr.mxu0 0.0
    %230 = vmatpush1.msra.mxu0 0.0
    %231 = vmatprep.subr.mxu0 0.0
    %232 = vmatpush1.msra.mxu0 0.0
    %233 = vmatprep.subr.mxu0 0.0
    %234 = vmatpush1.msra.mxu0 0.0
    %235 = vmatprep.subr.mxu0 0.0
    %236 = vmatpush1.msra.mxu0 0.0
    %237 = vmatprep.subr.mxu0 0.0
    %238 = vmatpush1.msra.mxu0 0.0
    %239 = vmatprep.subr.mxu0 0.0
    %240 = vmatpush1.msra.mxu0 0.0
    %241 = vmatprep.subr.mxu0 0.0
    %242 = vmatpush1.msra.mxu0 0.0
    %243 = vmatprep.subr.mxu0 0.0
    %244 = vmatpush1.msra.mxu0 0.0
    %245 = vmatprep.subr.mxu0 0.0
    %246 = vmatpush1.msra.mxu0 0.0
    %247 = vmatprep.subr.mxu0 0.0
    %248 = vmatpush1.msra.mxu0 0.0
    %249 = vmatprep.subr.mxu0 0.0
    %250 = vmatpush1.msra.mxu0 0.0
    %251 = vmatprep.subr.mxu0 0.0
    %252 = vmatpush1.msra.mxu0 0.0
    %253 = vmatprep.subr.mxu0 0.0
    %254 = vmatpush1.msra.mxu0 0.0
    %255 = vmatprep.subr.mxu0 0.0
    %256 = vmatpush1.msra.mxu0 0.0
    %257 = vmatprep.subr.mxu0 0.0
    %258 = vmatpush1.msra.mxu0 0.0
    %259 = vmatprep.subr.mxu0 0.0
    %260 = vmatpush1.msra.mxu0 0.0
    %261 = vmatprep.subr.mxu0 0.0
    %262 = vmatpush1.msra.mxu0 0.0
    %263 = vmatprep.subr.mxu0 0.0
    %264 = vmatpush1.msra.mxu0 0.0
    %265 = vmatprep.subr.mxu0 0.0
    %266 = vmatpush1.msra.mxu0 0.0
    %267 = vmatprep.subr.mxu0 0.0
    %268 = vmatpush1.msra.mxu0 0.0
    %269 = vmatprep.subr.mxu0 0.0
    %270 = vmatpush1.msra.mxu0 0.0
    %271 = vmatprep.subr.mxu0 0.0
    %272 = vmatpush1.msra.mxu0 0.0
    %273 = vmatprep.subr.mxu0 0.0
    %274 = vmatpush1.msra.mxu0 0.0
    %275 = vmatprep.subr.mxu0 0.0
    %276 = vmatpush1.msra.mxu0 0.0
    %277 = vmatprep.subr.mxu0 0.0
    %278 = vmatpush1.msra.mxu0 0.0
    %279 = vmatprep.subr.mxu0 0.0
    %280 = vmatpush1.msra.mxu0 0.0
    %281 = vmatprep.mubr.f32.mxu0 0.0
    %282 = vmatmul.mubr.f32.gmra.mrb[0].mxu0 %v215
    %v283 = vpop.f32.mrb[0].mxu0
    %v284 = vadd.f32 0.0, %v283
    %v285 = vpop.f32.mrb[0].mxu0
    %286 = vdwg.mxu0
    %v287 = vadd.f32 %v209, %v284
    %v288 = vmul.f32 %v287, 0.5
    %v289 = vtanh.pop %v288
    %v290 = vmul.f32 %v289, 0.5
    %v291 = vadd.f32 %v290, 0.5
    %v292 = vtanh.pop %v287
    %294 = vrot.lane.b32.xlu0 %v96, 32
    %v295 = vpop.permute.xlu0 %294
    %v297 = vmul.f32 %v291, %v295
    %299 = vrot.lane.b32.xlu0 %v292, 64
    %v300 = vpop.permute.xlu0 %299
    %v302 = vmul.f32 %v291, %v300
    %304 = vrot.lane.b32.xlu0 %v302, 32
    %v305 = vpop.permute.xlu0 %304
    %v307 = vadd.f32 %v297, %v305
    %v308 = vtanh.pop %v307
    %310 = vrot.lane.b32.xlu0 %v308, 64
    %v311 = vpop.permute.xlu0 %310
    %v313 = vmul.f32 %v291, %v311
    %315 = vrot.lane.b32.xlu0 %v313, 32
    %v316 = vpop.permute.xlu0 %315
    %s318 = scalar_lea.vmem [#allocation15], 56
    %319 = vst.msk [vmem:[%s318] sm:$0xff] %vm102, %v316
    %s320 = scalar_lea.vmem [#allocation6], 8
    %v321 = vld [vmem:[%s320] sm:$0xff]
    %v322 = vld [vmem:[#allocation11] sm:$0xff]
    %v323 = vld [vmem:[#allocation11 + $0x8] sm:$0xff]
    %v324 = vld [vmem:[#allocation11 + $0x10] sm:$0xff]
    %v325 = vld [vmem:[#allocation11 + $0x18] sm:$0xff]
    %v326 = vsel %vm102, %v205, 0
    %328 = vmatprep.subr.mxu0 0.0
    %329 = vmatpush1.msra.mxu0 %v322
    %330 = vmatprep.subr.mxu0 0.0
    %331 = vmatpush1.msra.mxu0 %v323
    %332 = vmatprep.subr.mxu0 0.0
    %333 = vmatpush1.msra.mxu0 %v324
    %334 = vmatprep.subr.mxu0 0.0
    %335 = vmatpush1.msra.mxu0 %v325
    %336 = vmatprep.subr.mxu0 0.0
    %337 = vmatpush1.msra.mxu0 0.0
    %338 = vmatprep.subr.mxu0 0.0
    %339 = vmatpush1.msra.mxu0 0.0
    %340 = vmatprep.subr.mxu0 0.0
    %341 = vmatpush1.msra.mxu0 0.0
    %342 = vmatprep.subr.mxu0 0.0
    %343 = vmatpush1.msra.mxu0 0.0
    %344 = vmatprep.subr.mxu0 0.0
    %345 = vmatpush1.msra.mxu0 0.0
    %346 = vmatprep.subr.mxu0 0.0
    %347 = vmatpush1.msra.mxu0 0.0
    %348 = vmatprep.subr.mxu0 0.0
    %349 = vmatpush1.msra.mxu0 0.0
    %350 = vmatprep.subr.mxu0 0.0
    %351 = vmatpush1.msra.mxu0 0.0
    %352 = vmatprep.subr.mxu0 0.0
    %353 = vmatpush1.msra.mxu0 0.0
    %354 = vmatprep.subr.mxu0 0.0
    %355 = vmatpush1.msra.mxu0 0.0
    %356 = vmatprep.subr.mxu0 0.0
    %357 = vmatpush1.msra.mxu0 0.0
    %358 = vmatprep.subr.mxu0 0.0
    %359 = vmatpush1.msra.mxu0 0.0
    %360 = vmatprep.subr.mxu0 0.0
    %361 = vmatpush1.msra.mxu0 0.0
    %362 = vmatprep.subr.mxu0 0.0
    %363 = vmatpush1.msra.mxu0 0.0
    %364 = vmatprep.subr.mxu0 0.0
    %365 = vmatpush1.msra.mxu0 0.0
    %366 = vmatprep.subr.mxu0 0.0
    %367 = vmatpush1.msra.mxu0 0.0
    %368 = vmatprep.subr.mxu0 0.0
    %369 = vmatpush1.msra.mxu0 0.0
    %370 = vmatprep.subr.mxu0 0.0
    %371 = vmatpush1.msra.mxu0 0.0
    %372 = vmatprep.subr.mxu0 0.0
    %373 = vmatpush1.msra.mxu0 0.0
    %374 = vmatprep.subr.mxu0 0.0
    %375 = vmatpush1.msra.mxu0 0.0
    %376 = vmatprep.subr.mxu0 0.0
    %377 = vmatpush1.msra.mxu0 0.0
    %378 = vmatprep.subr.mxu0 0.0
    %379 = vmatpush1.msra.mxu0 0.0
    %380 = vmatprep.subr.mxu0 0.0
    %381 = vmatpush1.msra.mxu0 0.0
    %382 = vmatprep.subr.mxu0 0.0
    %383 = vmatpush1.msra.mxu0 0.0
    %384 = vmatprep.subr.mxu0 0.0
    %385 = vmatpush1.msra.mxu0 0.0
    %386 = vmatprep.subr.mxu0 0.0
    %387 = vmatpush1.msra.mxu0 0.0
    %388 = vmatprep.subr.mxu0 0.0
    %389 = vmatpush1.msra.mxu0 0.0
    %390 = vmatprep.subr.mxu0 0.0
    %391 = vmatpush1.msra.mxu0 0.0
    %392 = vmatprep.mubr.f32.mxu0 0.0
    %393 = vmatmul.mubr.f32.gmra.mrb[0].mxu0 %v326
    %v394 = vpop.f32.mrb[0].mxu0
    %v395 = vadd.f32 0.0, %v394
    %v396 = vpop.f32.mrb[0].mxu0
    %397 = vdwg.mxu0
    %v398 = vadd.f32 %v321, %v395
    %v399 = vmul.f32 %v398, 0.5
    %v400 = vtanh.pop %v399
    %v401 = vmul.f32 %v400, 0.5
    %v402 = vadd.f32 %v401, 0.5
    %v403 = vtanh.pop %v398
    %v404 = vmul.f32 %v402, %v196
    %406 = vrot.lane.b32.xlu0 %v403, 64
    %v407 = vpop.permute.xlu0 %406
    %v409 = vmul.f32 %v402, %v407
    %411 = vrot.lane.b32.xlu0 %v409, 32
    %v412 = vpop.permute.xlu0 %411
    %v414 = vadd.f32 %v404, %v412
    %v415 = vtanh.pop %v414
    %417 = vrot.lane.b32.xlu0 %v415, 64
    %v418 = vpop.permute.xlu0 %417
    %v420 = vmul.f32 %v402, %v418
    %422 = vrot.lane.b32.xlu0 %v420, 32
    %v423 = vpop.permute.xlu0 %422
    %s425 = scalar_lea.vmem [#allocation14], 8
    %426 = vst.msk [vmem:[%s425] sm:$0xff] %vm102, %v423
    %s427 = scalar_lea.vmem [#allocation9], 48
    %v428 = vld [vmem:[%s427] sm:$0xff]
    %v429 = vld [vmem:[#allocation12] sm:$0xff]
    %v430 = vld [vmem:[#allocation12 + $0x8] sm:$0xff]
    %v431 = vld [vmem:[#allocation12 + $0x10] sm:$0xff]
    %v432 = vld [vmem:[#allocation12 + $0x18] sm:$0xff]
    %v433 = vsel %vm102, %v316, 0
    %435 = vmatprep.subr.mxu0 0.0
    %436 = vmatpush1.msra.mxu0 %v429
    %437 = vmatprep.subr.mxu0 0.0
    %438 = vmatpush1.msra.mxu0 %v430
    %439 = vmatprep.subr.mxu0 0.0
    %440 = vmatpush1.msra.mxu0 %v431
    %441 = vmatprep.subr.mxu0 0.0
    %442 = vmatpush1.msra.mxu0 %v432
    %443 = vmatprep.subr.mxu0 0.0
    %444 = vmatpush1.msra.mxu0 0.0
    %445 = vmatprep.subr.mxu0 0.0
    %446 = vmatpush1.msra.mxu0 0.0
    %447 = vmatprep.subr.mxu0 0.0
    %448 = vmatpush1.msra.mxu0 0.0
    %449 = vmatprep.subr.mxu0 0.0
    %450 = vmatpush1.msra.mxu0 0.0
    %451 = vmatprep.subr.mxu0 0.0
    %452 = vmatpush1.msra.mxu0 0.0
    %453 = vmatprep.subr.mxu0 0.0
    %454 = vmatpush1.msra.mxu0 0.0
    %455 = vmatprep.subr.mxu0 0.0
    %456 = vmatpush1.msra.mxu0 0.0
    %457 = vmatprep.subr.mxu0 0.0
    %458 = vmatpush1.msra.mxu0 0.0
    %459 = vmatprep.subr.mxu0 0.0
    %460 = vmatpush1.msra.mxu0 0.0
    %461 = vmatprep.subr.mxu0 0.0
    %462 = vmatpush1.msra.mxu0 0.0
    %463 = vmatprep.subr.mxu0 0.0
    %464 = vmatpush1.msra.mxu0 0.0
    %465 = vmatprep.subr.mxu0 0.0
    %466 = vmatpush1.msra.mxu0 0.0
    %467 = vmatprep.subr.mxu0 0.0
    %468 = vmatpush1.msra.mxu0 0.0
    %469 = vmatprep.subr.mxu0 0.0
    %470 = vmatpush1.msra.mxu0 0.0
    %471 = vmatprep.subr.mxu0 0.0
    %472 = vmatpush1.msra.mxu0 0.0
    %473 = vmatprep.subr.mxu0 0.0
    %474 = vmatpush1.msra.mxu0 0.0
    %475 = vmatprep.subr.mxu0 0.0
    %476 = vmatpush1.msra.mxu0 0.0
    %477 = vmatprep.subr.mxu0 0.0
    %478 = vmatpush1.msra.mxu0 0.0
    %479 = vmatprep.subr.mxu0 0.0
    %480 = vmatpush1.msra.mxu0 0.0
    %481 = vmatprep.subr.mxu0 0.0
    %482 = vmatpush1.msra.mxu0 0.0
    %483 = vmatprep.subr.mxu0 0.0
    %484 = vmatpush1.msra.mxu0 0.0
    %485 = vmatprep.subr.mxu0 0.0
    %486 = vmatpush1.msra.mxu0 0.0
    %487 = vmatprep.subr.mxu0 0.0
    %488 = vmatpush1.msra.mxu0 0.0
    %489 = vmatprep.subr.mxu0 0.0
    %490 = vmatpush1.msra.mxu0 0.0
    %491 = vmatprep.subr.mxu0 0.0
    %492 = vmatpush1.msra.mxu0 0.0
    %493 = vmatprep.subr.mxu0 0.0
    %494 = vmatpush1.msra.mxu0 0.0
    %495 = vmatprep.subr.mxu0 0.0
    %496 = vmatpush1.msra.mxu0 0.0
    %497 = vmatprep.subr.mxu0 0.0
    %498 = vmatpush1.msra.mxu0 0.0
    %499 = vmatprep.mubr.f32.mxu0 0.0
    %500 = vmatmul.mubr.f32.gmra.mrb[0].mxu0 %v433
    %v501 = vpop.f32.mrb[0].mxu0
    %v502 = vadd.f32 0.0, %v501
    %v503 = vpop.f32.mrb[0].mxu0
    %504 = vdwg.mxu0
    %v505 = vadd.f32 %v428, %v502
    %v506 = vmul.f32 %v505, 0.5
    %v507 = vtanh.pop %v506
    %v508 = vmul.f32 %v507, 0.5
    %v509 = vadd.f32 %v508, 0.5
    %v510 = vtanh.pop %v505
    %v511 = vmul.f32 %v509, %v307
    %513 = vrot.lane.b32.xlu0 %v510, 64
    %v514 = vpop.permute.xlu0 %513
    %v516 = vmul.f32 %v509, %v514
    %518 = vrot.lane.b32.xlu0 %v516, 32
    %v519 = vpop.permute.xlu0 %518
    %v521 = vadd.f32 %v511, %v519
    %v522 = vtanh.pop %v521
    %524 = vrot.lane.b32.xlu0 %v522, 64
    %v525 = vpop.permute.xlu0 %524
    %v527 = vmul.f32 %v509, %v525
    %529 = vrot.lane.b32.xlu0 %v527, 32
    %v530 = vpop.permute.xlu0 %529
    %s532 = scalar_lea.vmem [#allocation15], 48
    %533 = vst.msk [vmem:[%s532] sm:$0xff] %vm102, %v530
    %s534 = scalar_lea.vmem [#allocation6], 16
    %v535 = vld [vmem:[%s534] sm:$0xff]
    %v536 = vld [vmem:[#allocation11] sm:$0xff]
    %v537 = vld [vmem:[#allocation11 + $0x8] sm:$0xff]
    %v538 = vld [vmem:[#allocation11 + $0x10] sm:$0xff]
    %v539 = vld [vmem:[#allocation11 + $0x18] sm:$0xff]
    %v540 = vsel %vm102, %v423, 0
    %542 = vmatprep.subr.mxu0 0.0
    %543 = vmatpush1.msra.mxu0 %v536
    %544 = vmatprep.subr.mxu0 0.0
    %545 = vmatpush1.msra.mxu0 %v537
    %546 = vmatprep.subr.mxu0 0.0
    %547 = vmatpush1.msra.mxu0 %v538
    %548 = vmatprep.subr.mxu0 0.0
    %549 = vmatpush1.msra.mxu0 %v539
    %550 = vmatprep.subr.mxu0 0.0
    %551 = vmatpush1.msra.mxu0 0.0
    %552 = vmatprep.subr.mxu0 0.0
    %553 = vmatpush1.msra.mxu0 0.0
    %554 = vmatprep.subr.mxu0 0.0
    %555 = vmatpush1.msra.mxu0 0.0
    %556 = vmatprep.subr.mxu0 0.0
    %557 = vmatpush1.msra.mxu0 0.0
    %558 = vmatprep.subr.mxu0 0.0
    %559 = vmatpush1.msra.mxu0 0.0
    %560 = vmatprep.subr.mxu0 0.0
    %561 = vmatpush1.msra.mxu0 0.0
    %562 = vmatprep.subr.mxu0 0.0
    %563 = vmatpush1.msra.mxu0 0.0
    %564 = vmatprep.subr.mxu0 0.0
    %565 = vmatpush1.msra.mxu0 0.0
    %566 = vmatprep.subr.mxu0 0.0
    %567 = vmatpush1.msra.mxu0 0.0
    %568 = vmatprep.subr.mxu0 0.0
    %569 = vmatpush1.msra.mxu0 0.0
    %570 = vmatprep.subr.mxu0 0.0
    %571 = vmatpush1.msra.mxu0 0.0
    %572 = vmatprep.subr.mxu0 0.0
    %573 = vmatpush1.msra.mxu0 0.0
    %574 = vmatprep.subr.mxu0 0.0
    %575 = vmatpush1.msra.mxu0 0.0
    %576 = vmatprep.subr.mxu0 0.0
    %577 = vmatpush1.msra.mxu0 0.0
    %578 = vmatprep.subr.mxu0 0.0
    %579 = vmatpush1.msra.mxu0 0.0
    %580 = vmatprep.subr.mxu0 0.0
    %581 = vmatpush1.msra.mxu0 0.0
    %582 = vmatprep.subr.mxu0 0.0
    %583 = vmatpush1.msra.mxu0 0.0
    %584 = vmatprep.subr.mxu0 0.0
    %585 = vmatpush1.msra.mxu0 0.0
    %586 = vmatprep.subr.mxu0 0.0
    %587 = vmatpush1.msra.mxu0 0.0
    %588 = vmatprep.subr.mxu0 0.0
    %589 = vmatpush1.msra.mxu0 0.0
    %590 = vmatprep.subr.mxu0 0.0
    %591 = vmatpush1.msra.mxu0 0.0
    %592 = vmatprep.subr.mxu0 0.0
    %593 = vmatpush1.msra.mxu0 0.0
    %594 = vmatprep.subr.mxu0 0.0
    %595 = vmatpush1.msra.mxu0 0.0
    %596 = vmatprep.subr.mxu0 0.0
    %597 = vmatpush1.msra.mxu0 0.0
    %598 = vmatprep.subr.mxu0 0.0
    %599 = vmatpush1.msra.mxu0 0.0
    %600 = vmatprep.subr.mxu0 0.0
    %601 = vmatpush1.msra.mxu0 0.0
    %602 = vmatprep.subr.mxu0 0.0
    %603 = vmatpush1.msra.mxu0 0.0
    %604 = vmatprep.subr.mxu0 0.0
    %605 = vmatpush1.msra.mxu0 0.0
    %606 = vmatprep.mubr.f32.mxu0 0.0
    %607 = vmatmul.mubr.f32.gmra.mrb[0].mxu0 %v540
    %v608 = vpop.f32.mrb[0].mxu0
    %v609 = vadd.f32 0.0, %v608
    %v610 = vpop.f32.mrb[0].mxu0
    %611 = vdwg.mxu0
    %v612 = vadd.f32 %v535, %v609
    %v613 = vmul.f32 %v612, 0.5
    %v614 = vtanh.pop %v613
    %v615 = vmul.f32 %v614, 0.5
    %v616 = vadd.f32 %v615, 0.5
    %v617 = vtanh.pop %v612
    %v618 = vmul.f32 %v616, %v414
    %620 = vrot.lane.b32.xlu0 %v617, 64
    %v621 = vpop.permute.xlu0 %620
    %v623 = vmul.f32 %v616, %v621
    %625 = vrot.lane.b32.xlu0 %v623, 32
    %v626 = vpop.permute.xlu0 %625
    %v628 = vadd.f32 %v618, %v626
    %v629 = vtanh.pop %v628
    %631 = vrot.lane.b32.xlu0 %v629, 64
    %v632 = vpop.permute.xlu0 %631
    %v634 = vmul.f32 %v616, %v632
    %636 = vrot.lane.b32.xlu0 %v634, 32
    %v637 = vpop.permute.xlu0 %636
    %s639 = scalar_lea.vmem [#allocation14], 16
    %640 = vst.msk [vmem:[%s639] sm:$0xff] %vm102, %v637
    %s641 = scalar_lea.vmem [#allocation9], 40
    %v642 = vld [vmem:[%s641] sm:$0xff]
    %v643 = vld [vmem:[#allocation12] sm:$0xff]
    %v644 = vld [vmem:[#allocation12 + $0x8] sm:$0xff]
    %v645 = vld [vmem:[#allocation12 + $0x10] sm:$0xff]
    %v646 = vld [vmem:[#allocation12 + $0x18] sm:$0xff]
    %v647 = vsel %vm102, %v530, 0
    %649 = vmatprep.subr.mxu0 0.0
    %650 = vmatpush1.msra.mxu0 %v643
    %651 = vmatprep.subr.mxu0 0.0
    %652 = vmatpush1.msra.mxu0 %v644
    %653 = vmatprep.subr.mxu0 0.0
    %654 = vmatpush1.msra.mxu0 %v645
    %655 = vmatprep.subr.mxu0 0.0
    %656 = vmatpush1.msra.mxu0 %v646
    %657 = vmatprep.subr.mxu0 0.0
    %658 = vmatpush1.msra.mxu0 0.0
    %659 = vmatprep.subr.mxu0 0.0
    %660 = vmatpush1.msra.mxu0 0.0
    %661 = vmatprep.subr.mxu0 0.0
    %662 = vmatpush1.msra.mxu0 0.0
    %663 = vmatprep.subr.mxu0 0.0
    %664 = vmatpush1.msra.mxu0 0.0
    %665 = vmatprep.subr.mxu0 0.0
    %666 = vmatpush1.msra.mxu0 0.0
    %667 = vmatprep.subr.mxu0 0.0
    %668 = vmatpush1.msra.mxu0 0.0
    %669 = vmatprep.subr.mxu0 0.0
    %670 = vmatpush1.msra.mxu0 0.0
    %671 = vmatprep.subr.mxu0 0.0
    %672 = vmatpush1.msra.mxu0 0.0
    %673 = vmatprep.subr.mxu0 0.0
    %674 = vmatpush1.msra.mxu0 0.0
    %675 = vmatprep.subr.mxu0 0.0
    %676 = vmatpush1.msra.mxu0 0.0
    %677 = vmatprep.subr.mxu0 0.0
    %678 = vmatpush1.msra.mxu0 0.0
    %679 = vmatprep.subr.mxu0 0.0
    %680 = vmatpush1.msra.mxu0 0.0
    %681 = vmatprep.subr.mxu0 0.0
    %682 = vmatpush1.msra.mxu0 0.0
    %683 = vmatprep.subr.mxu0 0.0
    %684 = vmatpush1.msra.mxu0 0.0
    %685 = vmatprep.subr.mxu0 0.0
    %686 = vmatpush1.msra.mxu0 0.0
    %687 = vmatprep.subr.mxu0 0.0
    %688 = vmatpush1.msra.mxu0 0.0
    %689 = vmatprep.subr.mxu0 0.0
    %690 = vmatpush1.msra.mxu0 0.0
    %691 = vmatprep.subr.mxu0 0.0
    %692 = vmatpush1.msra.mxu0 0.0
    %693 = vmatprep.subr.mxu0 0.0
    %694 = vmatpush1.msra.mxu0 0.0
    %695 = vmatprep.subr.mxu0 0.0
    %696 = vmatpush1.msra.mxu0 0.0
    %697 = vmatprep.subr.mxu0 0.0
    %698 = vmatpush1.msra.mxu0 0.0
    %699 = vmatprep.subr.mxu0 0.0
    %700 = vmatpush1.msra.mxu0 0.0
    %701 = vmatprep.subr.mxu0 0.0
    %702 = vmatpush1.msra.mxu0 0.0
    %703 = vmatprep.subr.mxu0 0.0
    %704 = vmatpush1.msra.mxu0 0.0
    %705 = vmatprep.subr.mxu0 0.0
    %706 = vmatpush1.msra.mxu0 0.0
    %707 = vmatprep.subr.mxu0 0.0
    %708 = vmatpush1.msra.mxu0 0.0
    %709 = vmatprep.subr.mxu0 0.0
    %710 = vmatpush1.msra.mxu0 0.0
    %711 = vmatprep.subr.mxu0 0.0
    %712 = vmatpush1.msra.mxu0 0.0
    %713 = vmatprep.mubr.f32.mxu0 0.0
    %714 = vmatmul.mubr.f32.gmra.mrb[0].mxu0 %v647
    %v715 = vpop.f32.mrb[0].mxu0
    %v716 = vadd.f32 0.0, %v715
    %v717 = vpop.f32.mrb[0].mxu0
    %718 = vdwg.mxu0
    %v719 = vadd.f32 %v642, %v716
    %v720 = vmul.f32 %v719, 0.5
    %v721 = vtanh.pop %v720
    %v722 = vmul.f32 %v721, 0.5
    %v723 = vadd.f32 %v722, 0.5
    %v724 = vtanh.pop %v719
    %v725 = vmul.f32 %v723, %v521
    %727 = vrot.lane.b32.xlu0 %v724, 64
    %v728 = vpop.permute.xlu0 %727
    %v730 = vmul.f32 %v723, %v728
    %732 = vrot.lane.b32.xlu0 %v730, 32
    %v733 = vpop.permute.xlu0 %732
    %v735 = vadd.f32 %v725, %v733
    %v736 = vtanh.pop %v735
    %738 = vrot.lane.b32.xlu0 %v736, 64
    %v739 = vpop.permute.xlu0 %738
    %v741 = vmul.f32 %v723, %v739
    %743 = vrot.lane.b32.xlu0 %v741, 32
    %v744 = vpop.permute.xlu0 %743
    %s746 = scalar_lea.vmem [#allocation15], 40
    %747 = vst.msk [vmem:[%s746] sm:$0xff] %vm102, %v744
    %s748 = scalar_lea.vmem [#allocation6], 24
    %v749 = vld [vmem:[%s748] sm:$0xff]
    %v750 = vld [vmem:[#allocation11] sm:$0xff]
    %v751 = vld [vmem:[#allocation11 + $0x8] sm:$0xff]
    %v752 = vld [vmem:[#allocation11 + $0x10] sm:$0xff]
    %v753 = vld [vmem:[#allocation11 + $0x18] sm:$0xff]
    %v754 = vsel %vm102, %v637, 0
    %756 = vmatprep.subr.mxu0 0.0
    %757 = vmatpush1.msra.mxu0 %v750
    %758 = vmatprep.subr.mxu0 0.0
    %759 = vmatpush1.msra.mxu0 %v751
    %760 = vmatprep.subr.mxu0 0.0
    %761 = vmatpush1.msra.mxu0 %v752
    %762 = vmatprep.subr.mxu0 0.0
    %763 = vmatpush1.msra.mxu0 %v753
    %764 = vmatprep.subr.mxu0 0.0
    %765 = vmatpush1.msra.mxu0 0.0
    %766 = vmatprep.subr.mxu0 0.0
    %767 = vmatpush1.msra.mxu0 0.0
    %768 = vmatprep.subr.mxu0 0.0
    %769 = vmatpush1.msra.mxu0 0.0
    %770 = vmatprep.subr.mxu0 0.0
    %771 = vmatpush1.msra.mxu0 0.0
    %772 = vmatprep.subr.mxu0 0.0
    %773 = vmatpush1.msra.mxu0 0.0
    %774 = vmatprep.subr.mxu0 0.0
    %775 = vmatpush1.msra.mxu0 0.0
    %776 = vmatprep.subr.mxu0 0.0
    %777 = vmatpush1.msra.mxu0 0.0
    %778 = vmatprep.subr.mxu0 0.0
    %779 = vmatpush1.msra.mxu0 0.0
    %780 = vmatprep.subr.mxu0 0.0
    %781 = vmatpush1.msra.mxu0 0.0
    %782 = vmatprep.subr.mxu0 0.0
    %783 = vmatpush1.msra.mxu0 0.0
    %784 = vmatprep.subr.mxu0 0.0
    %785 = vmatpush1.msra.mxu0 0.0
    %786 = vmatprep.subr.mxu0 0.0
    %787 = vmatpush1.msra.mxu0 0.0
    %788 = vmatprep.subr.mxu0 0.0
    %789 = vmatpush1.msra.mxu0 0.0
    %790 = vmatprep.subr.mxu0 0.0
    %791 = vmatpush1.msra.mxu0 0.0
    %792 = vmatprep.subr.mxu0 0.0
    %793 = vmatpush1.msra.mxu0 0.0
    %794 = vmatprep.subr.mxu0 0.0
    %795 = vmatpush1.msra.mxu0 0.0
    %796 = vmatprep.subr.mxu0 0.0
    %797 = vmatpush1.msra.mxu0 0.0
    %798 = vmatprep.subr.mxu0 0.0
    %799 = vmatpush1.msra.mxu0 0.0
    %800 = vmatprep.subr.mxu0 0.0
    %801 = vmatpush1.msra.mxu0 0.0
    %802 = vmatprep.subr.mxu0 0.0
    %803 = vmatpush1.msra.mxu0 0.0
    %804 = vmatprep.subr.mxu0 0.0
    %805 = vmatpush1.msra.mxu0 0.0
    %806 = vmatprep.subr.mxu0 0.0
    %807 = vmatpush1.msra.mxu0 0.0
    %808 = vmatprep.subr.mxu0 0.0
    %809 = vmatpush1.msra.mxu0 0.0
    %810 = vmatprep.subr.mxu0 0.0
    %811 = vmatpush1.msra.mxu0 0.0
    %812 = vmatprep.subr.mxu0 0.0
    %813 = vmatpush1.msra.mxu0 0.0
    %814 = vmatprep.subr.mxu0 0.0
    %815 = vmatpush1.msra.mxu0 0.0
    %816 = vmatprep.subr.mxu0 0.0
    %817 = vmatpush1.msra.mxu0 0.0
    %818 = vmatprep.subr.mxu0 0.0
    %819 = vmatpush1.msra.mxu0 0.0
    %820 = vmatprep.mubr.f32.mxu0 0.0
    %821 = vmatmul.mubr.f32.gmra.mrb[0].mxu0 %v754
    %v822 = vpop.f32.mrb[0].mxu0
    %v823 = vadd.f32 0.0, %v822
    %v824 = vpop.f32.mrb[0].mxu0
    %825 = vdwg.mxu0
    %v826 = vadd.f32 %v749, %v823
    %v827 = vmul.f32 %v826, 0.5
    %v828 = vtanh.pop %v827
    %v829 = vmul.f32 %v828, 0.5
    %v830 = vadd.f32 %v829, 0.5
    %v831 = vtanh.pop %v826
    %v832 = vmul.f32 %v830, %v628
    %834 = vrot.lane.b32.xlu0 %v831, 64
    %v835 = vpop.permute.xlu0 %834
    %v837 = vmul.f32 %v830, %v835
    %839 = vrot.lane.b32.xlu0 %v837, 32
    %v840 = vpop.permute.xlu0 %839
    %v842 = vadd.f32 %v832, %v840
    %v843 = vtanh.pop %v842
    %845 = vrot.lane.b32.xlu0 %v843, 64
    %v846 = vpop.permute.xlu0 %845
    %v848 = vmul.f32 %v830, %v846
    %850 = vrot.lane.b32.xlu0 %v848, 32
    %v851 = vpop.permute.xlu0 %850
    %s853 = scalar_lea.vmem [#allocation14], 24
    %854 = vst.msk [vmem:[%s853] sm:$0xff] %vm102, %v851
    %s855 = scalar_lea.vmem [#allocation9], 32
    %v856 = vld [vmem:[%s855] sm:$0xff]
    %v857 = vld [vmem:[#allocation12] sm:$0xff]
    %v858 = vld [vmem:[#allocation12 + $0x8] sm:$0xff]
    %v859 = vld [vmem:[#allocation12 + $0x10] sm:$0xff]
    %v860 = vld [vmem:[#allocation12 + $0x18] sm:$0xff]
    %v861 = vsel %vm102, %v744, 0
    %863 = vmatprep.subr.mxu0 0.0
    %864 = vmatpush1.msra.mxu0 %v857
    %865 = vmatprep.subr.mxu0 0.0
    %866 = vmatpush1.msra.mxu0 %v858
    %867 = vmatprep.subr.mxu0 0.0
    %868 = vmatpush1.msra.mxu0 %v859
    %869 = vmatprep.subr.mxu0 0.0
    %870 = vmatpush1.msra.mxu0 %v860
    %871 = vmatprep.subr.mxu0 0.0
    %872 = vmatpush1.msra.mxu0 0.0
    %873 = vmatprep.subr.mxu0 0.0
    %874 = vmatpush1.msra.mxu0 0.0
    %875 = vmatprep.subr.mxu0 0.0
    %876 = vmatpush1.msra.mxu0 0.0
    %877 = vmatprep.subr.mxu0 0.0
    %878 = vmatpush1.msra.mxu0 0.0
    %879 = vmatprep.subr.mxu0 0.0
    %880 = vmatpush1.msra.mxu0 0.0
    %881 = vmatprep.subr.mxu0 0.0
    %882 = vmatpush1.msra.mxu0 0.0
    %883 = vmatprep.subr.mxu0 0.0
    %884 = vmatpush1.msra.mxu0 0.0
    %885 = vmatprep.subr.mxu0 0.0
    %886 = vmatpush1.msra.mxu0 0.0
    %887 = vmatprep.subr.mxu0 0.0
    %888 = vmatpush1.msra.mxu0 0.0
    %889 = vmatprep.subr.mxu0 0.0
    %890 = vmatpush1.msra.mxu0 0.0
    %891 = vmatprep.subr.mxu0 0.0
    %892 = vmatpush1.msra.mxu0 0.0
    %893 = vmatprep.subr.mxu0 0.0
    %894 = vmatpush1.msra.mxu0 0.0
    %895 = vmatprep.subr.mxu0 0.0
    %896 = vmatpush1.msra.mxu0 0.0
    %897 = vmatprep.subr.mxu0 0.0
    %898 = vmatpush1.msra.mxu0 0.0
    %899 = vmatprep.subr.mxu0 0.0
    %900 = vmatpush1.msra.mxu0 0.0
    %901 = vmatprep.subr.mxu0 0.0
    %902 = vmatpush1.msra.mxu0 0.0
    %903 = vmatprep.subr.mxu0 0.0
    %904 = vmatpush1.msra.mxu0 0.0
    %905 = vmatprep.subr.mxu0 0.0
    %906 = vmatpush1.msra.mxu0 0.0
    %907 = vmatprep.subr.mxu0 0.0
    %908 = vmatpush1.msra.mxu0 0.0
    %909 = vmatprep.subr.mxu0 0.0
    %910 = vmatpush1.msra.mxu0 0.0
    %911 = vmatprep.subr.mxu0 0.0
    %912 = vmatpush1.msra.mxu0 0.0
    %913 = vmatprep.subr.mxu0 0.0
    %914 = vmatpush1.msra.mxu0 0.0
    %915 = vmatprep.subr.mxu0 0.0
    %916 = vmatpush1.msra.mxu0 0.0
    %917 = vmatprep.subr.mxu0 0.0
    %918 = vmatpush1.msra.mxu0 0.0
    %919 = vmatprep.subr.mxu0 0.0
    %920 = vmatpush1.msra.mxu0 0.0
    %921 = vmatprep.subr.mxu0 0.0
    %922 = vmatpush1.msra.mxu0 0.0
    %923 = vmatprep.subr.mxu0 0.0
    %924 = vmatpush1.msra.mxu0 0.0
    %925 = vmatprep.subr.mxu0 0.0
    %926 = vmatpush1.msra.mxu0 0.0
    %927 = vmatprep.mubr.f32.mxu0 0.0
    %928 = vmatmul.mubr.f32.gmra.mrb[0].mxu0 %v861
    %v929 = vpop.f32.mrb[0].mxu0
    %v930 = vadd.f32 0.0, %v929
    %v931 = vpop.f32.mrb[0].mxu0
    %932 = vdwg.mxu0
    %v933 = vadd.f32 %v856, %v930
    %v934 = vmul.f32 %v933, 0.5
    %v935 = vtanh.pop %v934
    %v936 = vmul.f32 %v935, 0.5
    %v937 = vadd.f32 %v936, 0.5
    %v938 = vtanh.pop %v933
    %v939 = vmul.f32 %v937, %v735
    %941 = vrot.lane.b32.xlu0 %v938, 64
    %v942 = vpop.permute.xlu0 %941
    %v944 = vmul.f32 %v937, %v942
    %946 = vrot.lane.b32.xlu0 %v944, 32
    %v947 = vpop.permute.xlu0 %946
    %v949 = vadd.f32 %v939, %v947
    %v950 = vtanh.pop %v949
    %952 = vrot.lane.b32.xlu0 %v950, 64
    %v953 = vpop.permute.xlu0 %952
    %v955 = vmul.f32 %v937, %v953
    %957 = vrot.lane.b32.xlu0 %v955, 32
    %v958 = vpop.permute.xlu0 %957
    %s960 = scalar_lea.vmem [#allocation15], 32
    %961 = vst.msk [vmem:[%s960] sm:$0xff] %vm102, %v958
    %s962 = scalar_lea.vmem [#allocation6], 32
    %v963 = vld [vmem:[%s962] sm:$0xff]
    %v964 = vld [vmem:[#allocation11] sm:$0xff]
    %v965 = vld [vmem:[#allocation11 + $0x8] sm:$0xff]
    %v966 = vld [vmem:[#allocation11 + $0x10] sm:$0xff]
    %v967 = vld [vmem:[#allocation11 + $0x18] sm:$0xff]
    %v968 = vsel %vm102, %v851, 0
    %970 = vmatprep.subr.mxu0 0.0
    %971 = vmatpush1.msra.mxu0 %v964
    %972 = vmatprep.subr.mxu0 0.0
    %973 = vmatpush1.msra.mxu0 %v965
    %974 = vmatprep.subr.mxu0 0.0
    %975 = vmatpush1.msra.mxu0 %v966
    %976 = vmatprep.subr.mxu0 0.0
    %977 = vmatpush1.msra.mxu0 %v967
    %978 = vmatprep.subr.mxu0 0.0
    %979 = vmatpush1.msra.mxu0 0.0
    %980 = vmatprep.subr.mxu0 0.0
    %981 = vmatpush1.msra.mxu0 0.0
    %982 = vmatprep.subr.mxu0 0.0
    %983 = vmatpush1.msra.mxu0 0.0
    %984 = vmatprep.subr.mxu0 0.0
    %985 = vmatpush1.msra.mxu0 0.0
    %986 = vmatprep.subr.mxu0 0.0
    %987 = vmatpush1.msra.mxu0 0.0
    %988 = vmatprep.subr.mxu0 0.0
    %989 = vmatpush1.msra.mxu0 0.0
    %990 = vmatprep.subr.mxu0 0.0
    %991 = vmatpush1.msra.mxu0 0.0
    %992 = vmatprep.subr.mxu0 0.0
    %993 = vmatpush1.msra.mxu0 0.0
    %994 = vmatprep.subr.mxu0 0.0
    %995 = vmatpush1.msra.mxu0 0.0
    %996 = vmatprep.subr.mxu0 0.0
    %997 = vmatpush1.msra.mxu0 0.0
    %998 = vmatprep.subr.mxu0 0.0
    %999 = vmatpush1.msra.mxu0 0.0
    %1000 = vmatprep.subr.mxu0 0.0
    %1001 = vmatpush1.msra.mxu0 0.0
    %1002 = vmatprep.subr.mxu0 0.0
    %1003 = vmatpush1.msra.mxu0 0.0
    %1004 = vmatprep.subr.mxu0 0.0
    %1005 = vmatpush1.msra.mxu0 0.0
    %1006 = vmatprep.subr.mxu0 0.0
    %1007 = vmatpush1.msra.mxu0 0.0
    %1008 = vmatprep.subr.mxu0 0.0
    %1009 = vmatpush1.msra.mxu0 0.0
    %1010 = vmatprep.subr.mxu0 0.0
    %1011 = vmatpush1.msra.mxu0 0.0
    %1012 = vmatprep.subr.mxu0 0.0
    %1013 = vmatpush1.msra.mxu0 0.0
    %1014 = vmatprep.subr.mxu0 0.0
    %1015 = vmatpush1.msra.mxu0 0.0
    %1016 = vmatprep.subr.mxu0 0.0
    %1017 = vmatpush1.msra.mxu0 0.0
    %1018 = vmatprep.subr.mxu0 0.0
    %1019 = vmatpush1.msra.mxu0 0.0
    %1020 = vmatprep.subr.mxu0 0.0
    %1021 = vmatpush1.msra.mxu0 0.0
    %1022 = vmatprep.subr.mxu0 0.0
    %1023 = vmatpush1.msra.mxu0 0.0
    %1024 = vmatprep.subr.mxu0 0.0
    %1025 = vmatpush1.msra.mxu0 0.0
    %1026 = vmatprep.subr.mxu0 0.0
    %1027 = vmatpush1.msra.mxu0 0.0
    %1028 = vmatprep.subr.mxu0 0.0
    %1029 = vmatpush1.msra.mxu0 0.0
    %1030 = vmatprep.subr.mxu0 0.0
    %1031 = vmatpush1.msra.mxu0 0.0
    %1032 = vmatprep.subr.mxu0 0.0
    %1033 = vmatpush1.msra.mxu0 0.0
    %1034 = vmatprep.mubr.f32.mxu0 0.0
    %1035 = vmatmul.mubr.f32.gmra.mrb[0].mxu0 %v968
    %v1036 = vpop.f32.mrb[0].mxu0
    %v1037 = vadd.f32 0.0, %v1036
    %v1038 = vpop.f32.mrb[0].mxu0
    %1039 = vdwg.mxu0
    %v1040 = vadd.f32 %v963, %v1037
    %v1041 = vmul.f32 %v1040, 0.5
    %v1042 = vtanh.pop %v1041
    %v1043 = vmul.f32 %v1042, 0.5
    %v1044 = vadd.f32 %v1043, 0.5
    %v1045 = vtanh.pop %v1040
    %v1046 = vmul.f32 %v1044, %v842
    %1048 = vrot.lane.b32.xlu0 %v1045, 64
    %v1049 = vpop.permute.xlu0 %1048
    %v1051 = vmul.f32 %v1044, %v1049
    %1053 = vrot.lane.b32.xlu0 %v1051, 32
    %v1054 = vpop.permute.xlu0 %1053
    %v1056 = vadd.f32 %v1046, %v1054
    %v1057 = vtanh.pop %v1056
    %1059 = vrot.lane.b32.xlu0 %v1057, 64
    %v1060 = vpop.permute.xlu0 %1059
    %v1062 = vmul.f32 %v1044, %v1060
    %1064 = vrot.lane.b32.xlu0 %v1062, 32
    %v1065 = vpop.permute.xlu0 %1064
    %s1067 = scalar_lea.vmem [#allocation14], 32
    %1068 = vst.msk [vmem:[%s1067] sm:$0xff] %vm102, %v1065
    %s1069 = scalar_lea.vmem [#allocation9], 24
    %v1070 = vld [vmem:[%s1069] sm:$0xff]
    %v1071 = vld [vmem:[#allocation12] sm:$0xff]
    %v1072 = vld [vmem:[#allocation12 + $0x8] sm:$0xff]
    %v1073 = vld [vmem:[#allocation12 + $0x10] sm:$0xff]
    %v1074 = vld [vmem:[#allocation12 + $0x18] sm:$0xff]
    %v1075 = vsel %vm102, %v958, 0
    %1077 = vmatprep.subr.mxu0 0.0
    %1078 = vmatpush1.msra.mxu0 %v1071
    %1079 = vmatprep.subr.mxu0 0.0
    %1080 = vmatpush1.msra.mxu0 %v1072
    %1081 = vmatprep.subr.mxu0 0.0
    %1082 = vmatpush1.msra.mxu0 %v1073
    %1083 = vmatprep.subr.mxu0 0.0
    %1084 = vmatpush1.msra.mxu0 %v1074
    %1085 = vmatprep.subr.mxu0 0.0
    %1086 = vmatpush1.msra.mxu0 0.0
    %1087 = vmatprep.subr.mxu0 0.0
    %1088 = vmatpush1.msra.mxu0 0.0
    %1089 = vmatprep.subr.mxu0 0.0
    %1090 = vmatpush1.msra.mxu0 0.0
    %1091 = vmatprep.subr.mxu0 0.0
    %1092 = vmatpush1.msra.mxu0 0.0
    %1093 = vmatprep.subr.mxu0 0.0
    %1094 = vmatpush1.msra.mxu0 0.0
    %1095 = vmatprep.subr.mxu0 0.0
    %1096 = vmatpush1.msra.mxu0 0.0
    %1097 = vmatprep.subr.mxu0 0.0
    %1098 = vmatpush1.msra.mxu0 0.0
    %1099 = vmatprep.subr.mxu0 0.0
    %1100 = vmatpush1.msra.mxu0 0.0
    %1101 = vmatprep.subr.mxu0 0.0
    %1102 = vmatpush1.msra.mxu0 0.0
    %1103 = vmatprep.subr.mxu0 0.0
    %1104 = vmatpush1.msra.mxu0 0.0
    %1105 = vmatprep.subr.mxu0 0.0
    %1106 = vmatpush1.msra.mxu0 0.0
    %1107 = vmatprep.subr.mxu0 0.0
    %1108 = vmatpush1.msra.mxu0 0.0
    %1109 = vmatprep.subr.mxu0 0.0
    %1110 = vmatpush1.msra.mxu0 0.0
    %1111 = vmatprep.subr.mxu0 0.0
    %1112 = vmatpush1.msra.mxu0 0.0
    %1113 = vmatprep.subr.mxu0 0.0
    %1114 = vmatpush1.msra.mxu0 0.0
    %1115 = vmatprep.subr.mxu0 0.0
    %1116 = vmatpush1.msra.mxu0 0.0
    %1117 = vmatprep.subr.mxu0 0.0
    %1118 = vmatpush1.msra.mxu0 0.0
    %1119 = vmatprep.subr.mxu0 0.0
    %1120 = vmatpush1.msra.mxu0 0.0
    %1121 = vmatprep.subr.mxu0 0.0
    %1122 = vmatpush1.msra.mxu0 0.0
    %1123 = vmatprep.subr.mxu0 0.0
    %1124 = vmatpush1.msra.mxu0 0.0
    %1125 = vmatprep.subr.mxu0 0.0
    %1126 = vmatpush1.msra.mxu0 0.0
    %1127 = vmatprep.subr.mxu0 0.0
    %1128 = vmatpush1.msra.mxu0 0.0
    %1129 = vmatprep.subr.mxu0 0.0
    %1130 = vmatpush1.msra.mxu0 0.0
    %1131 = vmatprep.subr.mxu0 0.0
    %1132 = vmatpush1.msra.mxu0 0.0
    %1133 = vmatprep.subr.mxu0 0.0
    %1134 = vmatpush1.msra.mxu0 0.0
    %1135 = vmatprep.subr.mxu0 0.0
    %1136 = vmatpush1.msra.mxu0 0.0
    %1137 = vmatprep.subr.mxu0 0.0
    %1138 = vmatpush1.msra.mxu0 0.0
    %1139 = vmatprep.subr.mxu0 0.0
    %1140 = vmatpush1.msra.mxu0 0.0
    %1141 = vmatprep.mubr.f32.mxu0 0.0
    %1142 = vmatmul.mubr.f32.gmra.mrb[0].mxu0 %v1075
    %v1143 = vpop.f32.mrb[0].mxu0
    %v1144 = vadd.f32 0.0, %v1143
    %v1145 = vpop.f32.mrb[0].mxu0
    %1146 = vdwg.mxu0
    %v1147 = vadd.f32 %v1070, %v1144
    %v1148 = vmul.f32 %v1147, 0.5
    %v1149 = vtanh.pop %v1148
    %v1150 = vmul.f32 %v1149, 0.5
    %v1151 = vadd.f32 %v1150, 0.5
    %v1152 = vtanh.pop %v1147
    %v1153 = vmul.f32 %v1151, %v949
    %1155 = vrot.lane.b32.xlu0 %v1152, 64
    %v1156 = vpop.permute.xlu0 %1155
    %v1158 = vmul.f32 %v1151, %v1156
    %1160 = vrot.lane.b32.xlu0 %v1158, 32
    %v1161 = vpop.permute.xlu0 %1160
    %v1163 = vadd.f32 %v1153, %v1161
    %v1164 = vtanh.pop %v1163
    %1166 = vrot.lane.b32.xlu0 %v1164, 64
    %v1167 = vpop.permute.xlu0 %1166
    %v1169 = vmul.f32 %v1151, %v1167
    %1171 = vrot.lane.b32.xlu0 %v1169, 32
    %v1172 = vpop.permute.xlu0 %1171
    %s1174 = scalar_lea.vmem [#allocation15], 24
    %1175 = vst.msk [vmem:[%s1174] sm:$0xff] %vm102, %v1172
    %s1176 = scalar_lea.vmem [#allocation6], 40
    %v1177 = vld [vmem:[%s1176] sm:$0xff]
    %v1178 = vld [vmem:[#allocation11] sm:$0xff]
    %v1179 = vld [vmem:[#allocation11 + $0x8] sm:$0xff]
    %v1180 = vld [vmem:[#allocation11 + $0x10] sm:$0xff]
    %v1181 = vld [vmem:[#allocation11 + $0x18] sm:$0xff]
    %v1182 = vsel %vm102, %v1065, 0
    %1184 = vmatprep.subr.mxu0 0.0
    %1185 = vmatpush1.msra.mxu0 %v1178
    %1186 = vmatprep.subr.mxu0 0.0
    %1187 = vmatpush1.msra.mxu0 %v1179
    %1188 = vmatprep.subr.mxu0 0.0
    %1189 = vmatpush1.msra.mxu0 %v1180
    %1190 = vmatprep.subr.mxu0 0.0
    %1191 = vmatpush1.msra.mxu0 %v1181
    %1192 = vmatprep.subr.mxu0 0.0
    %1193 = vmatpush1.msra.mxu0 0.0
    %1194 = vmatprep.subr.mxu0 0.0
    %1195 = vmatpush1.msra.mxu0 0.0
    %1196 = vmatprep.subr.mxu0 0.0
    %1197 = vmatpush1.msra.mxu0 0.0
    %1198 = vmatprep.subr.mxu0 0.0
    %1199 = vmatpush1.msra.mxu0 0.0
    %1200 = vmatprep.subr.mxu0 0.0
    %1201 = vmatpush1.msra.mxu0 0.0
    %1202 = vmatprep.subr.mxu0 0.0
    %1203 = vmatpush1.msra.mxu0 0.0
    %1204 = vmatprep.subr.mxu0 0.0
    %1205 = vmatpush1.msra.mxu0 0.0
    %1206 = vmatprep.subr.mxu0 0.0
    %1207 = vmatpush1.msra.mxu0 0.0
    %1208 = vmatprep.subr.mxu0 0.0
    %1209 = vmatpush1.msra.mxu0 0.0
    %1210 = vmatprep.subr.mxu0 0.0
    %1211 = vmatpush1.msra.mxu0 0.0
    %1212 = vmatprep.subr.mxu0 0.0
    %1213 = vmatpush1.msra.mxu0 0.0
    %1214 = vmatprep.subr.mxu0 0.0
    %1215 = vmatpush1.msra.mxu0 0.0
    %1216 = vmatprep.subr.mxu0 0.0
    %1217 = vmatpush1.msra.mxu0 0.0
    %1218 = vmatprep.subr.mxu0 0.0
    %1219 = vmatpush1.msra.mxu0 0.0
    %1220 = vmatprep.subr.mxu0 0.0
    %1221 = vmatpush1.msra.mxu0 0.0
    %1222 = vmatprep.subr.mxu0 0.0
    %1223 = vmatpush1.msra.mxu0 0.0
    %1224 = vmatprep.subr.mxu0 0.0
    %1225 = vmatpush1.msra.mxu0 0.0
    %1226 = vmatprep.subr.mxu0 0.0
    %1227 = vmatpush1.msra.mxu0 0.0
    %1228 = vmatprep.subr.mxu0 0.0
    %1229 = vmatpush1.msra.mxu0 0.0
    %1230 = vmatprep.subr.mxu0 0.0
    %1231 = vmatpush1.msra.mxu0 0.0
    %1232 = vmatprep.subr.mxu0 0.0
    %1233 = vmatpush1.msra.mxu0 0.0
    %1234 = vmatprep.subr.mxu0 0.0
    %1235 = vmatpush1.msra.mxu0 0.0
    %1236 = vmatprep.subr.mxu0 0.0
    %1237 = vmatpush1.msra.mxu0 0.0
    %1238 = vmatprep.subr.mxu0 0.0
    %1239 = vmatpush1.msra.mxu0 0.0
    %1240 = vmatprep.subr.mxu0 0.0
    %1241 = vmatpush1.msra.mxu0 0.0
    %1242 = vmatprep.subr.mxu0 0.0
    %1243 = vmatpush1.msra.mxu0 0.0
    %1244 = vmatprep.subr.mxu0 0.0
    %1245 = vmatpush1.msra.mxu0 0.0
    %1246 = vmatprep.subr.mxu0 0.0
    %1247 = vmatpush1.msra.mxu0 0.0
    %1248 = vmatprep.mubr.f32.mxu0 0.0
    %1249 = vmatmul.mubr.f32.gmra.mrb[0].mxu0 %v1182
    %v1250 = vpop.f32.mrb[0].mxu0
    %v1251 = vadd.f32 0.0, %v1250
    %v1252 = vpop.f32.mrb[0].mxu0
    %1253 = vdwg.mxu0
    %v1254 = vadd.f32 %v1177, %v1251
    %v1255 = vmul.f32 %v1254, 0.5
    %v1256 = vtanh.pop %v1255
    %v1257 = vmul.f32 %v1256, 0.5
    %v1258 = vadd.f32 %v1257, 0.5
    %v1259 = vtanh.pop %v1254
    %v1260 = vmul.f32 %v1258, %v1056
    %1262 = vrot.lane.b32.xlu0 %v1259, 64
    %v1263 = vpop.permute.xlu0 %1262
    %v1265 = vmul.f32 %v1258, %v1263
    %1267 = vrot.lane.b32.xlu0 %v1265, 32
    %v1268 = vpop.permute.xlu0 %1267
    %v1270 = vadd.f32 %v1260, %v1268
    %v1271 = vtanh.pop %v1270
    %1273 = vrot.lane.b32.xlu0 %v1271, 64
    %v1274 = vpop.permute.xlu0 %1273
    %v1276 = vmul.f32 %v1258, %v1274
    %1278 = vrot.lane.b32.xlu0 %v1276, 32
    %v1279 = vpop.permute.xlu0 %1278
    %s1281 = scalar_lea.vmem [#allocation14], 40
    %1282 = vst.msk [vmem:[%s1281] sm:$0xff] %vm102, %v1279
    %s1283 = scalar_lea.vmem [#allocation9], 16
    %v1284 = vld [vmem:[%s1283] sm:$0xff]
    %v1285 = vld [vmem:[#allocation12] sm:$0xff]
    %v1286 = vld [vmem:[#allocation12 + $0x8] sm:$0xff]
    %v1287 = vld [vmem:[#allocation12 + $0x10] sm:$0xff]
    %v1288 = vld [vmem:[#allocation12 + $0x18] sm:$0xff]
    %v1289 = vsel %vm102, %v1172, 0
    %1291 = vmatprep.subr.mxu0 0.0
    %1292 = vmatpush1.msra.mxu0 %v1285
    %1293 = vmatprep.subr.mxu0 0.0
    %1294 = vmatpush1.msra.mxu0 %v1286
    %1295 = vmatprep.subr.mxu0 0.0
    %1296 = vmatpush1.msra.mxu0 %v1287
    %1297 = vmatprep.subr.mxu0 0.0
    %1298 = vmatpush1.msra.mxu0 %v1288
    %1299 = vmatprep.subr.mxu0 0.0
    %1300 = vmatpush1.msra.mxu0 0.0
    %1301 = vmatprep.subr.mxu0 0.0
    %1302 = vmatpush1.msra.mxu0 0.0
    %1303 = vmatprep.subr.mxu0 0.0
    %1304 = vmatpush1.msra.mxu0 0.0
    %1305 = vmatprep.subr.mxu0 0.0
    %1306 = vmatpush1.msra.mxu0 0.0
    %1307 = vmatprep.subr.mxu0 0.0
    %1308 = vmatpush1.msra.mxu0 0.0
    %1309 = vmatprep.subr.mxu0 0.0
    %1310 = vmatpush1.msra.mxu0 0.0
    %1311 = vmatprep.subr.mxu0 0.0
    %1312 = vmatpush1.msra.mxu0 0.0
    %1313 = vmatprep.subr.mxu0 0.0
    %1314 = vmatpush1.msra.mxu0 0.0
    %1315 = vmatprep.subr.mxu0 0.0
    %1316 = vmatpush1.msra.mxu0 0.0
    %1317 = vmatprep.subr.mxu0 0.0
    %1318 = vmatpush1.msra.mxu0 0.0
    %1319 = vmatprep.subr.mxu0 0.0
    %1320 = vmatpush1.msra.mxu0 0.0
    %1321 = vmatprep.subr.mxu0 0.0
    %1322 = vmatpush1.msra.mxu0 0.0
    %1323 = vmatprep.subr.mxu0 0.0
    %1324 = vmatpush1.msra.mxu0 0.0
    %1325 = vmatprep.subr.mxu0 0.0
    %1326 = vmatpush1.msra.mxu0 0.0
    %1327 = vmatprep.subr.mxu0 0.0
    %1328 = vmatpush1.msra.mxu0 0.0
    %1329 = vmatprep.subr.mxu0 0.0
    %1330 = vmatpush1.msra.mxu0 0.0
    %1331 = vmatprep.subr.mxu0 0.0
    %1332 = vmatpush1.msra.mxu0 0.0
    %1333 = vmatprep.subr.mxu0 0.0
    %1334 = vmatpush1.msra.mxu0 0.0
    %1335 = vmatprep.subr.mxu0 0.0
    %1336 = vmatpush1.msra.mxu0 0.0
    %1337 = vmatprep.subr.mxu0 0.0
    %1338 = vmatpush1.msra.mxu0 0.0
    %1339 = vmatprep.subr.mxu0 0.0
    %1340 = vmatpush1.msra.mxu0 0.0
    %1341 = vmatprep.subr.mxu0 0.0
    %1342 = vmatpush1.msra.mxu0 0.0
    %1343 = vmatprep.subr.mxu0 0.0
    %1344 = vmatpush1.msra.mxu0 0.0
    %1345 = vmatprep.subr.mxu0 0.0
    %1346 = vmatpush1.msra.mxu0 0.0
    %1347 = vmatprep.subr.mxu0 0.0
    %1348 = vmatpush1.msra.mxu0 0.0
    %1349 = vmatprep.subr.mxu0 0.0
    %1350 = vmatpush1.msra.mxu0 0.0
    %1351 = vmatprep.subr.mxu0 0.0
    %1352 = vmatpush1.msra.mxu0 0.0
    %1353 = vmatprep.subr.mxu0 0.0
    %1354 = vmatpush1.msra.mxu0 0.0
    %1355 = vmatprep.mubr.f32.mxu0 0.0
    %1356 = vmatmul.mubr.f32.gmra.mrb[0].mxu0 %v1289
    %v1357 = vpop.f32.mrb[0].mxu0
    %v1358 = vadd.f32 0.0, %v1357
    %v1359 = vpop.f32.mrb[0].mxu0
    %1360 = vdwg.mxu0
    %v1361 = vadd.f32 %v1284, %v1358
    %v1362 = vmul.f32 %v1361, 0.5
    %v1363 = vtanh.pop %v1362
    %v1364 = vmul.f32 %v1363, 0.5
    %v1365 = vadd.f32 %v1364, 0.5
    %v1366 = vtanh.pop %v1361
    %v1367 = vmul.f32 %v1365, %v1163
    %1369 = vrot.lane.b32.xlu0 %v1366, 64
    %v1370 = vpop.permute.xlu0 %1369
    %v1372 = vmul.f32 %v1365, %v1370
    %1374 = vrot.lane.b32.xlu0 %v1372, 32
    %v1375 = vpop.permute.xlu0 %1374
    %v1377 = vadd.f32 %v1367, %v1375
    %v1378 = vtanh.pop %v1377
    %1380 = vrot.lane.b32.xlu0 %v1378, 64
    %v1381 = vpop.permute.xlu0 %1380
    %v1383 = vmul.f32 %v1365, %v1381
    %1385 = vrot.lane.b32.xlu0 %v1383, 32
    %v1386 = vpop.permute.xlu0 %1385
    %s1388 = scalar_lea.vmem [#allocation15], 16
    %1389 = vst.msk [vmem:[%s1388] sm:$0xff] %vm102, %v1386
    %s1390 = scalar_lea.vmem [#allocation6], 48
    %v1391 = vld [vmem:[%s1390] sm:$0xff]
    %v1392 = vld [vmem:[#allocation11] sm:$0xff]
    %v1393 = vld [vmem:[#allocation11 + $0x8] sm:$0xff]
    %v1394 = vld [vmem:[#allocation11 + $0x10] sm:$0xff]
    %v1395 = vld [vmem:[#allocation11 + $0x18] sm:$0xff]
    %v1396 = vsel %vm102, %v1279, 0
    %1398 = vmatprep.subr.mxu0 0.0
    %1399 = vmatpush1.msra.mxu0 %v1392
    %1400 = vmatprep.subr.mxu0 0.0
    %1401 = vmatpush1.msra.mxu0 %v1393
    %1402 = vmatprep.subr.mxu0 0.0
    %1403 = vmatpush1.msra.mxu0 %v1394
    %1404 = vmatprep.subr.mxu0 0.0
    %1405 = vmatpush1.msra.mxu0 %v1395
    %1406 = vmatprep.subr.mxu0 0.0
    %1407 = vmatpush1.msra.mxu0 0.0
    %1408 = vmatprep.subr.mxu0 0.0
    %1409 = vmatpush1.msra.mxu0 0.0
    %1410 = vmatprep.subr.mxu0 0.0
    %1411 = vmatpush1.msra.mxu0 0.0
    %1412 = vmatprep.subr.mxu0 0.0
    %1413 = vmatpush1.msra.mxu0 0.0
    %1414 = vmatprep.subr.mxu0 0.0
    %1415 = vmatpush1.msra.mxu0 0.0
    %1416 = vmatprep.subr.mxu0 0.0
    %1417 = vmatpush1.msra.mxu0 0.0
    %1418 = vmatprep.subr.mxu0 0.0
    %1419 = vmatpush1.msra.mxu0 0.0
    %1420 = vmatprep.subr.mxu0 0.0
    %1421 = vmatpush1.msra.mxu0 0.0
    %1422 = vmatprep.subr.mxu0 0.0
    %1423 = vmatpush1.msra.mxu0 0.0
    %1424 = vmatprep.subr.mxu0 0.0
    %1425 = vmatpush1.msra.mxu0 0.0
    %1426 = vmatprep.subr.mxu0 0.0
    %1427 = vmatpush1.msra.mxu0 0.0
    %1428 = vmatprep.subr.mxu0 0.0
    %1429 = vmatpush1.msra.mxu0 0.0
    %1430 = vmatprep.subr.mxu0 0.0
    %1431 = vmatpush1.msra.mxu0 0.0
    %1432 = vmatprep.subr.mxu0 0.0
    %1433 = vmatpush1.msra.mxu0 0.0
    %1434 = vmatprep.subr.mxu0 0.0
    %1435 = vmatpush1.msra.mxu0 0.0
    %1436 = vmatprep.subr.mxu0 0.0
    %1437 = vmatpush1.msra.mxu0 0.0
    %1438 = vmatprep.subr.mxu0 0.0
    %1439 = vmatpush1.msra.mxu0 0.0
    %1440 = vmatprep.subr.mxu0 0.0
    %1441 = vmatpush1.msra.mxu0 0.0
    %1442 = vmatprep.subr.mxu0 0.0
    %1443 = vmatpush1.msra.mxu0 0.0
    %1444 = vmatprep.subr.mxu0 0.0
    %1445 = vmatpush1.msra.mxu0 0.0
    %1446 = vmatprep.subr.mxu0 0.0
    %1447 = vmatpush1.msra.mxu0 0.0
    %1448 = vmatprep.subr.mxu0 0.0
    %1449 = vmatpush1.msra.mxu0 0.0
    %1450 = vmatprep.subr.mxu0 0.0
    %1451 = vmatpush1.msra.mxu0 0.0
    %1452 = vmatprep.subr.mxu0 0.0
    %1453 = vmatpush1.msra.mxu0 0.0
    %1454 = vmatprep.subr.mxu0 0.0
    %1455 = vmatpush1.msra.mxu0 0.0
    %1456 = vmatprep.subr.mxu0 0.0
    %1457 = vmatpush1.msra.mxu0 0.0
    %1458 = vmatprep.subr.mxu0 0.0
    %1459 = vmatpush1.msra.mxu0 0.0
    %1460 = vmatprep.subr.mxu0 0.0
    %1461 = vmatpush1.msra.mxu0 0.0
    %1462 = vmatprep.mubr.f32.mxu0 0.0
    %1463 = vmatmul.mubr.f32.gmra.mrb[0].mxu0 %v1396
    %v1464 = vpop.f32.mrb[0].mxu0
    %v1465 = vadd.f32 0.0, %v1464
    %v1466 = vpop.f32.mrb[0].mxu0
    %1467 = vdwg.mxu0
    %v1468 = vadd.f32 %v1391, %v1465
    %v1469 = vmul.f32 %v1468, 0.5
    %v1470 = vtanh.pop %v1469
    %v1471 = vmul.f32 %v1470, 0.5
    %v1472 = vadd.f32 %v1471, 0.5
    %v1473 = vtanh.pop %v1468
    %v1474 = vmul.f32 %v1472, %v1270
    %1476 = vrot.lane.b32.xlu0 %v1473, 64
    %v1477 = vpop.permute.xlu0 %1476
    %v1479 = vmul.f32 %v1472, %v1477
    %1481 = vrot.lane.b32.xlu0 %v1479, 32
    %v1482 = vpop.permute.xlu0 %1481
    %v1484 = vadd.f32 %v1474, %v1482
    %v1485 = vtanh.pop %v1484
    %1487 = vrot.lane.b32.xlu0 %v1485, 64
    %v1488 = vpop.permute.xlu0 %1487
    %v1490 = vmul.f32 %v1472, %v1488
    %1492 = vrot.lane.b32.xlu0 %v1490, 32
    %v1493 = vpop.permute.xlu0 %1492
    %s1495 = scalar_lea.vmem [#allocation14], 48
    %1496 = vst.msk [vmem:[%s1495] sm:$0xff] %vm102, %v1493
    %s1497 = scalar_lea.vmem [#allocation9], 8
    %v1498 = vld [vmem:[%s1497] sm:$0xff]
    %v1499 = vld [vmem:[#allocation12] sm:$0xff]
    %v1500 = vld [vmem:[#allocation12 + $0x8] sm:$0xff]
    %v1501 = vld [vmem:[#allocation12 + $0x10] sm:$0xff]
    %v1502 = vld [vmem:[#allocation12 + $0x18] sm:$0xff]
    %v1503 = vsel %vm102, %v1386, 0
    %1505 = vmatprep.subr.mxu0 0.0
    %1506 = vmatpush1.msra.mxu0 %v1499
    %1507 = vmatprep.subr.mxu0 0.0
    %1508 = vmatpush1.msra.mxu0 %v1500
    %1509 = vmatprep.subr.mxu0 0.0
    %1510 = vmatpush1.msra.mxu0 %v1501
    %1511 = vmatprep.subr.mxu0 0.0
    %1512 = vmatpush1.msra.mxu0 %v1502
    %1513 = vmatprep.subr.mxu0 0.0
    %1514 = vmatpush1.msra.mxu0 0.0
    %1515 = vmatprep.subr.mxu0 0.0
    %1516 = vmatpush1.msra.mxu0 0.0
    %1517 = vmatprep.subr.mxu0 0.0
    %1518 = vmatpush1.msra.mxu0 0.0
    %1519 = vmatprep.subr.mxu0 0.0
    %1520 = vmatpush1.msra.mxu0 0.0
    %1521 = vmatprep.subr.mxu0 0.0
    %1522 = vmatpush1.msra.mxu0 0.0
    %1523 = vmatprep.subr.mxu0 0.0
    %1524 = vmatpush1.msra.mxu0 0.0
    %1525 = vmatprep.subr.mxu0 0.0
    %1526 = vmatpush1.msra.mxu0 0.0
    %1527 = vmatprep.subr.mxu0 0.0
    %1528 = vmatpush1.msra.mxu0 0.0
    %1529 = vmatprep.subr.mxu0 0.0
    %1530 = vmatpush1.msra.mxu0 0.0
    %1531 = vmatprep.subr.mxu0 0.0
    %1532 = vmatpush1.msra.mxu0 0.0
    %1533 = vmatprep.subr.mxu0 0.0
    %1534 = vmatpush1.msra.mxu0 0.0
    %1535 = vmatprep.subr.mxu0 0.0
    %1536 = vmatpush1.msra.mxu0 0.0
    %1537 = vmatprep.subr.mxu0 0.0
    %1538 = vmatpush1.msra.mxu0 0.0
    %1539 = vmatprep.subr.mxu0 0.0
    %1540 = vmatpush1.msra.mxu0 0.0
    %1541 = vmatprep.subr.mxu0 0.0
    %1542 = vmatpush1.msra.mxu0 0.0
    %1543 = vmatprep.subr.mxu0 0.0
    %1544 = vmatpush1.msra.mxu0 0.0
    %1545 = vmatprep.subr.mxu0 0.0
    %1546 = vmatpush1.msra.mxu0 0.0
    %1547 = vmatprep.subr.mxu0 0.0
    %1548 = vmatpush1.msra.mxu0 0.0
    %1549 = vmatprep.subr.mxu0 0.0
    %1550 = vmatpush1.msra.mxu0 0.0
    %1551 = vmatprep.subr.mxu0 0.0
    %1552 = vmatpush1.msra.mxu0 0.0
    %1553 = vmatprep.subr.mxu0 0.0
    %1554 = vmatpush1.msra.mxu0 0.0
    %1555 = vmatprep.subr.mxu0 0.0
    %1556 = vmatpush1.msra.mxu0 0.0
    %1557 = vmatprep.subr.mxu0 0.0
    %1558 = vmatpush1.msra.mxu0 0.0
    %1559 = vmatprep.subr.mxu0 0.0
    %1560 = vmatpush1.msra.mxu0 0.0
    %1561 = vmatprep.subr.mxu0 0.0
    %1562 = vmatpush1.msra.mxu0 0.0
    %1563 = vmatprep.subr.mxu0 0.0
    %1564 = vmatpush1.msra.mxu0 0.0
    %1565 = vmatprep.subr.mxu0 0.0
    %1566 = vmatpush1.msra.mxu0 0.0
    %1567 = vmatprep.subr.mxu0 0.0
    %1568 = vmatpush1.msra.mxu0 0.0
    %1569 = vmatprep.mubr.f32.mxu0 0.0
    %1570 = vmatmul.mubr.f32.gmra.mrb[0].mxu0 %v1503
    %v1571 = vpop.f32.mrb[0].mxu0
    %v1572 = vadd.f32 0.0, %v1571
    %v1573 = vpop.f32.mrb[0].mxu0
    %1574 = vdwg.mxu0
    %v1575 = vadd.f32 %v1498, %v1572
    %v1576 = vmul.f32 %v1575, 0.5
    %v1577 = vtanh.pop %v1576
    %v1578 = vmul.f32 %v1577, 0.5
    %v1579 = vadd.f32 %v1578, 0.5
    %v1580 = vtanh.pop %v1575
    %v1581 = vmul.f32 %v1579, %v1377
    %1583 = vrot.lane.b32.xlu0 %v1580, 64
    %v1584 = vpop.permute.xlu0 %1583
    %v1586 = vmul.f32 %v1579, %v1584
    %1588 = vrot.lane.b32.xlu0 %v1586, 32
    %v1589 = vpop.permute.xlu0 %1588
    %v1591 = vadd.f32 %v1581, %v1589
    %v1592 = vtanh.pop %v1591
    %1594 = vrot.lane.b32.xlu0 %v1592, 64
    %v1595 = vpop.permute.xlu0 %1594
    %v1597 = vmul.f32 %v1579, %v1595
    %1599 = vrot.lane.b32.xlu0 %v1597, 32
    %v1600 = vpop.permute.xlu0 %1599
    %s1602 = scalar_lea.vmem [#allocation15], 8
    %1603 = vst.msk [vmem:[%s1602] sm:$0xff] %vm102, %v1600
    %s1604 = scalar_lea.vmem [#allocation6], 56
    %v1605 = vld [vmem:[%s1604] sm:$0xff]
    %v1606 = vld [vmem:[#allocation11] sm:$0xff]
    %v1607 = vld [vmem:[#allocation11 + $0x8] sm:$0xff]
    %v1608 = vld [vmem:[#allocation11 + $0x10] sm:$0xff]
    %v1609 = vld [vmem:[#allocation11 + $0x18] sm:$0xff]
    %v1610 = vsel %vm102, %v1493, 0
    %1612 = vmatprep.subr.mxu0 0.0
    %1613 = vmatpush1.msra.mxu0 %v1606
    %1614 = vmatprep.subr.mxu0 0.0
    %1615 = vmatpush1.msra.mxu0 %v1607
    %1616 = vmatprep.subr.mxu0 0.0
    %1617 = vmatpush1.msra.mxu0 %v1608
    %1618 = vmatprep.subr.mxu0 0.0
    %1619 = vmatpush1.msra.mxu0 %v1609
    %1620 = vmatprep.subr.mxu0 0.0
    %1621 = vmatpush1.msra.mxu0 0.0
    %1622 = vmatprep.subr.mxu0 0.0
    %1623 = vmatpush1.msra.mxu0 0.0
    %1624 = vmatprep.subr.mxu0 0.0
    %1625 = vmatpush1.msra.mxu0 0.0
    %1626 = vmatprep.subr.mxu0 0.0
    %1627 = vmatpush1.msra.mxu0 0.0
    %1628 = vmatprep.subr.mxu0 0.0
    %1629 = vmatpush1.msra.mxu0 0.0
    %1630 = vmatprep.subr.mxu0 0.0
    %1631 = vmatpush1.msra.mxu0 0.0
    %1632 = vmatprep.subr.mxu0 0.0
    %1633 = vmatpush1.msra.mxu0 0.0
    %1634 = vmatprep.subr.mxu0 0.0
    %1635 = vmatpush1.msra.mxu0 0.0
    %1636 = vmatprep.subr.mxu0 0.0
    %1637 = vmatpush1.msra.mxu0 0.0
    %1638 = vmatprep.subr.mxu0 0.0
    %1639 = vmatpush1.msra.mxu0 0.0
    %1640 = vmatprep.subr.mxu0 0.0
    %1641 = vmatpush1.msra.mxu0 0.0
    %1642 = vmatprep.subr.mxu0 0.0
    %1643 = vmatpush1.msra.mxu0 0.0
    %1644 = vmatprep.subr.mxu0 0.0
    %1645 = vmatpush1.msra.mxu0 0.0
    %1646 = vmatprep.subr.mxu0 0.0
    %1647 = vmatpush1.msra.mxu0 0.0
    %1648 = vmatprep.subr.mxu0 0.0
    %1649 = vmatpush1.msra.mxu0 0.0
    %1650 = vmatprep.subr.mxu0 0.0
    %1651 = vmatpush1.msra.mxu0 0.0
    %1652 = vmatprep.subr.mxu0 0.0
    %1653 = vmatpush1.msra.mxu0 0.0
    %1654 = vmatprep.subr.mxu0 0.0
    %1655 = vmatpush1.msra.mxu0 0.0
    %1656 = vmatprep.subr.mxu0 0.0
    %1657 = vmatpush1.msra.mxu0 0.0
    %1658 = vmatprep.subr.mxu0 0.0
    %1659 = vmatpush1.msra.mxu0 0.0
    %1660 = vmatprep.subr.mxu0 0.0
    %1661 = vmatpush1.msra.mxu0 0.0
    %1662 = vmatprep.subr.mxu0 0.0
    %1663 = vmatpush1.msra.mxu0 0.0
    %1664 = vmatprep.subr.mxu0 0.0
    %1665 = vmatpush1.msra.mxu0 0.0
    %1666 = vmatprep.subr.mxu0 0.0
    %1667 = vmatpush1.msra.mxu0 0.0
    %1668 = vmatprep.subr.mxu0 0.0
    %1669 = vmatpush1.msra.mxu0 0.0
    %1670 = vmatprep.subr.mxu0 0.0
    %1671 = vmatpush1.msra.mxu0 0.0
    %1672 = vmatprep.subr.mxu0 0.0
    %1673 = vmatpush1.msra.mxu0 0.0
    %1674 = vmatprep.subr.mxu0 0.0
    %1675 = vmatpush1.msra.mxu0 0.0
    %1676 = vmatprep.mubr.f32.mxu0 0.0
    %1677 = vmatmul.mubr.f32.gmra.mrb[0].mxu0 %v1610
    %v1678 = vpop.f32.mrb[0].mxu0
    %v1679 = vadd.f32 0.0, %v1678
    %v1680 = vpop.f32.mrb[0].mxu0
    %1681 = vdwg.mxu0
    %v1682 = vadd.f32 %v1605, %v1679
    %v1683 = vmul.f32 %v1682, 0.5
    %v1684 = vtanh.pop %v1683
    %v1685 = vmul.f32 %v1684, 0.5
    %v1686 = vadd.f32 %v1685, 0.5
    %v1687 = vtanh.pop %v1682
    %v1688 = vmul.f32 %v1686, %v1484
    %1690 = vrot.lane.b32.xlu0 %v1687, 64
    %v1691 = vpop.permute.xlu0 %1690
    %v1693 = vmul.f32 %v1686, %v1691
    %1695 = vrot.lane.b32.xlu0 %v1693, 32
    %v1696 = vpop.permute.xlu0 %1695
    %v1698 = vadd.f32 %v1688, %v1696
    %v1699 = vtanh.pop %v1698
    %1701 = vrot.lane.b32.xlu0 %v1699, 64
    %v1702 = vpop.permute.xlu0 %1701
    %v1704 = vmul.f32 %v1686, %v1702
    %1706 = vrot.lane.b32.xlu0 %v1704, 32
    %v1707 = vpop.permute.xlu0 %1706
    %s1709 = scalar_lea.vmem [#allocation14], 56
    %1710 = vst.msk [vmem:[%s1709] sm:$0xff] %vm102, %v1707
    %v1711 = vld [vmem:[#allocation9] sm:$0xff]
    %v1712 = vld [vmem:[#allocation12] sm:$0xff]
    %v1713 = vld [vmem:[#allocation12 + $0x8] sm:$0xff]
    %v1714 = vld [vmem:[#allocation12 + $0x10] sm:$0xff]
    %v1715 = vld [vmem:[#allocation12 + $0x18] sm:$0xff]
    %v1716 = vsel %vm102, %v1600, 0
    %1718 = vmatprep.subr.mxu0 0.0
    %1719 = vmatpush1.msra.mxu0 %v1712
    %1720 = vmatprep.subr.mxu0 0.0
    %1721 = vmatpush1.msra.mxu0 %v1713
    %1722 = vmatprep.subr.mxu0 0.0
    %1723 = vmatpush1.msra.mxu0 %v1714
    %1724 = vmatprep.subr.mxu0 0.0
    %1725 = vmatpush1.msra.mxu0 %v1715
    %1726 = vmatprep.subr.mxu0 0.0
    %1727 = vmatpush1.msra.mxu0 0.0
    %1728 = vmatprep.subr.mxu0 0.0
    %1729 = vmatpush1.msra.mxu0 0.0
    %1730 = vmatprep.subr.mxu0 0.0
    %1731 = vmatpush1.msra.mxu0 0.0
    %1732 = vmatprep.subr.mxu0 0.0
    %1733 = vmatpush1.msra.mxu0 0.0
    %1734 = vmatprep.subr.mxu0 0.0
    %1735 = vmatpush1.msra.mxu0 0.0
    %1736 = vmatprep.subr.mxu0 0.0
    %1737 = vmatpush1.msra.mxu0 0.0
    %1738 = vmatprep.subr.mxu0 0.0
    %1739 = vmatpush1.msra.mxu0 0.0
    %1740 = vmatprep.subr.mxu0 0.0
    %1741 = vmatpush1.msra.mxu0 0.0
    %1742 = vmatprep.subr.mxu0 0.0
    %1743 = vmatpush1.msra.mxu0 0.0
    %1744 = vmatprep.subr.mxu0 0.0
    %1745 = vmatpush1.msra.mxu0 0.0
    %1746 = vmatprep.subr.mxu0 0.0
    %1747 = vmatpush1.msra.mxu0 0.0
    %1748 = vmatprep.subr.mxu0 0.0
    %1749 = vmatpush1.msra.mxu0 0.0
    %1750 = vmatprep.subr.mxu0 0.0
    %1751 = vmatpush1.msra.mxu0 0.0
    %1752 = vmatprep.subr.mxu0 0.0
    %1753 = vmatpush1.msra.mxu0 0.0
    %1754 = vmatprep.subr.mxu0 0.0
    %1755 = vmatpush1.msra.mxu0 0.0
    %1756 = vmatprep.subr.mxu0 0.0
    %1757 = vmatpush1.msra.mxu0 0.0
    %1758 = vmatprep.subr.mxu0 0.0
    %1759 = vmatpush1.msra.mxu0 0.0
    %1760 = vmatprep.subr.mxu0 0.0
    %1761 = vmatpush1.msra.mxu0 0.0
    %1762 = vmatprep.subr.mxu0 0.0
    %1763 = vmatpush1.msra.mxu0 0.0
    %1764 = vmatprep.subr.mxu0 0.0
    %1765 = vmatpush1.msra.mxu0 0.0
    %1766 = vmatprep.subr.mxu0 0.0
    %1767 = vmatpush1.msra.mxu0 0.0
    %1768 = vmatprep.subr.mxu0 0.0
    %1769 = vmatpush1.msra.mxu0 0.0
    %1770 = vmatprep.subr.mxu0 0.0
    %1771 = vmatpush1.msra.mxu0 0.0
    %1772 = vmatprep.subr.mxu0 0.0
    %1773 = vmatpush1.msra.mxu0 0.0
    %1774 = vmatprep.subr.mxu0 0.0
    %1775 = vmatpush1.msra.mxu0 0.0
    %1776 = vmatprep.subr.mxu0 0.0
    %1777 = vmatpush1.msra.mxu0 0.0
    %1778 = vmatprep.subr.mxu0 0.0
    %1779 = vmatpush1.msra.mxu0 0.0
    %1780 = vmatprep.subr.mxu0 0.0
    %1781 = vmatpush1.msra.mxu0 0.0
    %1782 = vmatprep.mubr.f32.mxu0 0.0
    %1783 = vmatmul.mubr.f32.gmra.mrb[0].mxu0 %v1716
    %v1784 = vpop.f32.mrb[0].mxu0
    %v1785 = vadd.f32 0.0, %v1784
    %v1786 = vpop.f32.mrb[0].mxu0
    %1787 = vdwg.mxu0
    %v1788 = vadd.f32 %v1711, %v1785
    %v1789 = vmul.f32 %v1788, 0.5
    %v1790 = vtanh.pop %v1789
    %v1791 = vmul.f32 %v1790, 0.5
    %v1792 = vadd.f32 %v1791, 0.5
    %v1793 = vtanh.pop %v1788
    %v1794 = vmul.f32 %v1792, %v1591
    %1796 = vrot.lane.b32.xlu0 %v1793, 64
    %v1797 = vpop.permute.xlu0 %1796
    %v1799 = vmul.f32 %v1792, %v1797
    %1801 = vrot.lane.b32.xlu0 %v1799, 32
    %v1802 = vpop.permute.xlu0 %1801
    %v1804 = vadd.f32 %v1794, %v1802
    %v1805 = vtanh.pop %v1804
    %1807 = vrot.lane.b32.xlu0 %v1805, 64
    %v1808 = vpop.permute.xlu0 %1807
    %v1810 = vmul.f32 %v1792, %v1808
    %1812 = vrot.lane.b32.xlu0 %v1810, 32
    %v1813 = vpop.permute.xlu0 %1812
    %1815 = vst.msk [vmem:[#allocation15] sm:$0xff] %vm102, %v1813
    %1816 = vst.msk [vmem:[#allocation2] sm:$0xff] %vm102, %v1707
    %1818 = vrot.lane.b32.xlu0 %v1698, 96
    %v1819 = vpop.permute.xlu0 %1818
    %1821 = vst.msk [vmem:[#allocation3] sm:$0xff] %vm102, %v1819
    %1822 = vst.msk [vmem:[#allocation4] sm:$0xff] %vm102, %v1813
    %1824 = vrot.lane.b32.xlu0 %v1804, 96
    %v1825 = vpop.permute.xlu0 %1824
    %1827 = vst.msk [vmem:[#allocation5] sm:$0xff] %vm102, %v1825
    // Predicated region
    $region38: #{tpu_custom_call.1} parent=1 // pred_check
      _
    $region39: #{tpu_custom_call.1} parent=1 // pred_check_branch
      %1829 = sbr.rel (0) target = $region41
    $region40: #{tpu_custom_call.1} parent=1 // pred_region
      %s1831 = ssub.s32 1024, 1024
      %1832 = vsyncadd [#allocation8], %s1831
      %s1833 = sshll.u32 [#allocation14], 4
      %s1834 = int_to_ptr.vmem [resolvable:$true] %s1833
      %1839 = dma.vmem_to_hbm [thread:$0]  %s1834, 1024, %s4, [#allocation8], 128, 128, 8
    $region41: #{tpu_custom_call.1} parent=1 // pred_fallthru
      _
    // Predicated region
    $region42: #{tpu_custom_call.1} parent=1 // pred_check
      _
    $region43: #{tpu_custom_call.1} parent=1 // pred_check_branch
      %1841 = sbr.rel (0) target = $region45
    $region44: #{tpu_custom_call.1} parent=1 // pred_region
      %s1842 = ssub.s32 0, 0
      %s1843 = smul.u32 8, %s1842
      %s1845 = ssub.s32 1024, 1024
      %1846 = vsyncadd [#allocation16], %s1845
      %s1847 = smul.addr %s1843, 128
      %s1848 = scalar_lea.hbm %s5, %s1847
      %s1849 = sshll.u32 [#allocation15], 4
      %s1850 = int_to_ptr.vmem [resolvable:$true] %s1849
      %1855 = dma.vmem_to_hbm [thread:$0]  %s1850, 1024, %s1848, [#allocation16], 128, 128, 8
    $region45: #{tpu_custom_call.1} parent=1 // pred_fallthru
      _
    // Predicated region
    $region46: #{tpu_custom_call.1} parent=1 // pred_check
      _
    $region47: #{tpu_custom_call.1} parent=1 // pred_check_branch
      %1857 = sbr.rel (0) target = $region49
    $region48: #{tpu_custom_call.1} parent=1 // pred_region
      %1858 = dma.done [#allocation8], 1024
    $region49: #{tpu_custom_call.1} parent=1 // pred_fallthru
      _
    // Predicated region
    $region50: #{tpu_custom_call.1} parent=1 // pred_check
      _
    $region51: #{tpu_custom_call.1} parent=1 // pred_check_branch
      %1860 = sbr.rel (0) target = $region53
    $region52: #{tpu_custom_call.1} parent=1 // pred_region
      %1861 = dma.done [#allocation16], 1024
    $region53: #{tpu_custom_call.1} parent=1 // pred_fallthru
      _
    %1862 = vsyncpa [#allocation7], 1
    %1863 = vsyncpa [#allocation10], 1
    %1864 = vsyncpa [#allocation13], 1
    %1865 = vsyncpa [#allocation8], 1
    %1866 = vsyncpa [#allocation16], 1

</llo_original>
